<compile_context>
chip_gen: v7x
topology: tpu7x:2x2x1
jax: 0.10.0
libtpu: 0.0.40
codegen_flags: <defaults>
</compile_context>

<pallas_src>
import functools
import math

import jax
import jax.numpy as jnp
from jax.experimental import pallas as pl
from jax.experimental.pallas import tpu as pltpu


# -----------------------------------------------------------------------------
# Glue: TMPQ decomposition, patching (unfold), sinusoidal positional embedding
# -----------------------------------------------------------------------------
def _moving_avg(x, k):
    """Replicate-padded centered moving average over the last axis via cumsum.
    x: (B, C, L)."""
    pad_l = (k - 1) // 2
    pad_r = k - 1 - pad_l
    xp = jnp.pad(x, ((0, 0), (0, 0), (pad_l, pad_r)), mode="edge")
    c = jnp.cumsum(xp, axis=-1)
    c = jnp.concatenate([jnp.zeros_like(c[..., :1]), c], axis=-1)
    return (c[..., k:] - c[..., :-k]) / float(k)


def tmpq(x):
    """Multi-scale decomposition: x == trend + s1 + s2 + s3.  x: (B, C, L)."""
    m_s = _moving_avg(x, 5)
    m_m = _moving_avg(x, 13)
    m_l = _moving_avg(x, 25)
    return {
        "trend": m_l[:, None],                 # (B, 1, C, L)
        "seasonal_1": (m_m - m_l)[:, None],
        "seasonal_2": (m_s - m_m)[:, None],
        "seasonal_3": (x - m_s)[:, None],
    }


def patching(x, patch_len, stride):
    """torch.unfold over the last axis.  x: (B, C, L) -> (B, C, P, patch_len).
    For stride == patch_len this is a pure reshape (no gather)."""
    L = x.shape[-1]
    n_patches = (L - patch_len) // stride + 1
    if stride == patch_len:
        return x[..., : n_patches * patch_len].reshape(
            *x.shape[:-1], n_patches, patch_len)
    starts = jnp.arange(n_patches) * stride
    idx = starts[:, None] + jnp.arange(patch_len)[None, :]   # (P, patch_len)
    return x[..., idx]


def seq_mask_to_patch_mask(mask, patch_len, stride):
    """Patch observed iff all its timesteps are observed.  mask: (B, L) -> (B, P)."""
    L = mask.shape[-1]
    n_patches = (L - patch_len) // stride + 1
    if stride == patch_len:
        m = mask[:, : n_patches * patch_len].reshape(-1, n_patches, patch_len)
    else:
        starts = jnp.arange(n_patches) * stride
        idx = starts[:, None] + jnp.arange(patch_len)[None, :]
        m = mask[:, idx]
    return (jnp.sum(m, axis=-1) == patch_len).astype(jnp.float32)   # (B, P)


def sinusoidal_pe(max_len, d_model):
    pos = jnp.arange(max_len, dtype=jnp.float32)[:, None]
    div = jnp.exp(
        jnp.arange(0, d_model, 2, dtype=jnp.float32) * (-jnp.log(10000.0) / d_model)
    )
    pe = jnp.zeros((max_len, d_model), dtype=jnp.float32)
    pe = pe.at[:, 0::2].set(jnp.sin(pos * div))
    pe = pe.at[:, 1::2].set(jnp.cos(pos * div))
    return pe


# -----------------------------------------------------------------------------
# Pallas kernel: fused value-embedding + mask-embedding + PE + 1x1-conv mix
# -----------------------------------------------------------------------------
def _embed_kernel(x_ref, r_ref, wexp_ref, wch_ref, s_ref, peb_ref, out_ref):
    # x_ref   : (P, nb*Lp)     bf16  streamed -- row p holds nb masked patches
    # r_ref   : (P, nb)        f32   streamed -- W_ch @ (1 - mask) coefficients
    # wexp_ref: (nb*Lp, nb*D)  bf16  resident -- kron(I_nb, Wv^T)
    # wch_ref : (P, P)         f32   resident -- channel-mix (Conv1d k=1) weight
    # s_ref   : (nb, nb*D)     f32   resident -- kron(I_nb, mask_emb row)
    # peb_ref : (P, nb*D)      f32   resident -- tile(W_ch @ PE + b_ch, nb)
    # out_ref : (P, nb*D)      f32
    emb = jnp.dot(x_ref[...], wexp_ref[...],
                  preferred_element_type=jnp.float32)          # (P, nb*D) value emb
    mix = jnp.dot(wch_ref[...], emb,
                  preferred_element_type=jnp.float32)          # channel mix
    mbias = jnp.dot(r_ref[...], s_ref[...],
                    preferred_element_type=jnp.float32)        # (1-m) * mask_emb term
    out_ref[...] = (mix + mbias + peb_ref[...]).astype(out_ref.dtype)


def _block_sizing(N, Lp, D, target_nb=64):
    """Pick slices-per-step nb = gpb*k so that rows are 128-lane packed,
    the output last dim (nb*D) is a multiple of 128, residents stay small,
    and there are >= 2 grid steps whenever the slice count allows (v7x)."""
    k = max(1, 128 // Lp)                       # slices packed per 128-lane row
    n_groups = math.ceil(N / k)
    gpb = max(1, min(max(1, target_nb // k), n_groups))
    if n_groups >= 2:                           # keep >=2 steps for megacore
        gpb = min(gpb, max(1, n_groups // 2))
    while (gpb * k * D) % 128 != 0:             # lane-dense output
        gpb += 1
    nb = gpb * k
    n_steps = math.ceil(N / nb)
    return nb, n_steps


def embed_component(patches, patch_mask, w_val, mask_emb, w_ch, b_ch, *,
                    target_nb=64):
    """patches: (B, C, P, Lp), patch_mask: (B, P) -> (B*C, P, d_model) f32."""
    B, C, P, Lp = patches.shape
    D = w_val.shape[0]
    N = B * C

    nb, n_steps = _block_sizing(N, Lp, D, target_nb)
    n_pad = n_steps * nb
    nbLp, nbD = nb * Lp, nb * D

    # ---- wrapper-side prep (tiny, XLA) ------------------------------------
    m = jnp.broadcast_to(patch_mask[:, None, :], (B, C, P)).reshape(N, P)
    x = m[:, :, None] * patches.reshape(N, P, Lp)              # fold mask into x
    if n_pad != N:
        x = jnp.pad(x, ((0, n_pad - N), (0, 0), (0, 0)))
        m = jnp.pad(m, ((0, n_pad - N), (0, 0)), constant_values=1.0)

    # patch-major, lane-packed streamed rows: (n_steps, P, nb*Lp) bf16
    xk = (x.reshape(n_steps, nb, P, Lp)
            .transpose(0, 2, 1, 3)
            .reshape(n_steps, P, nbLp)
            .astype(jnp.bfloat16))

    w_ch = w_ch.astype(jnp.float32)
    # mask-embedding coefficients pushed through the channel mix:
    #   r[s, o, n] = sum_p W_ch[o, p] * (1 - m[s*nb+n, p])
    r = jnp.einsum("op,snp->son", w_ch, 1.0 - m.reshape(n_steps, nb, P))
    r = r.astype(jnp.float32)                                  # (n_steps, P, nb)

    # VMEM-resident operands (constant index maps)
    wexp = jnp.kron(jnp.eye(nb, dtype=jnp.float32),
                    w_val.T.astype(jnp.float32)).astype(jnp.bfloat16)   # (nb*Lp, nb*D)
    s_mat = jnp.kron(jnp.eye(nb, dtype=jnp.float32),
                     mask_emb.astype(jnp.float32)[None, :])             # (nb, nb*D)
    peb = jnp.dot(w_ch, sinusoidal_pe(P, D)) + b_ch.astype(jnp.float32)[:, None]
    peb_t = jnp.tile(peb, (1, nb))                                      # (P, nb*D)

    out = pl.pallas_call(
        _embed_kernel,
        out_shape=jax.ShapeDtypeStruct((n_steps, P, nbD), jnp.float32),
        grid_spec=pltpu.PrefetchScalarGridSpec(
            num_scalar_prefetch=0,
            grid=(n_steps,),
            in_specs=[
                pl.BlockSpec((None, P, nbLp), lambda s: (s, 0, 0)),   # x   (streamed)
                pl.BlockSpec((None, P, nb),   lambda s: (s, 0, 0)),   # r   (streamed)
                pl.BlockSpec((nbLp, nbD),     lambda s: (0, 0)),      # wexp (resident)
                pl.BlockSpec((P, P),          lambda s: (0, 0)),      # w_ch (resident)
                pl.BlockSpec((nb, nbD),       lambda s: (0, 0)),      # S    (resident)
                pl.BlockSpec((P, nbD),        lambda s: (0, 0)),      # peb  (resident)
            ],
            out_specs=pl.BlockSpec((None, P, nbD), lambda s: (s, 0, 0)),
        ),
        compiler_params=pltpu.CompilerParams(
            dimension_semantics=("parallel",),
            vmem_limit_bytes=48 * 1024 * 1024,   # safe on v7x (64 MiB phys)
        ),
    )(xk, r, wexp, w_ch, s_mat, peb_t)

    # (n_steps, P, nb*D) -> (N, P, D)
    out = out.reshape(n_steps, P, nb, D).transpose(0, 2, 1, 3).reshape(n_pad, P, D)
    return out[:N]


# -----------------------------------------------------------------------------
# Parameter construction (deterministic, in-script)
# -----------------------------------------------------------------------------
def init_params(key, d_model, patch_lens, patch_nums, orth_gain=1.41):
    params = {}
    keys = jax.random.split(key, 3 * len(patch_lens))
    for i, (pl_i, pn_i) in enumerate(zip(patch_lens, patch_nums)):
        k_val, k_ch, k_memb = keys[3 * i], keys[3 * i + 1], keys[3 * i + 2]
        # value embedding: Linear(patch_len, d_model, bias=False), scaled init
        w_val = orth_gain * jax.random.normal(k_val, (d_model, pl_i),
                                              dtype=jnp.float32) / jnp.sqrt(pl_i)
        # mask embedding: module inits to zeros; use a nonzero value here so the
        # self-test actually exercises the (1-m)*mask_emb path.
        mask_emb = 0.1 * jax.random.normal(k_memb, (d_model,), dtype=jnp.float32)
        # channel embedding: Conv1d(patch_num, patch_num, kernel_size=1, bias=True)
        w_ch = jax.random.normal(k_ch, (pn_i, pn_i), dtype=jnp.float32) / jnp.sqrt(pn_i)
        b_ch = 0.01 * jnp.arange(pn_i, dtype=jnp.float32)
        params[i + 1] = dict(w_val=w_val, mask_emb=mask_emb, w_ch=w_ch, b_ch=b_ch)
    return params


# -----------------------------------------------------------------------------
# Full forward (matches TMPMomentEmbedding.forward); one jit region
# -----------------------------------------------------------------------------
def tmp_moment_embedding_forward(params, x, mask, patch_lens, strides):
    d = tmpq(x)
    ct = jnp.squeeze(d["trend"], axis=1)                        # (B, C, L)
    comps = [jnp.squeeze(d[f"seasonal_{i}"], axis=1) for i in (1, 2, 3)]

    outs = []
    for i, (c, pl_i, st_i) in enumerate(zip(comps, patch_lens, strides), start=1):
        patches = patching(c, pl_i, st_i)                       # (B, C, P, Lp)
        pmask = seq_mask_to_patch_mask(mask, pl_i, st_i)        # (B, P)
        p = params[i]
        # patch dropout is inference-mode identity
        outs.append(embed_component(patches, pmask, p["w_val"], p["mask_emb"],
                                    p["w_ch"], p["b_ch"]))      # (B*C, P, D)

    B, C, L = ct.shape
    return (ct.reshape(B * C, L), outs[0], outs[1], outs[2])


# Pure-JAX reference for correctness checking (same bf16 rounding of inputs).
def _ref_component(patches, patch_mask, w_val, mask_emb, w_ch, b_ch):
    B, C, P, Lp = patches.shape
    D = w_val.shape[0]
    m = patch_mask[:, None, :, None]                            # (B, 1, P, 1)
    xm = (m * patches).astype(jnp.bfloat16).astype(jnp.float32)
    wvt = w_val.T.astype(jnp.bfloat16).astype(jnp.float32)
    emb = jnp.einsum("bcpl,ld->bcpd", xm, wvt)
    emb = emb + (1.0 - m) * mask_emb
    emb = emb + sinusoidal_pe(P, D)
    e = emb.reshape(B * C, P, D)
    return jnp.einsum("op,npd->nod", w_ch, e) + b_ch[None, :, None]


if __name__ == "__main__":
    B, C, L = 2, 3, 64
    d_model = 32
    patch_lens = (8, 16, 4)
    strides = (8, 16, 4)
    patch_nums = tuple((L - p) // s + 1 for p, s in zip(patch_lens, strides))  # (8, 4, 16)

    key = jax.random.PRNGKey(0)
    kx, km, kp = jax.random.split(key, 3)
    x = jax.random.normal(kx, (B, C, L), dtype=jnp.float32)
    mask = (jax.random.uniform(km, (B, L)) > 0.3).astype(jnp.float32)

    params = init_params(kp, d_model, patch_lens, patch_nums)

    fwd = jax.jit(functools.partial(tmp_moment_embedding_forward,
                                    patch_lens=patch_lens, strides=strides))
    ct, c1, c2, c3 = fwd(params, x, mask)
    jax.block_until_ready((ct, c1, c2, c3))

    # sanity: compare Pallas fused path against a pure-JAX reference.
    # Tolerance covers XLA-vs-Mosaic f32 matmul precision defaults; structural
    # bugs would show up as O(0.1-1) errors.
    d = tmpq(x)
    comps = [jnp.squeeze(d[f"seasonal_{i}"], axis=1) for i in (1, 2, 3)]
    for i, (c, out, pl_i, st_i) in enumerate(zip(comps, (c1, c2, c3),
                                                 patch_lens, strides), start=1):
        patches = patching(c, pl_i, st_i)
        pmask = seq_mask_to_patch_mask(mask, pl_i, st_i)
        p = params[i]
        ref = _ref_component(patches, pmask, p["w_val"], p["mask_emb"],
                             p["w_ch"], p["b_ch"])
        assert out.shape == (B * C, patches.shape[2], d_model), (i, out.shape)
        err = float(jnp.max(jnp.abs(out - ref)))
        assert jnp.allclose(out, ref, atol=3e-2, rtol=3e-2), (i, err)
    assert ct.shape == (B * C, L)

    print("KERNEL_OK")
</pallas_src>

<mosaic_0001>
module attributes {stable_mosaic.version = 11 : i64} {
  func.func @_embed_kernel(%arg0: i32, %arg1: memref<1x8x128xbf16, #tpu.memory_space<vmem>>, %arg2: memref<1x8x16xf32, #tpu.memory_space<vmem>>, %arg3: memref<128x512xbf16, #tpu.memory_space<vmem>>, %arg4: memref<8x8xf32, #tpu.memory_space<vmem>>, %arg5: memref<16x512xf32, #tpu.memory_space<vmem>>, %arg6: memref<8x512xf32, #tpu.memory_space<vmem>>, %arg7: memref<1x8x512xf32, #tpu.memory_space<vmem>>) attributes {dimension_semantics = [#tpu.dimension_semantics<parallel>], iteration_bounds = array<i64: 1>, scalar_prefetch = 0 : i64, scratch_operands = 0 : i64, tpu.core_type = #tpu.core_type<tc>, window_params = [{transform_indices = @transform_0, window_bounds = array<i64: 1, 8, 128>}, {transform_indices = @transform_1, window_bounds = array<i64: 1, 8, 16>}, {pipeline_mode = #tpu.pipeline_mode<synchronous>, transform_indices = @transform_2, window_bounds = array<i64: 128, 512>}, {pipeline_mode = #tpu.pipeline_mode<synchronous>, transform_indices = @transform_3, window_bounds = array<i64: 8, 8>}, {pipeline_mode = #tpu.pipeline_mode<synchronous>, transform_indices = @transform_4, window_bounds = array<i64: 16, 512>}, {pipeline_mode = #tpu.pipeline_mode<synchronous>, transform_indices = @transform_5, window_bounds = array<i64: 8, 512>}, {transform_indices = @transform_6, window_bounds = array<i64: 1, 8, 512>}]} {
    %c0 = arith.constant 0 : index
    %c0_0 = arith.constant 0 : index
    %c0_1 = arith.constant 0 : index
    %0 = vector.load %arg1[%c0, %c0_0, %c0_1] : memref<1x8x128xbf16, #tpu.memory_space<vmem>>, vector<1x8x128xbf16>
    %1 = vector.shape_cast %0 : vector<1x8x128xbf16> to vector<8x128xbf16>
    %c0_2 = arith.constant 0 : index
    %c0_3 = arith.constant 0 : index
    %2 = vector.load %arg3[%c0_2, %c0_3] : memref<128x512xbf16, #tpu.memory_space<vmem>>, vector<128x512xbf16>
    %cst = arith.constant dense<0.000000e+00> : vector<8x512xf32>
    %3 = tpu.matmul %1, %2, %cst {dimension_numbers = #tpu.dot_dimension_numbers<[1], [0], [0], [1], [0, 0, 1, 1], [], []>} : vector<8x128xbf16>, vector<128x512xbf16>, vector<8x512xf32> -> vector<8x512xf32>
    %c0_4 = arith.constant 0 : index
    %c0_5 = arith.constant 0 : index
    %4 = vector.load %arg4[%c0_4, %c0_5] : memref<8x8xf32, #tpu.memory_space<vmem>>, vector<8x8xf32>
    %cst_6 = arith.constant dense<0.000000e+00> : vector<8x512xf32>
    %5 = tpu.matmul %4, %3, %cst_6 {dimension_numbers = #tpu.dot_dimension_numbers<[1], [0], [0], [1], [0, 0, 1, 1], [], []>} : vector<8x8xf32>, vector<8x512xf32>, vector<8x512xf32> -> vector<8x512xf32>
    %c0_7 = arith.constant 0 : index
    %c0_8 = arith.constant 0 : index
    %c0_9 = arith.constant 0 : index
    %6 = vector.load %arg2[%c0_7, %c0_8, %c0_9] : memref<1x8x16xf32, #tpu.memory_space<vmem>>, vector<1x8x16xf32>
    %7 = vector.shape_cast %6 : vector<1x8x16xf32> to vector<8x16xf32>
    %c0_10 = arith.constant 0 : index
    %c0_11 = arith.constant 0 : index
    %8 = vector.load %arg5[%c0_10, %c0_11] : memref<16x512xf32, #tpu.memory_space<vmem>>, vector<16x512xf32>
    %cst_12 = arith.constant dense<0.000000e+00> : vector<8x512xf32>
    %9 = tpu.matmul %7, %8, %cst_12 {dimension_numbers = #tpu.dot_dimension_numbers<[1], [0], [0], [1], [0, 0, 1, 1], [], []>} : vector<8x16xf32>, vector<16x512xf32>, vector<8x512xf32> -> vector<8x512xf32>
    %10 = arith.addf %5, %9 : vector<8x512xf32>
    %c0_13 = arith.constant 0 : index
    %c0_14 = arith.constant 0 : index
    %11 = vector.load %arg6[%c0_13, %c0_14] : memref<8x512xf32, #tpu.memory_space<vmem>>, vector<8x512xf32>
    %12 = arith.addf %10, %11 : vector<8x512xf32>
    %c0_15 = arith.constant 0 : index
    %c0_16 = arith.constant 0 : index
    %c0_17 = arith.constant 0 : index
    %13 = vector.load %arg7[%c0_15, %c0_16, %c0_17] : memref<1x8x512xf32, #tpu.memory_space<vmem>>, vector<1x8x512xf32>
    %14 = vector.shape_cast %13 : vector<1x8x512xf32> to vector<8x512xf32>
    %15 = vector.shape_cast %12 : vector<8x512xf32> to vector<1x8x512xf32>
    tpu.vector_store %arg7[%c0_15, %c0_16, %c0_17], %15 {strides = array<i32>} : memref<1x8x512xf32, #tpu.memory_space<vmem>>, vector<1x8x512xf32>,
    return
  }
  func.func @transform_0(%arg0: i32) -> (i32, i32, i32) {
    %c0_i32 = arith.constant 0 : i32
    %c0_i32_0 = arith.constant 0 : i32
    %c0_i32_1 = arith.constant 0 : i32
    return %arg0, %c0_i32, %c0_i32_0 : i32, i32, i32
  }
  func.func @transform_1(%arg0: i32) -> (i32, i32, i32) {
    %c0_i32 = arith.constant 0 : i32
    %c0_i32_0 = arith.constant 0 : i32
    %c0_i32_1 = arith.constant 0 : i32
    return %arg0, %c0_i32, %c0_i32_0 : i32, i32, i32
  }
  func.func @transform_2(%arg0: i32) -> (i32, i32) {
    %c0_i32 = arith.constant 0 : i32
    %c0_i32_0 = arith.constant 0 : i32
    %c0_i32_1 = arith.constant 0 : i32
    return %c0_i32, %c0_i32_0 : i32, i32
  }
  func.func @transform_3(%arg0: i32) -> (i32, i32) {
    %c0_i32 = arith.constant 0 : i32
    %c0_i32_0 = arith.constant 0 : i32
    %c0_i32_1 = arith.constant 0 : i32
    return %c0_i32, %c0_i32_0 : i32, i32
  }
  func.func @transform_4(%arg0: i32) -> (i32, i32) {
    %c0_i32 = arith.constant 0 : i32
    %c0_i32_0 = arith.constant 0 : i32
    %c0_i32_1 = arith.constant 0 : i32
    return %c0_i32, %c0_i32_0 : i32, i32
  }
  func.func @transform_5(%arg0: i32) -> (i32, i32) {
    %c0_i32 = arith.constant 0 : i32
    %c0_i32_0 = arith.constant 0 : i32
    %c0_i32_1 = arith.constant 0 : i32
    return %c0_i32, %c0_i32_0 : i32, i32
  }
  func.func @transform_6(%arg0: i32) -> (i32, i32, i32) {
    %c0_i32 = arith.constant 0 : i32
    %c0_i32_0 = arith.constant 0 : i32
    %c0_i32_1 = arith.constant 0 : i32
    return %arg0, %c0_i32, %c0_i32_0 : i32, i32, i32
  }
}

module attributes {stable_mosaic.version = 11 : i64} {
  func.func @_embed_kernel(%arg0: i32, %arg1: memref<1x4x128xbf16, #tpu.memory_space<vmem>>, %arg2: memref<1x4x8xf32, #tpu.memory_space<vmem>>, %arg3: memref<128x256xbf16, #tpu.memory_space<vmem>>, %arg4: memref<4x4xf32, #tpu.memory_space<vmem>>, %arg5: memref<8x256xf32, #tpu.memory_space<vmem>>, %arg6: memref<4x256xf32, #tpu.memory_space<vmem>>, %arg7: memref<1x4x256xf32, #tpu.memory_space<vmem>>) attributes {dimension_semantics = [#tpu.dimension_semantics<parallel>], iteration_bounds = array<i64: 1>, scalar_prefetch = 0 : i64, scratch_operands = 0 : i64, tpu.core_type = #tpu.core_type<tc>, window_params = [{transform_indices = @transform_0, window_bounds = array<i64: 1, 4, 128>}, {transform_indices = @transform_1, window_bounds = array<i64: 1, 4, 8>}, {pipeline_mode = #tpu.pipeline_mode<synchronous>, transform_indices = @transform_2, window_bounds = array<i64: 128, 256>}, {pipeline_mode = #tpu.pipeline_mode<synchronous>, transform_indices = @transform_3, window_bounds = array<i64: 4, 4>}, {pipeline_mode = #tpu.pipeline_mode<synchronous>, transform_indices = @transform_4, window_bounds = array<i64: 8, 256>}, {pipeline_mode = #tpu.pipeline_mode<synchronous>, transform_indices = @transform_5, window_bounds = array<i64: 4, 256>}, {transform_indices = @transform_6, window_bounds = array<i64: 1, 4, 256>}]} {
    %c0 = arith.constant 0 : index
    %c0_0 = arith.constant 0 : index
    %c0_1 = arith.constant 0 : index
    %0 = vector.load %arg1[%c0, %c0_0, %c0_1] : memref<1x4x128xbf16, #tpu.memory_space<vmem>>, vector<1x4x128xbf16>
    %1 = vector.shape_cast %0 : vector<1x4x128xbf16> to vector<4x128xbf16>
    %c0_2 = arith.constant 0 : index
    %c0_3 = arith.constant 0 : index
    %2 = vector.load %arg3[%c0_2, %c0_3] : memref<128x256xbf16, #tpu.memory_space<vmem>>, vector<128x256xbf16>
    %cst = arith.constant dense<0.000000e+00> : vector<4x256xf32>
    %3 = tpu.matmul %1, %2, %cst {dimension_numbers = #tpu.dot_dimension_numbers<[1], [0], [0], [1], [0, 0, 1, 1], [], []>} : vector<4x128xbf16>, vector<128x256xbf16>, vector<4x256xf32> -> vector<4x256xf32>
    %c0_4 = arith.constant 0 : index
    %c0_5 = arith.constant 0 : index
    %4 = vector.load %arg4[%c0_4, %c0_5] : memref<4x4xf32, #tpu.memory_space<vmem>>, vector<4x4xf32>
    %cst_6 = arith.constant dense<0.000000e+00> : vector<4x256xf32>
    %5 = tpu.matmul %4, %3, %cst_6 {dimension_numbers = #tpu.dot_dimension_numbers<[1], [0], [0], [1], [0, 0, 1, 1], [], []>} : vector<4x4xf32>, vector<4x256xf32>, vector<4x256xf32> -> vector<4x256xf32>
    %c0_7 = arith.constant 0 : index
    %c0_8 = arith.constant 0 : index
    %c0_9 = arith.constant 0 : index
    %6 = vector.load %arg2[%c0_7, %c0_8, %c0_9] : memref<1x4x8xf32, #tpu.memory_space<vmem>>, vector<1x4x8xf32>
    %7 = vector.shape_cast %6 : vector<1x4x8xf32> to vector<4x8xf32>
    %c0_10 = arith.constant 0 : index
    %c0_11 = arith.constant 0 : index
    %8 = vector.load %arg5[%c0_10, %c0_11] : memref<8x256xf32, #tpu.memory_space<vmem>>, vector<8x256xf32>
    %cst_12 = arith.constant dense<0.000000e+00> : vector<4x256xf32>
    %9 = tpu.matmul %7, %8, %cst_12 {dimension_numbers = #tpu.dot_dimension_numbers<[1], [0], [0], [1], [0, 0, 1, 1], [], []>} : vector<4x8xf32>, vector<8x256xf32>, vector<4x256xf32> -> vector<4x256xf32>
    %10 = arith.addf %5, %9 : vector<4x256xf32>
    %c0_13 = arith.constant 0 : index
    %c0_14 = arith.constant 0 : index
    %11 = vector.load %arg6[%c0_13, %c0_14] : memref<4x256xf32, #tpu.memory_space<vmem>>, vector<4x256xf32>
    %12 = arith.addf %10, %11 : vector<4x256xf32>
    %c0_15 = arith.constant 0 : index
    %c0_16 = arith.constant 0 : index
    %c0_17 = arith.constant 0 : index
    %13 = vector.load %arg7[%c0_15, %c0_16, %c0_17] : memref<1x4x256xf32, #tpu.memory_space<vmem>>, vector<1x4x256xf32>
    %14 = vector.shape_cast %13 : vector<1x4x256xf32> to vector<4x256xf32>
    %15 = vector.shape_cast %12 : vector<4x256xf32> to vector<1x4x256xf32>
    tpu.vector_store %arg7[%c0_15, %c0_16, %c0_17], %15 {strides = array<i32>} : memref<1x4x256xf32, #tpu.memory_space<vmem>>, vector<1x4x256xf32>,
    return
  }
  func.func @transform_0(%arg0: i32) -> (i32, i32, i32) {
    %c0_i32 = arith.constant 0 : i32
    %c0_i32_0 = arith.constant 0 : i32
    %c0_i32_1 = arith.constant 0 : i32
    return %arg0, %c0_i32, %c0_i32_0 : i32, i32, i32
  }
  func.func @transform_1(%arg0: i32) -> (i32, i32, i32) {
    %c0_i32 = arith.constant 0 : i32
    %c0_i32_0 = arith.constant 0 : i32
    %c0_i32_1 = arith.constant 0 : i32
    return %arg0, %c0_i32, %c0_i32_0 : i32, i32, i32
  }
  func.func @transform_2(%arg0: i32) -> (i32, i32) {
    %c0_i32 = arith.constant 0 : i32
    %c0_i32_0 = arith.constant 0 : i32
    %c0_i32_1 = arith.constant 0 : i32
    return %c0_i32, %c0_i32_0 : i32, i32
  }
  func.func @transform_3(%arg0: i32) -> (i32, i32) {
    %c0_i32 = arith.constant 0 : i32
    %c0_i32_0 = arith.constant 0 : i32
    %c0_i32_1 = arith.constant 0 : i32
    return %c0_i32, %c0_i32_0 : i32, i32
  }
  func.func @transform_4(%arg0: i32) -> (i32, i32) {
    %c0_i32 = arith.constant 0 : i32
    %c0_i32_0 = arith.constant 0 : i32
    %c0_i32_1 = arith.constant 0 : i32
    return %c0_i32, %c0_i32_0 : i32, i32
  }
  func.func @transform_5(%arg0: i32) -> (i32, i32) {
    %c0_i32 = arith.constant 0 : i32
    %c0_i32_0 = arith.constant 0 : i32
    %c0_i32_1 = arith.constant 0 : i32
    return %c0_i32, %c0_i32_0 : i32, i32
  }
  func.func @transform_6(%arg0: i32) -> (i32, i32, i32) {
    %c0_i32 = arith.constant 0 : i32
    %c0_i32_0 = arith.constant 0 : i32
    %c0_i32_1 = arith.constant 0 : i32
    return %arg0, %c0_i32, %c0_i32_0 : i32, i32, i32
  }
}

module attributes {stable_mosaic.version = 11 : i64} {
  func.func @_embed_kernel(%arg0: i32, %arg1: memref<1x16x128xbf16, #tpu.memory_space<vmem>>, %arg2: memref<1x16x32xf32, #tpu.memory_space<vmem>>, %arg3: memref<128x1024xbf16, #tpu.memory_space<vmem>>, %arg4: memref<16x16xf32, #tpu.memory_space<vmem>>, %arg5: memref<32x1024xf32, #tpu.memory_space<vmem>>, %arg6: memref<16x1024xf32, #tpu.memory_space<vmem>>, %arg7: memref<1x16x1024xf32, #tpu.memory_space<vmem>>) attributes {dimension_semantics = [#tpu.dimension_semantics<parallel>], iteration_bounds = array<i64: 1>, scalar_prefetch = 0 : i64, scratch_operands = 0 : i64, tpu.core_type = #tpu.core_type<tc>, window_params = [{transform_indices = @transform_0, window_bounds = array<i64: 1, 16, 128>}, {transform_indices = @transform_1, window_bounds = array<i64: 1, 16, 32>}, {pipeline_mode = #tpu.pipeline_mode<synchronous>, transform_indices = @transform_2, window_bounds = array<i64: 128, 1024>}, {pipeline_mode = #tpu.pipeline_mode<synchronous>, transform_indices = @transform_3, window_bounds = array<i64: 16, 16>}, {pipeline_mode = #tpu.pipeline_mode<synchronous>, transform_indices = @transform_4, window_bounds = array<i64: 32, 1024>}, {pipeline_mode = #tpu.pipeline_mode<synchronous>, transform_indices = @transform_5, window_bounds = array<i64: 16, 1024>}, {transform_indices = @transform_6, window_bounds = array<i64: 1, 16, 1024>}]} {
    %c0 = arith.constant 0 : index
    %c0_0 = arith.constant 0 : index
    %c0_1 = arith.constant 0 : index
    %0 = vector.load %arg1[%c0, %c0_0, %c0_1] : memref<1x16x128xbf16, #tpu.memory_space<vmem>>, vector<1x16x128xbf16>
    %1 = vector.shape_cast %0 : vector<1x16x128xbf16> to vector<16x128xbf16>
    %c0_2 = arith.constant 0 : index
    %c0_3 = arith.constant 0 : index
    %2 = vector.load %arg3[%c0_2, %c0_3] : memref<128x1024xbf16, #tpu.memory_space<vmem>>, vector<128x1024xbf16>
    %cst = arith.constant dense<0.000000e+00> : vector<16x1024xf32>
    %3 = tpu.matmul %1, %2, %cst {dimension_numbers = #tpu.dot_dimension_numbers<[1], [0], [0], [1], [0, 0, 1, 1], [], []>} : vector<16x128xbf16>, vector<128x1024xbf16>, vector<16x1024xf32> -> vector<16x1024xf32>
    %c0_4 = arith.constant 0 : index
    %c0_5 = arith.constant 0 : index
    %4 = vector.load %arg4[%c0_4, %c0_5] : memref<16x16xf32, #tpu.memory_space<vmem>>, vector<16x16xf32>
    %cst_6 = arith.constant dense<0.000000e+00> : vector<16x1024xf32>
    %5 = tpu.matmul %4, %3, %cst_6 {dimension_numbers = #tpu.dot_dimension_numbers<[1], [0], [0], [1], [0, 0, 1, 1], [], []>} : vector<16x16xf32>, vector<16x1024xf32>, vector<16x1024xf32> -> vector<16x1024xf32>
    %c0_7 = arith.constant 0 : index
    %c0_8 = arith.constant 0 : index
    %c0_9 = arith.constant 0 : index
    %6 = vector.load %arg2[%c0_7, %c0_8, %c0_9] : memref<1x16x32xf32, #tpu.memory_space<vmem>>, vector<1x16x32xf32>
    %7 = vector.shape_cast %6 : vector<1x16x32xf32> to vector<16x32xf32>
    %c0_10 = arith.constant 0 : index
    %c0_11 = arith.constant 0 : index
    %8 = vector.load %arg5[%c0_10, %c0_11] : memref<32x1024xf32, #tpu.memory_space<vmem>>, vector<32x1024xf32>
    %cst_12 = arith.constant dense<0.000000e+00> : vector<16x1024xf32>
    %9 = tpu.matmul %7, %8, %cst_12 {dimension_numbers = #tpu.dot_dimension_numbers<[1], [0], [0], [1], [0, 0, 1, 1], [], []>} : vector<16x32xf32>, vector<32x1024xf32>, vector<16x1024xf32> -> vector<16x1024xf32>
    %10 = arith.addf %5, %9 : vector<16x1024xf32>
    %c0_13 = arith.constant 0 : index
    %c0_14 = arith.constant 0 : index
    %11 = vector.load %arg6[%c0_13, %c0_14] : memref<16x1024xf32, #tpu.memory_space<vmem>>, vector<16x1024xf32>
    %12 = arith.addf %10, %11 : vector<16x1024xf32>
    %c0_15 = arith.constant 0 : index
    %c0_16 = arith.constant 0 : index
    %c0_17 = arith.constant 0 : index
    %13 = vector.load %arg7[%c0_15, %c0_16, %c0_17] : memref<1x16x1024xf32, #tpu.memory_space<vmem>>, vector<1x16x1024xf32>
    %14 = vector.shape_cast %13 : vector<1x16x1024xf32> to vector<16x1024xf32>
    %15 = vector.shape_cast %12 : vector<16x1024xf32> to vector<1x16x1024xf32>
    tpu.vector_store %arg7[%c0_15, %c0_16, %c0_17], %15 {strides = array<i32>} : memref<1x16x1024xf32, #tpu.memory_space<vmem>>, vector<1x16x1024xf32>,
    return
  }
  func.func @transform_0(%arg0: i32) -> (i32, i32, i32) {
    %c0_i32 = arith.constant 0 : i32
    %c0_i32_0 = arith.constant 0 : i32
    %c0_i32_1 = arith.constant 0 : i32
    return %arg0, %c0_i32, %c0_i32_0 : i32, i32, i32
  }
  func.func @transform_1(%arg0: i32) -> (i32, i32, i32) {
    %c0_i32 = arith.constant 0 : i32
    %c0_i32_0 = arith.constant 0 : i32
    %c0_i32_1 = arith.constant 0 : i32
    return %arg0, %c0_i32, %c0_i32_0 : i32, i32, i32
  }
  func.func @transform_2(%arg0: i32) -> (i32, i32) {
    %c0_i32 = arith.constant 0 : i32
    %c0_i32_0 = arith.constant 0 : i32
    %c0_i32_1 = arith.constant 0 : i32
    return %c0_i32, %c0_i32_0 : i32, i32
  }
  func.func @transform_3(%arg0: i32) -> (i32, i32) {
    %c0_i32 = arith.constant 0 : i32
    %c0_i32_0 = arith.constant 0 : i32
    %c0_i32_1 = arith.constant 0 : i32
    return %c0_i32, %c0_i32_0 : i32, i32
  }
  func.func @transform_4(%arg0: i32) -> (i32, i32) {
    %c0_i32 = arith.constant 0 : i32
    %c0_i32_0 = arith.constant 0 : i32
    %c0_i32_1 = arith.constant 0 : i32
    return %c0_i32, %c0_i32_0 : i32, i32
  }
  func.func @transform_5(%arg0: i32) -> (i32, i32) {
    %c0_i32 = arith.constant 0 : i32
    %c0_i32_0 = arith.constant 0 : i32
    %c0_i32_1 = arith.constant 0 : i32
    return %c0_i32, %c0_i32_0 : i32, i32
  }
  func.func @transform_6(%arg0: i32) -> (i32, i32, i32) {
    %c0_i32 = arith.constant 0 : i32
    %c0_i32_0 = arith.constant 0 : i32
    %c0_i32_1 = arith.constant 0 : i32
    return %arg0, %c0_i32, %c0_i32_0 : i32, i32, i32
  }
}

</mosaic_0001>

<llo_original>
// kernel: mul.151
$region0: #{mul.151}
  %s0 = inlined_call_operand.vmem [shape: f32[2,3,8], index: 0, kind: input, shape index: {}]
  %s1 = inlined_call_operand.vmem [shape: f32[6,8], index: 1, kind: output, shape index: {}]
  $region1: #{mul.151} parent=0
    #allocation0 [shape = 'u8[8192]{0}', space=vmem, size = 0x2000, scoped, tag = 'scoped mem for input reshape']
    %s3 = sshllo.u32 0, 4
    %s4 = scalar_lea.vmem %s0, 4
    %v5 = vld [vmem:[%s4] sm:%s3]
    %s6 = scalar_lea.vmem [#allocation0], 8
    %7 = vst [vmem:[%s6] sm:%s3] %v5
    %v8 = vld [vmem:[%s0] sm:%s3]
    %9 = vst [vmem:[#allocation0] sm:%s3] %v8
    %v10 = vld [vmem:[#allocation0] sm:$0x7]
    %vm11 = vcmask 64512
    %12 = vst.msk [vmem:[%s1] sm:$0x7] %vm11, %v10
    %s13 = scalar_lea.vmem [#allocation0], 8
    %v14 = vld [vmem:[%s13] sm:$0x7]
    %vm15 = vcmask 64512
    %s16 = scalar_lea.vmem %s1, 3
    %17 = vst.msk [vmem:[%s16] sm:$0x7] %vm15, %v14

// kernel: tile.19
$region0: #{tile.19}
  %s0 = inlined_call_operand.vmem [shape: f32[8,16,32], index: 0, kind: input, shape index: {}]
  %s1 = inlined_call_operand.vmem [shape: f32[8,512], index: 1, kind: output, shape index: {}]
  %v2 = vld [vmem:[%s0] ss:$4 sm:$0xff]
  %vm3 = vcmask 261120
  %4 = vst.msk [vmem:[%s1] ss:$8 sm:$0xf] %vm3, %v2
  %s5 = scalar_lea.vmem %s1, 4294967265
  %6 = vst.msk [vmem:[%s5] ss:$8 sm:$0xf0] %vm3, %v2
  %s7 = scalar_lea.vmem %s0, 32
  %v8 = vld [vmem:[%s7] ss:$4 sm:$0xff]
  %vm9 = vcmask 261120
  %s10 = scalar_lea.vmem %s1, 2
  %11 = vst.msk [vmem:[%s10] ss:$8 sm:$0xf] %vm9, %v8
  %s12 = scalar_lea.vmem %s1, 4294967267
  %13 = vst.msk [vmem:[%s12] ss:$8 sm:$0xf0] %vm9, %v8
  %s14 = scalar_lea.vmem %s0, 64
  %v15 = vld [vmem:[%s14] ss:$4 sm:$0xff]
  %vm16 = vcmask 261120
  %s17 = scalar_lea.vmem %s1, 4
  %18 = vst.msk [vmem:[%s17] ss:$8 sm:$0xf] %vm16, %v15
  %s19 = scalar_lea.vmem %s1, 4294967269
  %20 = vst.msk [vmem:[%s19] ss:$8 sm:$0xf0] %vm16, %v15
  %s21 = scalar_lea.vmem %s0, 96
  %v22 = vld [vmem:[%s21] ss:$4 sm:$0xff]
  %vm23 = vcmask 261120
  %s24 = scalar_lea.vmem %s1, 6
  %25 = vst.msk [vmem:[%s24] ss:$8 sm:$0xf] %vm23, %v22
  %s26 = scalar_lea.vmem %s1, 4294967271
  %27 = vst.msk [vmem:[%s26] ss:$8 sm:$0xf0] %vm23, %v22
  %s28 = scalar_lea.vmem %s0, 3
  %s29 = smov 3
  %v30 = vld [vmem:[%s28] ss:$16 sm:%s29]
  %s31 = scalar_lea.vmem %s0, 3
  %s32 = smov 12
  %v33 = vld [vmem:[%s31] ss:$16 sm:%s32]
  %vm34 = vcmask 1043458
  %v35 = vsel %vm34, %v33, %v30
  %s36 = scalar_lea.vmem %s0, 3
  %s37 = smov 48
  %v38 = vld [vmem:[%s36] ss:$16 sm:%s37]
  %vm39 = vcmask 1045508
  %v40 = vsel %vm39, %v38, %v35
  %s41 = scalar_lea.vmem %s0, 3
  %s42 = smov 192
  %v43 = vld [vmem:[%s41] ss:$16 sm:%s42]
  %vm44 = vcmask 1047558
  %v45 = vsel %vm44, %v43, %v40
  %46 = vrot.lane.b32.xlu0 %v45, 96
  %v47 = vpop.permute.xlu0 %46
  %vm48 = vcmask 1048320
  %49 = vst.msk [vmem:[%s1] sm:$0xff] %vm48, %v47
  %s50 = scalar_lea.vmem %s0, 7
  %s51 = smov 3
  %v52 = vld [vmem:[%s50] ss:$16 sm:%s51]
  %s53 = scalar_lea.vmem %s0, 7
  %s54 = smov 12
  %v55 = vld [vmem:[%s53] ss:$16 sm:%s54]
  %vm56 = vcmask 1043458
  %v57 = vsel %vm56, %v55, %v52
  %s58 = scalar_lea.vmem %s0, 7
  %s59 = smov 48
  %v60 = vld [vmem:[%s58] ss:$16 sm:%s59]
  %vm61 = vcmask 1045508
  %v62 = vsel %vm61, %v60, %v57
  %s63 = scalar_lea.vmem %s0, 7
  %s64 = smov 192
  %v65 = vld [vmem:[%s63] ss:$16 sm:%s64]
  %vm66 = vcmask 1047558
  %v67 = vsel %vm66, %v65, %v62
  %68 = vrot.lane.b32.xlu0 %v67, 96
  %v69 = vpop.permute.xlu0 %68
  %vm70 = vcmask 1048320
  %s71 = scalar_lea.vmem %s1, 8
  %72 = vst.msk [vmem:[%s71] sm:$0xff] %vm70, %v69
  %s73 = scalar_lea.vmem %s0, 11
  %s74 = smov 3
  %v75 = vld [vmem:[%s73] ss:$16 sm:%s74]
  %s76 = scalar_lea.vmem %s0, 11
  %s77 = smov 12
  %v78 = vld [vmem:[%s76] ss:$16 sm:%s77]
  %vm79 = vcmask 1043458
  %v80 = vsel %vm79, %v78, %v75
  %s81 = scalar_lea.vmem %s0, 11
  %s82 = smov 48
  %v83 = vld [vmem:[%s81] ss:$16 sm:%s82]
  %vm84 = vcmask 1045508
  %v85 = vsel %vm84, %v83, %v80
  %s86 = scalar_lea.vmem %s0, 11
  %s87 = smov 192
  %v88 = vld [vmem:[%s86] ss:$16 sm:%s87]
  %vm89 = vcmask 1047558
  %v90 = vsel %vm89, %v88, %v85
  %91 = vrot.lane.b32.xlu0 %v90, 96
  %v92 = vpop.permute.xlu0 %91
  %vm93 = vcmask 1048320
  %s94 = scalar_lea.vmem %s1, 16
  %95 = vst.msk [vmem:[%s94] sm:$0xff] %vm93, %v92
  %s96 = scalar_lea.vmem %s0, 15
  %s97 = smov 3
  %v98 = vld [vmem:[%s96] ss:$16 sm:%s97]
  %s99 = scalar_lea.vmem %s0, 15
  %s100 = smov 12
  %v101 = vld [vmem:[%s99] ss:$16 sm:%s100]
  %vm102 = vcmask 1043458
  %v103 = vsel %vm102, %v101, %v98
  %s104 = scalar_lea.vmem %s0, 15
  %s105 = smov 48
  %v106 = vld [vmem:[%s104] ss:$16 sm:%s105]
  %vm107 = vcmask 1045508
  %v108 = vsel %vm107, %v106, %v103
  %s109 = scalar_lea.vmem %s0, 15
  %s110 = smov 192
  %v111 = vld [vmem:[%s109] ss:$16 sm:%s110]
  %vm112 = vcmask 1047558
  %v113 = vsel %vm112, %v111, %v108
  %114 = vrot.lane.b32.xlu0 %v113, 96
  %v115 = vpop.permute.xlu0 %114
  %vm116 = vcmask 1048320
  %s117 = scalar_lea.vmem %s1, 24
  %118 = vst.msk [vmem:[%s117] sm:$0xff] %vm116, %v115
  %s119 = scalar_lea.vmem %s0, 2
  %s120 = smov 3
  %v121 = vld [vmem:[%s119] ss:$16 sm:%s120]
  %s122 = scalar_lea.vmem %s0, 2
  %s123 = smov 12
  %v124 = vld [vmem:[%s122] ss:$16 sm:%s123]
  %vm125 = vcmask 1043458
  %v126 = vsel %vm125, %v124, %v121
  %s127 = scalar_lea.vmem %s0, 2
  %s128 = smov 48
  %v129 = vld [vmem:[%s127] ss:$16 sm:%s128]
  %vm130 = vcmask 1045508
  %v131 = vsel %vm130, %v129, %v126
  %s132 = scalar_lea.vmem %s0, 2
  %s133 = smov 192
  %v134 = vld [vmem:[%s132] ss:$16 sm:%s133]
  %vm135 = vcmask 1047558
  %v136 = vsel %vm135, %v134, %v131
  %137 = vrot.lane.b32.xlu0 %v136, 64
  %v138 = vpop.permute.xlu0 %137
  %vm139 = vcmask 785920
  %140 = vst.msk [vmem:[%s1] sm:$0xff] %vm139, %v138
  %s141 = scalar_lea.vmem %s0, 6
  %s142 = smov 3
  %v143 = vld [vmem:[%s141] ss:$16 sm:%s142]
  %s144 = scalar_lea.vmem %s0, 6
  %s145 = smov 12
  %v146 = vld [vmem:[%s144] ss:$16 sm:%s145]
  %vm147 = vcmask 1043458
  %v148 = vsel %vm147, %v146, %v143
  %s149 = scalar_lea.vmem %s0, 6
  %s150 = smov 48
  %v151 = vld [vmem:[%s149] ss:$16 sm:%s150]
  %vm152 = vcmask 1045508
  %v153 = vsel %vm152, %v151, %v148
  %s154 = scalar_lea.vmem %s0, 6
  %s155 = smov 192
  %v156 = vld [vmem:[%s154] ss:$16 sm:%s155]
  %vm157 = vcmask 1047558
  %v158 = vsel %vm157, %v156, %v153
  %159 = vrot.lane.b32.xlu0 %v158, 64
  %v160 = vpop.permute.xlu0 %159
  %vm161 = vcmask 785920
  %s162 = scalar_lea.vmem %s1, 8
  %163 = vst.msk [vmem:[%s162] sm:$0xff] %vm161, %v160
  %s164 = scalar_lea.vmem %s0, 10
  %s165 = smov 3
  %v166 = vld [vmem:[%s164] ss:$16 sm:%s165]
  %s167 = scalar_lea.vmem %s0, 10
  %s168 = smov 12
  %v169 = vld [vmem:[%s167] ss:$16 sm:%s168]
  %vm170 = vcmask 1043458
  %v171 = vsel %vm170, %v169, %v166
  %s172 = scalar_lea.vmem %s0, 10
  %s173 = smov 48
  %v174 = vld [vmem:[%s172] ss:$16 sm:%s173]
  %vm175 = vcmask 1045508
  %v176 = vsel %vm175, %v174, %v171
  %s177 = scalar_lea.vmem %s0, 10
  %s178 = smov 192
  %v179 = vld [vmem:[%s177] ss:$16 sm:%s178]
  %vm180 = vcmask 1047558
  %v181 = vsel %vm180, %v179, %v176
  %182 = vrot.lane.b32.xlu0 %v181, 64
  %v183 = vpop.permute.xlu0 %182
  %vm184 = vcmask 785920
  %s185 = scalar_lea.vmem %s1, 16
  %186 = vst.msk [vmem:[%s185] sm:$0xff] %vm184, %v183
  %s187 = scalar_lea.vmem %s0, 14
  %s188 = smov 3
  %v189 = vld [vmem:[%s187] ss:$16 sm:%s188]
  %s190 = scalar_lea.vmem %s0, 14
  %s191 = smov 12
  %v192 = vld [vmem:[%s190] ss:$16 sm:%s191]
  %vm193 = vcmask 1043458
  %v194 = vsel %vm193, %v192, %v189
  %s195 = scalar_lea.vmem %s0, 14
  %s196 = smov 48
  %v197 = vld [vmem:[%s195] ss:$16 sm:%s196]
  %vm198 = vcmask 1045508
  %v199 = vsel %vm198, %v197, %v194
  %s200 = scalar_lea.vmem %s0, 14
  %s201 = smov 192
  %v202 = vld [vmem:[%s200] ss:$16 sm:%s201]
  %vm203 = vcmask 1047558
  %v204 = vsel %vm203, %v202, %v199
  %205 = vrot.lane.b32.xlu0 %v204, 64
  %v206 = vpop.permute.xlu0 %205
  %vm207 = vcmask 785920
  %s208 = scalar_lea.vmem %s1, 24
  %209 = vst.msk [vmem:[%s208] sm:$0xff] %vm207, %v206
  %s210 = scalar_lea.vmem %s0, 1
  %s211 = smov 3
  %v212 = vld [vmem:[%s210] ss:$16 sm:%s211]
  %s213 = scalar_lea.vmem %s0, 1
  %s214 = smov 12
  %v215 = vld [vmem:[%s213] ss:$16 sm:%s214]
  %vm216 = vcmask 1043458
  %v217 = vsel %vm216, %v215, %v212
  %s218 = scalar_lea.vmem %s0, 1
  %s219 = smov 48
  %v220 = vld [vmem:[%s218] ss:$16 sm:%s219]
  %vm221 = vcmask 1045508
  %v222 = vsel %vm221, %v220, %v217
  %s223 = scalar_lea.vmem %s0, 1
  %s224 = smov 192
  %v225 = vld [vmem:[%s223] ss:$16 sm:%s224]
  %vm226 = vcmask 1047558
  %v227 = vsel %vm226, %v225, %v222
  %228 = vrot.lane.b32.xlu0 %v227, 32
  %v229 = vpop.permute.xlu0 %228
  %vm230 = vcmask 523520
  %231 = vst.msk [vmem:[%s1] sm:$0xff] %vm230, %v229
  %s232 = scalar_lea.vmem %s0, 5
  %s233 = smov 3
  %v234 = vld [vmem:[%s232] ss:$16 sm:%s233]
  %s235 = scalar_lea.vmem %s0, 5
  %s236 = smov 12
  %v237 = vld [vmem:[%s235] ss:$16 sm:%s236]
  %vm238 = vcmask 1043458
  %v239 = vsel %vm238, %v237, %v234
  %s240 = scalar_lea.vmem %s0, 5
  %s241 = smov 48
  %v242 = vld [vmem:[%s240] ss:$16 sm:%s241]
  %vm243 = vcmask 1045508
  %v244 = vsel %vm243, %v242, %v239
  %s245 = scalar_lea.vmem %s0, 5
  %s246 = smov 192
  %v247 = vld [vmem:[%s245] ss:$16 sm:%s246]
  %vm248 = vcmask 1047558
  %v249 = vsel %vm248, %v247, %v244
  %250 = vrot.lane.b32.xlu0 %v249, 32
  %v251 = vpop.permute.xlu0 %250
  %vm252 = vcmask 523520
  %s253 = scalar_lea.vmem %s1, 8
  %254 = vst.msk [vmem:[%s253] sm:$0xff] %vm252, %v251
  %s255 = scalar_lea.vmem %s0, 9
  %s256 = smov 3
  %v257 = vld [vmem:[%s255] ss:$16 sm:%s256]
  %s258 = scalar_lea.vmem %s0, 9
  %s259 = smov 12
  %v260 = vld [vmem:[%s258] ss:$16 sm:%s259]
  %vm261 = vcmask 1043458
  %v262 = vsel %vm261, %v260, %v257
  %s263 = scalar_lea.vmem %s0, 9
  %s264 = smov 48
  %v265 = vld [vmem:[%s263] ss:$16 sm:%s264]
  %vm266 = vcmask 1045508
  %v267 = vsel %vm266, %v265, %v262
  %s268 = scalar_lea.vmem %s0, 9
  %s269 = smov 192
  %v270 = vld [vmem:[%s268] ss:$16 sm:%s269]
  %vm271 = vcmask 1047558
  %v272 = vsel %vm271, %v270, %v267
  %273 = vrot.lane.b32.xlu0 %v272, 32
  %v274 = vpop.permute.xlu0 %273
  %vm275 = vcmask 523520
  %s276 = scalar_lea.vmem %s1, 16
  %277 = vst.msk [vmem:[%s276] sm:$0xff] %vm275, %v274
  %s278 = scalar_lea.vmem %s0, 13
  %s279 = smov 3
  %v280 = vld [vmem:[%s278] ss:$16 sm:%s279]
  %s281 = scalar_lea.vmem %s0, 13
  %s282 = smov 12
  %v283 = vld [vmem:[%s281] ss:$16 sm:%s282]
  %vm284 = vcmask 1043458
  %v285 = vsel %vm284, %v283, %v280
  %s286 = scalar_lea.vmem %s0, 13
  %s287 = smov 48
  %v288 = vld [vmem:[%s286] ss:$16 sm:%s287]
  %vm289 = vcmask 1045508
  %v290 = vsel %vm289, %v288, %v285
  %s291 = scalar_lea.vmem %s0, 13
  %s292 = smov 192
  %v293 = vld [vmem:[%s291] ss:$16 sm:%s292]
  %vm294 = vcmask 1047558
  %v295 = vsel %vm294, %v293, %v290
  %296 = vrot.lane.b32.xlu0 %v295, 32
  %v297 = vpop.permute.xlu0 %296
  %vm298 = vcmask 523520
  %s299 = scalar_lea.vmem %s1, 24
  %300 = vst.msk [vmem:[%s299] sm:$0xff] %vm298, %v297

// kernel: mul.173
$region0: #{mul.173}
  %s0 = inlined_call_operand.vmem [shape: f32[2,3,4], index: 0, kind: input, shape index: {}]
  %s1 = inlined_call_operand.vmem [shape: f32[6,4], index: 1, kind: output, shape index: {}]
  $region1: #{mul.173} parent=0
    #allocation0 [shape = 'u8[4096]{0}', space=vmem, size = 0x1000, scoped, tag = 'scoped mem for output reshape']
    #allocation1 [shape = 'u8[16384]{0}', space=vmem, size = 0x4000, scoped, tag = 'scoped mem for input reshape']
    %s3 = sshllo.u32 0, 2
    %s4 = smul.addr 2, 3
    %s5 = scalar_lea.vmem %s0, %s4
    %v6 = vld [vmem:[%s5] sm:%s3]
    %s7 = scalar_lea.vmem [#allocation1], 24
    %8 = vst [vmem:[%s7] sm:%s3] %v6
    %s9 = smul.addr 2, 2
    %s10 = scalar_lea.vmem %s0, %s9
    %v11 = vld [vmem:[%s10] sm:%s3]
    %s12 = scalar_lea.vmem [#allocation1], 16
    %13 = vst [vmem:[%s12] sm:%s3] %v11
    %s14 = scalar_lea.vmem %s0, 2
    %v15 = vld [vmem:[%s14] sm:%s3]
    %s16 = scalar_lea.vmem [#allocation1], 8
    %17 = vst [vmem:[%s16] sm:%s3] %v15
    %v18 = vld [vmem:[%s0] sm:%s3]
    %19 = vst [vmem:[#allocation1] sm:%s3] %v18
    %v20 = vld [vmem:[#allocation1] ss:$8 sm:$0xf]
    %vm21 = vcmask 23552
    %22 = vst.msk [vmem:[#allocation0] sm:$0xf] %vm21, %v20
    %s23 = scalar_lea.vmem [#allocation1], 1
    %v24 = vld [vmem:[%s23] ss:$8 sm:$0xf]
    %25 = vrot.lane.b32.xlu0 %v24, 3
    %v26 = vpop.permute.xlu0 %25
    %vm27 = vcmask 48152
    %28 = vst.msk [vmem:[#allocation0] sm:$0xf] %vm27, %v26
    %s30 = sshllo.u32 0, 4
    %v32 = vld [vmem:[#allocation0] sm:%s30]
    %s33 = sshllo.u32 0, 4
    %34 = vst [vmem:[%s1] sm:%s33] %v32

// kernel: tmp_moment_embedding_forward.3
$region0: #{tmp_moment_embedding_forward.3}
  #allocation0 [shape = 'u32[]', space=smem, size = 0x4, offset = 0x4, fixed_abs, tag = 'smem constant byte address 0x4 - core index']
  #allocation1 [shape = 'u32[144,128]{1,0:T(1,128)}', space=vmem, size = 0x12000, scoped, tag = 'internal scratch']
  %s0 = inlined_call_operand.vmem [shape: bf16[1,8,128], index: 0, kind: input, shape index: {}]
  %s1 = inlined_call_operand.vmem [shape: f32[1,8,16], index: 1, kind: input, shape index: {}]
  %s2 = inlined_call_operand.vmem [shape: bf16[128,512], index: 2, kind: input, shape index: {}]
  %s3 = inlined_call_operand.vmem [shape: f32[8,8], index: 3, kind: input, shape index: {}]
  %s4 = inlined_call_operand.vmem [shape: f32[16,512], index: 4, kind: input, shape index: {}]
  %s5 = inlined_call_operand.vmem [shape: f32[8,512], index: 5, kind: input, shape index: {}]
  %s6 = inlined_call_operand.vmem [shape: f32[1,8,512], index: 6, kind: output, shape index: {}]
  %s7 = sld [smem:[#allocation0]]
  $region34: #{tmp_moment_embedding_forward.3} parent=0
    _
  %s9 = ssub.s32 1, %s7
  %s10 = scalar_select 0, %s9, %s7
  // Predicated region
  $region2: #{tmp_moment_embedding_forward.3} parent=0 // pred_check
    _
  $region3: #{tmp_moment_embedding_forward.3} parent=0 // pred_check_branch
    %12 = sbr.rel (0) target = $region5
  $region4: #{tmp_moment_embedding_forward.3} parent=0 // pred_region
    _
  $region5: #{tmp_moment_embedding_forward.3} parent=0 // pred_fallthru
    _
  // Predicated region
  $region6: #{tmp_moment_embedding_forward.3} parent=0 // pred_check
    _
  $region7: #{tmp_moment_embedding_forward.3} parent=0 // pred_check_branch
    %14 = sbr.rel (0) target = $region9
  $region8: #{tmp_moment_embedding_forward.3} parent=0 // pred_region
    _
  $region9: #{tmp_moment_embedding_forward.3} parent=0 // pred_fallthru
    _
  // Predicated region
  $region10: #{tmp_moment_embedding_forward.3} parent=0 // pred_check
    _
  $region11: #{tmp_moment_embedding_forward.3} parent=0 // pred_check_branch
    %16 = sbr.rel (0) target = $region13
  $region12: #{tmp_moment_embedding_forward.3} parent=0 // pred_region
    _
  $region13: #{tmp_moment_embedding_forward.3} parent=0 // pred_fallthru
    _
  // Predicated region
  $region14: #{tmp_moment_embedding_forward.3} parent=0 // pred_check
    _
  $region15: #{tmp_moment_embedding_forward.3} parent=0 // pred_check_branch
    %18 = sbr.rel (0) target = $region17
  $region16: #{tmp_moment_embedding_forward.3} parent=0 // pred_region
    _
  $region17: #{tmp_moment_embedding_forward.3} parent=0 // pred_fallthru
    _
  // Predicated region
  $region18: #{tmp_moment_embedding_forward.3} parent=0 // pred_check
    _
  $region19: #{tmp_moment_embedding_forward.3} parent=0 // pred_check_branch
    %20 = sbr.rel (0) target = $region21
  $region20: #{tmp_moment_embedding_forward.3} parent=0 // pred_region
    _
  $region21: #{tmp_moment_embedding_forward.3} parent=0 // pred_fallthru
    _
  // Predicated region
  $region22: #{tmp_moment_embedding_forward.3} parent=0 // pred_check
    _
  $region23: #{tmp_moment_embedding_forward.3} parent=0 // pred_check_branch
    %22 = sbr.rel (0) target = $region25
  $region24: #{tmp_moment_embedding_forward.3} parent=0 // pred_region
    _
  $region25: #{tmp_moment_embedding_forward.3} parent=0 // pred_fallthru
    _
  %v24 = vld [vmem:[%s0] sm:$0xf]
  %v25 = vld [vmem:[%s2] sm:$0xff]
  %v26 = vld [vmem:[%s2 + $0x8] sm:$0xff]
  %v27 = vld [vmem:[%s2 + $0x10] sm:$0xff]
  %v28 = vld [vmem:[%s2 + $0x18] sm:$0xff]
  %v29 = vld [vmem:[%s2 + $0x20] sm:$0xff]
  %v30 = vld [vmem:[%s2 + $0x28] sm:$0xff]
  %v31 = vld [vmem:[%s2 + $0x30] sm:$0xff]
  %v32 = vld [vmem:[%s2 + $0x38] sm:$0xff]
  %v33 = vld [vmem:[%s2 + $0x40] sm:$0xff]
  %v34 = vld [vmem:[%s2 + $0x48] sm:$0xff]
  %v35 = vld [vmem:[%s2 + $0x50] sm:$0xff]
  %v36 = vld [vmem:[%s2 + $0x58] sm:$0xff]
  %v37 = vld [vmem:[%s2 + $0x60] sm:$0xff]
  %v38 = vld [vmem:[%s2 + $0x68] sm:$0xff]
  %v39 = vld [vmem:[%s2 + $0x70] sm:$0xff]
  %v40 = vld [vmem:[%s2 + $0x78] sm:$0xff]
  %v41 = vld [vmem:[%s2 + $0x80] sm:$0xff]
  %v42 = vld [vmem:[%s2 + $0x88] sm:$0xff]
  %v43 = vld [vmem:[%s2 + $0x90] sm:$0xff]
  %v44 = vld [vmem:[%s2 + $0x98] sm:$0xff]
  %v45 = vld [vmem:[%s2 + $0xa0] sm:$0xff]
  %v46 = vld [vmem:[%s2 + $0xa8] sm:$0xff]
  %v47 = vld [vmem:[%s2 + $0xb0] sm:$0xff]
  %v48 = vld [vmem:[%s2 + $0xb8] sm:$0xff]
  %v49 = vld [vmem:[%s2 + $0xc0] sm:$0xff]
  %v50 = vld [vmem:[%s2 + $0xc8] sm:$0xff]
  %v51 = vld [vmem:[%s2 + $0xd0] sm:$0xff]
  %v52 = vld [vmem:[%s2 + $0xd8] sm:$0xff]
  %v53 = vld [vmem:[%s2 + $0xe0] sm:$0xff]
  %v54 = vld [vmem:[%s2 + $0xe8] sm:$0xff]
  %v55 = vld [vmem:[%s2 + $0xf0] sm:$0xff]
  %v56 = vld [vmem:[%s2 + $0xf8] sm:$0xff]
  %v89 = vunpack.c.l.b16 %v25
  %v90 = vunpack.c.h.b16 %v25
  %v91 = vunpack.c.l.b16 %v26
  %v92 = vunpack.c.h.b16 %v26
  %v93 = vunpack.c.l.b16 %v27
  %v94 = vunpack.c.h.b16 %v27
  %v95 = vunpack.c.l.b16 %v28
  %v96 = vunpack.c.h.b16 %v28
  %v97 = vunpack.c.l.b16 %v29
  %v98 = vunpack.c.h.b16 %v29
  %v99 = vunpack.c.l.b16 %v30
  %v100 = vunpack.c.h.b16 %v30
  %v101 = vunpack.c.l.b16 %v31
  %v102 = vunpack.c.h.b16 %v31
  %v103 = vunpack.c.l.b16 %v32
  %v104 = vunpack.c.h.b16 %v32
  %v105 = vunpack.c.l.b16 %v33
  %v106 = vunpack.c.h.b16 %v33
  %v107 = vunpack.c.l.b16 %v34
  %v108 = vunpack.c.h.b16 %v34
  %v109 = vunpack.c.l.b16 %v35
  %v110 = vunpack.c.h.b16 %v35
  %v111 = vunpack.c.l.b16 %v36
  %v112 = vunpack.c.h.b16 %v36
  %v113 = vunpack.c.l.b16 %v37
  %v114 = vunpack.c.h.b16 %v37
  %v115 = vunpack.c.l.b16 %v38
  %v116 = vunpack.c.h.b16 %v38
  %v117 = vunpack.c.l.b16 %v39
  %v118 = vunpack.c.h.b16 %v39
  %v119 = vunpack.c.l.b16 %v40
  %v120 = vunpack.c.h.b16 %v40
  %v121 = vunpack.c.l.b16 %v41
  %v122 = vunpack.c.h.b16 %v41
  %v123 = vunpack.c.l.b16 %v42
  %v124 = vunpack.c.h.b16 %v42
  %v125 = vunpack.c.l.b16 %v43
  %v126 = vunpack.c.h.b16 %v43
  %v127 = vunpack.c.l.b16 %v44
  %v128 = vunpack.c.h.b16 %v44
  %v129 = vunpack.c.l.b16 %v45
  %v130 = vunpack.c.h.b16 %v45
  %v131 = vunpack.c.l.b16 %v46
  %v132 = vunpack.c.h.b16 %v46
  %v133 = vunpack.c.l.b16 %v47
  %v134 = vunpack.c.h.b16 %v47
  %v135 = vunpack.c.l.b16 %v48
  %v136 = vunpack.c.h.b16 %v48
  %v137 = vunpack.c.l.b16 %v49
  %v138 = vunpack.c.h.b16 %v49
  %v139 = vunpack.c.l.b16 %v50
  %v140 = vunpack.c.h.b16 %v50
  %v141 = vunpack.c.l.b16 %v51
  %v142 = vunpack.c.h.b16 %v51
  %v143 = vunpack.c.l.b16 %v52
  %v144 = vunpack.c.h.b16 %v52
  %v145 = vunpack.c.l.b16 %v53
  %v146 = vunpack.c.h.b16 %v53
  %v147 = vunpack.c.l.b16 %v54
  %v148 = vunpack.c.h.b16 %v54
  %v149 = vunpack.c.l.b16 %v55
  %v150 = vunpack.c.h.b16 %v55
  %v151 = vunpack.c.l.b16 %v56
  %v152 = vunpack.c.h.b16 %v56
  %v153 = vpack.c.b16 %v93, %v89
  %v154 = vpack.c.b16 %v94, %v90
  %v155 = vpack.c.b16 %v95, %v91
  %v156 = vpack.c.b16 %v96, %v92
  %v157 = vpack.c.b16 %v101, %v97
  %v158 = vpack.c.b16 %v102, %v98
  %v159 = vpack.c.b16 %v103, %v99
  %v160 = vpack.c.b16 %v104, %v100
  %v161 = vpack.c.b16 %v109, %v105
  %v162 = vpack.c.b16 %v110, %v106
  %v163 = vpack.c.b16 %v111, %v107
  %v164 = vpack.c.b16 %v112, %v108
  %v165 = vpack.c.b16 %v117, %v113
  %v166 = vpack.c.b16 %v118, %v114
  %v167 = vpack.c.b16 %v119, %v115
  %v168 = vpack.c.b16 %v120, %v116
  %v169 = vpack.c.b16 %v125, %v121
  %v170 = vpack.c.b16 %v126, %v122
  %v171 = vpack.c.b16 %v127, %v123
  %v172 = vpack.c.b16 %v128, %v124
  %v173 = vpack.c.b16 %v133, %v129
  %v174 = vpack.c.b16 %v134, %v130
  %v175 = vpack.c.b16 %v135, %v131
  %v176 = vpack.c.b16 %v136, %v132
  %v177 = vpack.c.b16 %v141, %v137
  %v178 = vpack.c.b16 %v142, %v138
  %v179 = vpack.c.b16 %v143, %v139
  %v180 = vpack.c.b16 %v144, %v140
  %v181 = vpack.c.b16 %v149, %v145
  %v182 = vpack.c.b16 %v150, %v146
  %v183 = vpack.c.b16 %v151, %v147
  %v184 = vpack.c.b16 %v152, %v148
  %217 = vmatprep.subr.bf16.mxu0 %v154
  %218 = vmatpush1.bf16.msra.mxu0 %v153
  %219 = vmatprep.subr.bf16.mxu0 %v158
  %220 = vmatpush1.bf16.msra.mxu0 %v157
  %221 = vmatprep.subr.bf16.mxu0 %v162
  %222 = vmatpush1.bf16.msra.mxu0 %v161
  %223 = vmatprep.subr.bf16.mxu0 %v166
  %224 = vmatpush1.bf16.msra.mxu0 %v165
  %225 = vmatprep.subr.bf16.mxu0 %v170
  %226 = vmatpush1.bf16.msra.mxu0 %v169
  %227 = vmatprep.subr.bf16.mxu0 %v174
  %228 = vmatpush1.bf16.msra.mxu0 %v173
  %229 = vmatprep.subr.bf16.mxu0 %v178
  %230 = vmatpush1.bf16.msra.mxu0 %v177
  %231 = vmatprep.subr.bf16.mxu0 %v182
  %232 = vmatpush1.bf16.msra.mxu0 %v181
  %233 = vmatprep.subr.bf16.mxu0 0
  %234 = vmatpush1.bf16.msra.mxu0 0
  %235 = vmatprep.subr.bf16.mxu0 0
  %236 = vmatpush1.bf16.msra.mxu0 0
  %237 = vmatprep.subr.bf16.mxu0 0
  %238 = vmatpush1.bf16.msra.mxu0 0
  %239 = vmatprep.subr.bf16.mxu0 0
  %240 = vmatpush1.bf16.msra.mxu0 0
  %241 = vmatprep.subr.bf16.mxu0 0
  %242 = vmatpush1.bf16.msra.mxu0 0
  %243 = vmatprep.subr.bf16.mxu0 0
  %244 = vmatpush1.bf16.msra.mxu0 0
  %245 = vmatprep.subr.bf16.mxu0 0
  %246 = vmatpush1.bf16.msra.mxu0 0
  %247 = vmatprep.subr.bf16.mxu0 0
  %248 = vmatpush1.bf16.msra.mxu0 0
  %249 = vmatprep.mubr.bf16.mxu0 0
  %250 = vmatmul.mubr.bf16.gmra.mrb[0].mxu0 %v24
  %v251 = vpop.f32.mrb[0].mxu0
  %v252 = vadd.f32 0.0, %v251
  %v253 = vpop.f32.mrb[0].mxu0
  %v254 = vadd.f32 0.0, %v253
  %v255 = vpop.f32.mrb[0].mxu0
  %v256 = vpop.f32.mrb[0].mxu0
  %257 = vdwg.mxu0
  %258 = vmatprep.subr.bf16.mxu0 %v156
  %259 = vmatpush1.bf16.msra.mxu0 %v155
  %260 = vmatprep.subr.bf16.mxu0 %v160
  %261 = vmatpush1.bf16.msra.mxu0 %v159
  %262 = vmatprep.subr.bf16.mxu0 %v164
  %263 = vmatpush1.bf16.msra.mxu0 %v163
  %264 = vmatprep.subr.bf16.mxu0 %v168
  %265 = vmatpush1.bf16.msra.mxu0 %v167
  %266 = vmatprep.subr.bf16.mxu0 %v172
  %267 = vmatpush1.bf16.msra.mxu0 %v171
  %268 = vmatprep.subr.bf16.mxu0 %v176
  %269 = vmatpush1.bf16.msra.mxu0 %v175
  %270 = vmatprep.subr.bf16.mxu0 %v180
  %271 = vmatpush1.bf16.msra.mxu0 %v179
  %272 = vmatprep.subr.bf16.mxu0 %v184
  %273 = vmatpush1.bf16.msra.mxu0 %v183
  %274 = vmatprep.subr.bf16.mxu0 0
  %275 = vmatpush1.bf16.msra.mxu0 0
  %276 = vmatprep.subr.bf16.mxu0 0
  %277 = vmatpush1.bf16.msra.mxu0 0
  %278 = vmatprep.subr.bf16.mxu0 0
  %279 = vmatpush1.bf16.msra.mxu0 0
  %280 = vmatprep.subr.bf16.mxu0 0
  %281 = vmatpush1.bf16.msra.mxu0 0
  %282 = vmatprep.subr.bf16.mxu0 0
  %283 = vmatpush1.bf16.msra.mxu0 0
  %284 = vmatprep.subr.bf16.mxu0 0
  %285 = vmatpush1.bf16.msra.mxu0 0
  %286 = vmatprep.subr.bf16.mxu0 0
  %287 = vmatpush1.bf16.msra.mxu0 0
  %288 = vmatprep.subr.bf16.mxu0 0
  %289 = vmatpush1.bf16.msra.mxu0 0
  %290 = vmatprep.mubr.bf16.mxu0 0
  %291 = vmatmul.mubr.bf16.gmra.mrb[0].mxu0 %v24
  %v292 = vpop.f32.mrb[0].mxu0
  %v293 = vadd.f32 0.0, %v292
  %v294 = vpop.f32.mrb[0].mxu0
  %v295 = vadd.f32 0.0, %v294
  %v296 = vpop.f32.mrb[0].mxu0
  %v297 = vpop.f32.mrb[0].mxu0
  %298 = vdwg.mxu0
  %v299 = vld [vmem:[%s3] sm:$0xff]
  %v300 = vld [vmem:[%s1] sm:$0xff]
  %v301 = vld [vmem:[%s4] sm:$0xff]
  %v302 = vld [vmem:[%s4 + $0x8] sm:$0xff]
  %v303 = vld [vmem:[%s4 + $0x10] sm:$0xff]
  %v304 = vld [vmem:[%s4 + $0x18] sm:$0xff]
  %v305 = vld [vmem:[%s4 + $0x20] sm:$0xff]
  %v306 = vld [vmem:[%s4 + $0x28] sm:$0xff]
  %v307 = vld [vmem:[%s4 + $0x30] sm:$0xff]
  %v308 = vld [vmem:[%s4 + $0x38] sm:$0xff]
  %vm309 = vcmask 130048
  %v311 = vsel %vm309, %v300, 0
  %313 = vmatprep.subr.mxu0 %v302
  %314 = vmatpush1.msra.mxu0 %v301
  %315 = vmatprep.subr.mxu0 %v306
  %316 = vmatpush1.msra.mxu0 %v305
  %317 = vmatprep.subr.mxu0 0.0
  %318 = vmatpush1.msra.mxu0 0.0
  %319 = vmatprep.subr.mxu0 0.0
  %320 = vmatpush1.msra.mxu0 0.0
  %321 = vmatprep.subr.mxu0 0.0
  %322 = vmatpush1.msra.mxu0 0.0
  %323 = vmatprep.subr.mxu0 0.0
  %324 = vmatpush1.msra.mxu0 0.0
  %325 = vmatprep.subr.mxu0 0.0
  %326 = vmatpush1.msra.mxu0 0.0
  %327 = vmatprep.subr.mxu0 0.0
  %328 = vmatpush1.msra.mxu0 0.0
  %329 = vmatprep.subr.mxu0 0.0
  %330 = vmatpush1.msra.mxu0 0.0
  %331 = vmatprep.subr.mxu0 0.0
  %332 = vmatpush1.msra.mxu0 0.0
  %333 = vmatprep.subr.mxu0 0.0
  %334 = vmatpush1.msra.mxu0 0.0
  %335 = vmatprep.subr.mxu0 0.0
  %336 = vmatpush1.msra.mxu0 0.0
  %337 = vmatprep.subr.mxu0 0.0
  %338 = vmatpush1.msra.mxu0 0.0
  %339 = vmatprep.subr.mxu0 0.0
  %340 = vmatpush1.msra.mxu0 0.0
  %341 = vmatprep.subr.mxu0 0.0
  %342 = vmatpush1.msra.mxu0 0.0
  %343 = vmatprep.subr.mxu0 0.0
  %344 = vmatpush1.msra.mxu0 0.0
  %345 = vmatprep.subr.mxu0 0.0
  %346 = vmatpush1.msra.mxu0 0.0
  %347 = vmatprep.subr.mxu0 0.0
  %348 = vmatpush1.msra.mxu0 0.0
  %349 = vmatprep.subr.mxu0 0.0
  %350 = vmatpush1.msra.mxu0 0.0
  %351 = vmatprep.subr.mxu0 0.0
  %352 = vmatpush1.msra.mxu0 0.0
  %353 = vmatprep.subr.mxu0 0.0
  %354 = vmatpush1.msra.mxu0 0.0
  %355 = vmatprep.subr.mxu0 0.0
  %356 = vmatpush1.msra.mxu0 0.0
  %357 = vmatprep.subr.mxu0 0.0
  %358 = vmatpush1.msra.mxu0 0.0
  %359 = vmatprep.subr.mxu0 0.0
  %360 = vmatpush1.msra.mxu0 0.0
  %361 = vmatprep.subr.mxu0 0.0
  %362 = vmatpush1.msra.mxu0 0.0
  %363 = vmatprep.subr.mxu0 0.0
  %364 = vmatpush1.msra.mxu0 0.0
  %365 = vmatprep.subr.mxu0 0.0
  %366 = vmatpush1.msra.mxu0 0.0
  %367 = vmatprep.subr.mxu0 0.0
  %368 = vmatpush1.msra.mxu0 0.0
  %369 = vmatprep.subr.mxu0 0.0
  %370 = vmatpush1.msra.mxu0 0.0
  %371 = vmatprep.subr.mxu0 0.0
  %372 = vmatpush1.msra.mxu0 0.0
  %373 = vmatprep.subr.mxu0 0.0
  %374 = vmatpush1.msra.mxu0 0.0
  %375 = vmatprep.subr.mxu0 0.0
  %376 = vmatpush1.msra.mxu0 0.0
  %377 = vmatprep.mubr.f32.mxu0 0.0
  %378 = vmatmul.mubr.f32.gmra.mrb[0].mxu0 %v311
  %v379 = vpop.f32.mrb[0].mxu0
  %v380 = vadd.f32 0.0, %v379
  %v381 = vpop.f32.mrb[0].mxu0
  %v382 = vadd.f32 0.0, %v381
  %383 = vdwg.mxu0
  %384 = vmatprep.subr.mxu0 %v304
  %385 = vmatpush1.msra.mxu0 %v303
  %386 = vmatprep.subr.mxu0 %v308
  %387 = vmatpush1.msra.mxu0 %v307
  %388 = vmatprep.subr.mxu0 0.0
  %389 = vmatpush1.msra.mxu0 0.0
  %390 = vmatprep.subr.mxu0 0.0
  %391 = vmatpush1.msra.mxu0 0.0
  %392 = vmatprep.subr.mxu0 0.0
  %393 = vmatpush1.msra.mxu0 0.0
  %394 = vmatprep.subr.mxu0 0.0
  %395 = vmatpush1.msra.mxu0 0.0
  %396 = vmatprep.subr.mxu0 0.0
  %397 = vmatpush1.msra.mxu0 0.0
  %398 = vmatprep.subr.mxu0 0.0
  %399 = vmatpush1.msra.mxu0 0.0
  %400 = vmatprep.subr.mxu0 0.0
  %401 = vmatpush1.msra.mxu0 0.0
  %402 = vmatprep.subr.mxu0 0.0
  %403 = vmatpush1.msra.mxu0 0.0
  %404 = vmatprep.subr.mxu0 0.0
  %405 = vmatpush1.msra.mxu0 0.0
  %406 = vmatprep.subr.mxu0 0.0
  %407 = vmatpush1.msra.mxu0 0.0
  %408 = vmatprep.subr.mxu0 0.0
  %409 = vmatpush1.msra.mxu0 0.0
  %410 = vmatprep.subr.mxu0 0.0
  %411 = vmatpush1.msra.mxu0 0.0
  %412 = vmatprep.subr.mxu0 0.0
  %413 = vmatpush1.msra.mxu0 0.0
  %414 = vmatprep.subr.mxu0 0.0
  %415 = vmatpush1.msra.mxu0 0.0
  %416 = vmatprep.subr.mxu0 0.0
  %417 = vmatpush1.msra.mxu0 0.0
  %418 = vmatprep.subr.mxu0 0.0
  %419 = vmatpush1.msra.mxu0 0.0
  %420 = vmatprep.subr.mxu0 0.0
  %421 = vmatpush1.msra.mxu0 0.0
  %422 = vmatprep.subr.mxu0 0.0
  %423 = vmatpush1.msra.mxu0 0.0
  %424 = vmatprep.subr.mxu0 0.0
  %425 = vmatpush1.msra.mxu0 0.0
  %426 = vmatprep.subr.mxu0 0.0
  %427 = vmatpush1.msra.mxu0 0.0
  %428 = vmatprep.subr.mxu0 0.0
  %429 = vmatpush1.msra.mxu0 0.0
  %430 = vmatprep.subr.mxu0 0.0
  %431 = vmatpush1.msra.mxu0 0.0
  %432 = vmatprep.subr.mxu0 0.0
  %433 = vmatpush1.msra.mxu0 0.0
  %434 = vmatprep.subr.mxu0 0.0
  %435 = vmatpush1.msra.mxu0 0.0
  %436 = vmatprep.subr.mxu0 0.0
  %437 = vmatpush1.msra.mxu0 0.0
  %438 = vmatprep.subr.mxu0 0.0
  %439 = vmatpush1.msra.mxu0 0.0
  %440 = vmatprep.subr.mxu0 0.0
  %441 = vmatpush1.msra.mxu0 0.0
  %442 = vmatprep.subr.mxu0 0.0
  %443 = vmatpush1.msra.mxu0 0.0
  %444 = vmatprep.subr.mxu0 0.0
  %445 = vmatpush1.msra.mxu0 0.0
  %446 = vmatprep.subr.mxu0 0.0
  %447 = vmatpush1.msra.mxu0 0.0
  %448 = vmatprep.mubr.f32.mxu0 0.0
  %449 = vmatmul.mubr.f32.gmra.mrb[0].mxu0 %v311
  %v450 = vpop.f32.mrb[0].mxu0
  %v451 = vadd.f32 0.0, %v450
  %v452 = vpop.f32.mrb[0].mxu0
  %v453 = vadd.f32 0.0, %v452
  %454 = vdwg.mxu0
  %vm455 = vcmask 64512
  %v457 = vsel %vm455, %v299, 0
  %459 = vmatprep.subr.mxu0 %v254
  %460 = vmatpush1.msra.mxu0 %v252
  %461 = vmatprep.subr.mxu0 0.0
  %462 = vmatpush1.msra.mxu0 0.0
  %463 = vmatprep.subr.mxu0 0.0
  %464 = vmatpush1.msra.mxu0 0.0
  %465 = vmatprep.subr.mxu0 0.0
  %466 = vmatpush1.msra.mxu0 0.0
  %467 = vmatprep.subr.mxu0 0.0
  %468 = vmatpush1.msra.mxu0 0.0
  %469 = vmatprep.subr.mxu0 0.0
  %470 = vmatpush1.msra.mxu0 0.0
  %471 = vmatprep.subr.mxu0 0.0
  %472 = vmatpush1.msra.mxu0 0.0
  %473 = vmatprep.subr.mxu0 0.0
  %474 = vmatpush1.msra.mxu0 0.0
  %475 = vmatprep.subr.mxu0 0.0
  %476 = vmatpush1.msra.mxu0 0.0
  %477 = vmatprep.subr.mxu0 0.0
  %478 = vmatpush1.msra.mxu0 0.0
  %479 = vmatprep.subr.mxu0 0.0
  %480 = vmatpush1.msra.mxu0 0.0
  %481 = vmatprep.subr.mxu0 0.0
  %482 = vmatpush1.msra.mxu0 0.0
  %483 = vmatprep.subr.mxu0 0.0
  %484 = vmatpush1.msra.mxu0 0.0
  %485 = vmatprep.subr.mxu0 0.0
  %486 = vmatpush1.msra.mxu0 0.0
  %487 = vmatprep.subr.mxu0 0.0
  %488 = vmatpush1.msra.mxu0 0.0
  %489 = vmatprep.subr.mxu0 0.0
  %490 = vmatpush1.msra.mxu0 0.0
  %491 = vmatprep.subr.mxu0 0.0
  %492 = vmatpush1.msra.mxu0 0.0
  %493 = vmatprep.subr.mxu0 0.0
  %494 = vmatpush1.msra.mxu0 0.0
  %495 = vmatprep.subr.mxu0 0.0
  %496 = vmatpush1.msra.mxu0 0.0
  %497 = vmatprep.subr.mxu0 0.0
  %498 = vmatpush1.msra.mxu0 0.0
  %499 = vmatprep.subr.mxu0 0.0
  %500 = vmatpush1.msra.mxu0 0.0
  %501 = vmatprep.subr.mxu0 0.0
  %502 = vmatpush1.msra.mxu0 0.0
  %503 = vmatprep.subr.mxu0 0.0
  %504 = vmatpush1.msra.mxu0 0.0
  %505 = vmatprep.subr.mxu0 0.0
  %506 = vmatpush1.msra.mxu0 0.0
  %507 = vmatprep.subr.mxu0 0.0
  %508 = vmatpush1.msra.mxu0 0.0
  %509 = vmatprep.subr.mxu0 0.0
  %510 = vmatpush1.msra.mxu0 0.0
  %511 = vmatprep.subr.mxu0 0.0
  %512 = vmatpush1.msra.mxu0 0.0
  %513 = vmatprep.subr.mxu0 0.0
  %514 = vmatpush1.msra.mxu0 0.0
  %515 = vmatprep.subr.mxu0 0.0
  %516 = vmatpush1.msra.mxu0 0.0
  %517 = vmatprep.subr.mxu0 0.0
  %518 = vmatpush1.msra.mxu0 0.0
  %519 = vmatprep.subr.mxu0 0.0
  %520 = vmatpush1.msra.mxu0 0.0
  %521 = vmatprep.subr.mxu0 0.0
  %522 = vmatpush1.msra.mxu0 0.0
  %523 = vmatprep.mubr.f32.mxu0 0.0
  %524 = vmatmul.mubr.f32.gmra.mrb[0].mxu0 %v457
  %v525 = vpop.f32.mrb[0].mxu0
  %v526 = vadd.f32 %v380, %v525
  %v527 = vpop.f32.mrb[0].mxu0
  %v528 = vadd.f32 %v382, %v527
  %529 = vdwg.mxu0
  %530 = vmatprep.subr.mxu0 %v295
  %531 = vmatpush1.msra.mxu0 %v293
  %532 = vmatprep.subr.mxu0 0.0
  %533 = vmatpush1.msra.mxu0 0.0
  %534 = vmatprep.subr.mxu0 0.0
  %535 = vmatpush1.msra.mxu0 0.0
  %536 = vmatprep.subr.mxu0 0.0
  %537 = vmatpush1.msra.mxu0 0.0
  %538 = vmatprep.subr.mxu0 0.0
  %539 = vmatpush1.msra.mxu0 0.0
  %540 = vmatprep.subr.mxu0 0.0
  %541 = vmatpush1.msra.mxu0 0.0
  %542 = vmatprep.subr.mxu0 0.0
  %543 = vmatpush1.msra.mxu0 0.0
  %544 = vmatprep.subr.mxu0 0.0
  %545 = vmatpush1.msra.mxu0 0.0
  %546 = vmatprep.subr.mxu0 0.0
  %547 = vmatpush1.msra.mxu0 0.0
  %548 = vmatprep.subr.mxu0 0.0
  %549 = vmatpush1.msra.mxu0 0.0
  %550 = vmatprep.subr.mxu0 0.0
  %551 = vmatpush1.msra.mxu0 0.0
  %552 = vmatprep.subr.mxu0 0.0
  %553 = vmatpush1.msra.mxu0 0.0
  %554 = vmatprep.subr.mxu0 0.0
  %555 = vmatpush1.msra.mxu0 0.0
  %556 = vmatprep.subr.mxu0 0.0
  %557 = vmatpush1.msra.mxu0 0.0
  %558 = vmatprep.subr.mxu0 0.0
  %559 = vmatpush1.msra.mxu0 0.0
  %560 = vmatprep.subr.mxu0 0.0
  %561 = vmatpush1.msra.mxu0 0.0
  %562 = vmatprep.subr.mxu0 0.0
  %563 = vmatpush1.msra.mxu0 0.0
  %564 = vmatprep.subr.mxu0 0.0
  %565 = vmatpush1.msra.mxu0 0.0
  %566 = vmatprep.subr.mxu0 0.0
  %567 = vmatpush1.msra.mxu0 0.0
  %568 = vmatprep.subr.mxu0 0.0
  %569 = vmatpush1.msra.mxu0 0.0
  %570 = vmatprep.subr.mxu0 0.0
  %571 = vmatpush1.msra.mxu0 0.0
  %572 = vmatprep.subr.mxu0 0.0
  %573 = vmatpush1.msra.mxu0 0.0
  %574 = vmatprep.subr.mxu0 0.0
  %575 = vmatpush1.msra.mxu0 0.0
  %576 = vmatprep.subr.mxu0 0.0
  %577 = vmatpush1.msra.mxu0 0.0
  %578 = vmatprep.subr.mxu0 0.0
  %579 = vmatpush1.msra.mxu0 0.0
  %580 = vmatprep.subr.mxu0 0.0
  %581 = vmatpush1.msra.mxu0 0.0
  %582 = vmatprep.subr.mxu0 0.0
  %583 = vmatpush1.msra.mxu0 0.0
  %584 = vmatprep.subr.mxu0 0.0
  %585 = vmatpush1.msra.mxu0 0.0
  %586 = vmatprep.subr.mxu0 0.0
  %587 = vmatpush1.msra.mxu0 0.0
  %588 = vmatprep.subr.mxu0 0.0
  %589 = vmatpush1.msra.mxu0 0.0
  %590 = vmatprep.subr.mxu0 0.0
  %591 = vmatpush1.msra.mxu0 0.0
  %592 = vmatprep.subr.mxu0 0.0
  %593 = vmatpush1.msra.mxu0 0.0
  %594 = vmatprep.mubr.f32.mxu0 0.0
  %595 = vmatmul.mubr.f32.gmra.mrb[0].mxu0 %v457
  %v596 = vpop.f32.mrb[0].mxu0
  %v597 = vadd.f32 %v451, %v596
  %v598 = vpop.f32.mrb[0].mxu0
  %v599 = vadd.f32 %v453, %v598
  %600 = vdwg.mxu0
  %v601 = vld [vmem:[%s5] sm:$0xff]
  %v602 = vld [vmem:[%s5 + $0x8] sm:$0xff]
  %v603 = vld [vmem:[%s5 + $0x10] sm:$0xff]
  %v604 = vld [vmem:[%s5 + $0x18] sm:$0xff]
  %v605 = vadd.f32 %v526, %v601
  %v606 = vadd.f32 %v528, %v602
  %v607 = vadd.f32 %v597, %v603
  %v608 = vadd.f32 %v599, %v604
  %609 = vst [vmem:[%s6] sm:$0xff] %v605
  %610 = vst [vmem:[%s6 + $0x8] sm:$0xff] %v606
  %611 = vst [vmem:[%s6 + $0x10] sm:$0xff] %v607
  %612 = vst [vmem:[%s6 + $0x18] sm:$0xff] %v608
  // Predicated region
  $region26: #{tmp_moment_embedding_forward.3} parent=0 // pred_check
    _
  $region27: #{tmp_moment_embedding_forward.3} parent=0 // pred_check_branch
    %614 = sbr.rel (0) target = $region29
  $region28: #{tmp_moment_embedding_forward.3} parent=0 // pred_region
    _
  $region29: #{tmp_moment_embedding_forward.3} parent=0 // pred_fallthru
    _
  // Predicated region
  $region30: #{tmp_moment_embedding_forward.3} parent=0 // pred_check
    _
  $region31: #{tmp_moment_embedding_forward.3} parent=0 // pred_check_branch
    %616 = sbr.rel (0) target = $region33
  $region32: #{tmp_moment_embedding_forward.3} parent=0 // pred_region
    _
  $region33: #{tmp_moment_embedding_forward.3} parent=0 // pred_fallthru
    _

// kernel: tile.24
$region0: #{tile.24}
  %s0 = inlined_call_operand.vmem [shape: f32[4,8,32], index: 0, kind: input, shape index: {}]
  %s1 = inlined_call_operand.vmem [shape: f32[4,256], index: 1, kind: output, shape index: {}]
  $region1: #{tile.24} parent=0
    #allocation0 [shape = 'u8[8192]{0}', space=vmem, size = 0x2000, scoped, tag = 'scoped mem for output reshape']
    %v2 = vld [vmem:[%s0] ss:$4 sm:$0xff]
    %vm3 = vcmask 261120
    %4 = vst.msk [vmem:[#allocation0] ss:$8 sm:$0x3] %vm3, %v2
    %s5 = scalar_lea.vmem [#allocation0], 4294967281
    %6 = vst.msk [vmem:[%s5] ss:$8 sm:$0xc] %vm3, %v2
    %s7 = scalar_lea.vmem [#allocation0], 4294967266
    %8 = vst.msk [vmem:[%s7] ss:$8 sm:$0x30] %vm3, %v2
    %s9 = scalar_lea.vmem [#allocation0], 4294967251
    %10 = vst.msk [vmem:[%s9] ss:$8 sm:$0xc0] %vm3, %v2
    %s11 = scalar_lea.vmem %s0, 3
    %v12 = vld [vmem:[%s11] ss:$8 sm:$0xf]
    %s13 = scalar_lea.vmem %s0, 4294967271
    %v14 = vld [vmem:[%s13] ss:$8 sm:$0xf0]
    %vm15 = vcmask 1047556
    %v16 = vsel %vm15, %v14, %v12
    %17 = vrot.lane.b32.xlu0 %v16, 96
    %v18 = vpop.permute.xlu0 %17
    %vm19 = vcmask 1048320
    %20 = vst.msk [vmem:[#allocation0] sm:$0xf] %vm19, %v18
    %s21 = scalar_lea.vmem [#allocation0], 4
    %22 = vst.msk [vmem:[%s21] sm:$0xf0] %vm19, %v18
    %s23 = scalar_lea.vmem %s0, 2
    %v24 = vld [vmem:[%s23] ss:$8 sm:$0xf]
    %s25 = scalar_lea.vmem %s0, 4294967270
    %v26 = vld [vmem:[%s25] ss:$8 sm:$0xf0]
    %vm27 = vcmask 1047556
    %v28 = vsel %vm27, %v26, %v24
    %29 = vrot.lane.b32.xlu0 %v28, 64
    %v30 = vpop.permute.xlu0 %29
    %vm31 = vcmask 785920
    %32 = vst.msk [vmem:[#allocation0] sm:$0xf] %vm31, %v30
    %s33 = scalar_lea.vmem [#allocation0], 4
    %34 = vst.msk [vmem:[%s33] sm:$0xf0] %vm31, %v30
    %s35 = scalar_lea.vmem %s0, 1
    %v36 = vld [vmem:[%s35] ss:$8 sm:$0xf]
    %s37 = scalar_lea.vmem %s0, 4294967269
    %v38 = vld [vmem:[%s37] ss:$8 sm:$0xf0]
    %vm39 = vcmask 1047556
    %v40 = vsel %vm39, %v38, %v36
    %41 = vrot.lane.b32.xlu0 %v40, 32
    %v42 = vpop.permute.xlu0 %41
    %vm43 = vcmask 523520
    %44 = vst.msk [vmem:[#allocation0] sm:$0xf] %vm43, %v42
    %s45 = scalar_lea.vmem [#allocation0], 4
    %46 = vst.msk [vmem:[%s45] sm:$0xf0] %vm43, %v42
    %s48 = sshllo.u32 0, 4
    %v50 = vld [vmem:[#allocation0] sm:%s48]
    %s51 = sshllo.u32 0, 4
    %52 = vst [vmem:[%s1] sm:%s51] %v50
    %s53 = scalar_lea.vmem [#allocation0], 8
    %v54 = vld [vmem:[%s53] sm:%s48]
    %s55 = sshllo.u32 0, 4
    %s56 = scalar_lea.vmem %s1, 4
    %57 = vst [vmem:[%s56] sm:%s55] %v54

// kernel: mul.195
$region0: #{mul.195}
  %s0 = inlined_call_operand.vmem [shape: f32[2,3,16], index: 0, kind: input, shape index: {}]
  %s1 = inlined_call_operand.vmem [shape: f32[6,16], index: 1, kind: output, shape index: {}]
  $region1: #{mul.195} parent=0
    #allocation0 [shape = 'u8[8192]{0}', space=vmem, size = 0x2000, scoped, tag = 'scoped mem for input reshape']
    %s3 = sshllo.u32 0, 4
    %s4 = scalar_lea.vmem %s0, 4
    %v5 = vld [vmem:[%s4] sm:%s3]
    %s6 = scalar_lea.vmem [#allocation0], 8
    %7 = vst [vmem:[%s6] sm:%s3] %v5
    %v8 = vld [vmem:[%s0] sm:%s3]
    %9 = vst [vmem:[#allocation0] sm:%s3] %v8
    %v10 = vld [vmem:[#allocation0] sm:$0x7]
    %vm11 = vcmask 130048
    %12 = vst.msk [vmem:[%s1] sm:$0x7] %vm11, %v10
    %s13 = scalar_lea.vmem [#allocation0], 8
    %v14 = vld [vmem:[%s13] sm:$0x7]
    %vm15 = vcmask 130048
    %s16 = scalar_lea.vmem %s1, 3
    %17 = vst.msk [vmem:[%s16] sm:$0x7] %vm15, %v14

// kernel: tmp_moment_embedding_forward.4
$region0: #{tmp_moment_embedding_forward.4}
  #allocation0 [shape = 'u32[]', space=smem, size = 0x4, offset = 0x4, fixed_abs, tag = 'smem constant byte address 0x4 - core index']
  #allocation1 [shape = 'u32[144,128]{1,0:T(1,128)}', space=vmem, size = 0x12000, scoped, tag = 'internal scratch']
  %s0 = inlined_call_operand.vmem [shape: bf16[1,4,128], index: 0, kind: input, shape index: {}]
  %s1 = inlined_call_operand.vmem [shape: f32[1,4,8], index: 1, kind: input, shape index: {}]
  %s2 = inlined_call_operand.vmem [shape: bf16[128,256], index: 2, kind: input, shape index: {}]
  %s3 = inlined_call_operand.vmem [shape: f32[4,4], index: 3, kind: input, shape index: {}]
  %s4 = inlined_call_operand.vmem [shape: f32[8,256], index: 4, kind: input, shape index: {}]
  %s5 = inlined_call_operand.vmem [shape: f32[4,256], index: 5, kind: input, shape index: {}]
  %s6 = inlined_call_operand.vmem [shape: f32[1,4,256], index: 6, kind: output, shape index: {}]
  %s7 = sld [smem:[#allocation0]]
  $region34: #{tmp_moment_embedding_forward.4} parent=0
    _
  %s9 = ssub.s32 1, %s7
  %s10 = scalar_select 0, %s9, %s7
  // Predicated region
  $region2: #{tmp_moment_embedding_forward.4} parent=0 // pred_check
    _
  $region3: #{tmp_moment_embedding_forward.4} parent=0 // pred_check_branch
    %12 = sbr.rel (0) target = $region5
  $region4: #{tmp_moment_embedding_forward.4} parent=0 // pred_region
    _
  $region5: #{tmp_moment_embedding_forward.4} parent=0 // pred_fallthru
    _
  // Predicated region
  $region6: #{tmp_moment_embedding_forward.4} parent=0 // pred_check
    _
  $region7: #{tmp_moment_embedding_forward.4} parent=0 // pred_check_branch
    %14 = sbr.rel (0) target = $region9
  $region8: #{tmp_moment_embedding_forward.4} parent=0 // pred_region
    _
  $region9: #{tmp_moment_embedding_forward.4} parent=0 // pred_fallthru
    _
  // Predicated region
  $region10: #{tmp_moment_embedding_forward.4} parent=0 // pred_check
    _
  $region11: #{tmp_moment_embedding_forward.4} parent=0 // pred_check_branch
    %16 = sbr.rel (0) target = $region13
  $region12: #{tmp_moment_embedding_forward.4} parent=0 // pred_region
    _
  $region13: #{tmp_moment_embedding_forward.4} parent=0 // pred_fallthru
    _
  // Predicated region
  $region14: #{tmp_moment_embedding_forward.4} parent=0 // pred_check
    _
  $region15: #{tmp_moment_embedding_forward.4} parent=0 // pred_check_branch
    %18 = sbr.rel (0) target = $region17
  $region16: #{tmp_moment_embedding_forward.4} parent=0 // pred_region
    _
  $region17: #{tmp_moment_embedding_forward.4} parent=0 // pred_fallthru
    _
  // Predicated region
  $region18: #{tmp_moment_embedding_forward.4} parent=0 // pred_check
    _
  $region19: #{tmp_moment_embedding_forward.4} parent=0 // pred_check_branch
    %20 = sbr.rel (0) target = $region21
  $region20: #{tmp_moment_embedding_forward.4} parent=0 // pred_region
    _
  $region21: #{tmp_moment_embedding_forward.4} parent=0 // pred_fallthru
    _
  // Predicated region
  $region22: #{tmp_moment_embedding_forward.4} parent=0 // pred_check
    _
  $region23: #{tmp_moment_embedding_forward.4} parent=0 // pred_check_branch
    %22 = sbr.rel (0) target = $region25
  $region24: #{tmp_moment_embedding_forward.4} parent=0 // pred_region
    _
  $region25: #{tmp_moment_embedding_forward.4} parent=0 // pred_fallthru
    _
  %v24 = vld [vmem:[%s0] sm:$0x3]
  %v25 = vld [vmem:[%s2] sm:$0xff]
  %v26 = vld [vmem:[%s2 + $0x8] sm:$0xff]
  %v27 = vld [vmem:[%s2 + $0x10] sm:$0xff]
  %v28 = vld [vmem:[%s2 + $0x18] sm:$0xff]
  %v29 = vld [vmem:[%s2 + $0x20] sm:$0xff]
  %v30 = vld [vmem:[%s2 + $0x28] sm:$0xff]
  %v31 = vld [vmem:[%s2 + $0x30] sm:$0xff]
  %v32 = vld [vmem:[%s2 + $0x38] sm:$0xff]
  %v33 = vld [vmem:[%s2 + $0x40] sm:$0xff]
  %v34 = vld [vmem:[%s2 + $0x48] sm:$0xff]
  %v35 = vld [vmem:[%s2 + $0x50] sm:$0xff]
  %v36 = vld [vmem:[%s2 + $0x58] sm:$0xff]
  %v37 = vld [vmem:[%s2 + $0x60] sm:$0xff]
  %v38 = vld [vmem:[%s2 + $0x68] sm:$0xff]
  %v39 = vld [vmem:[%s2 + $0x70] sm:$0xff]
  %v40 = vld [vmem:[%s2 + $0x78] sm:$0xff]
  %v57 = vunpack.c.l.b16 %v25
  %v58 = vunpack.c.h.b16 %v25
  %v59 = vunpack.c.l.b16 %v26
  %v60 = vunpack.c.h.b16 %v26
  %v61 = vunpack.c.l.b16 %v27
  %v62 = vunpack.c.h.b16 %v27
  %v63 = vunpack.c.l.b16 %v28
  %v64 = vunpack.c.h.b16 %v28
  %v65 = vunpack.c.l.b16 %v29
  %v66 = vunpack.c.h.b16 %v29
  %v67 = vunpack.c.l.b16 %v30
  %v68 = vunpack.c.h.b16 %v30
  %v69 = vunpack.c.l.b16 %v31
  %v70 = vunpack.c.h.b16 %v31
  %v71 = vunpack.c.l.b16 %v32
  %v72 = vunpack.c.h.b16 %v32
  %v73 = vunpack.c.l.b16 %v33
  %v74 = vunpack.c.h.b16 %v33
  %v75 = vunpack.c.l.b16 %v34
  %v76 = vunpack.c.h.b16 %v34
  %v77 = vunpack.c.l.b16 %v35
  %v78 = vunpack.c.h.b16 %v35
  %v79 = vunpack.c.l.b16 %v36
  %v80 = vunpack.c.h.b16 %v36
  %v81 = vunpack.c.l.b16 %v37
  %v82 = vunpack.c.h.b16 %v37
  %v83 = vunpack.c.l.b16 %v38
  %v84 = vunpack.c.h.b16 %v38
  %v85 = vunpack.c.l.b16 %v39
  %v86 = vunpack.c.h.b16 %v39
  %v87 = vunpack.c.l.b16 %v40
  %v88 = vunpack.c.h.b16 %v40
  %v89 = vpack.c.b16 %v59, %v57
  %v90 = vpack.c.b16 %v60, %v58
  %v91 = vpack.c.b16 %v63, %v61
  %v92 = vpack.c.b16 %v64, %v62
  %v93 = vpack.c.b16 %v67, %v65
  %v94 = vpack.c.b16 %v68, %v66
  %v95 = vpack.c.b16 %v71, %v69
  %v96 = vpack.c.b16 %v72, %v70
  %v97 = vpack.c.b16 %v75, %v73
  %v98 = vpack.c.b16 %v76, %v74
  %v99 = vpack.c.b16 %v79, %v77
  %v100 = vpack.c.b16 %v80, %v78
  %v101 = vpack.c.b16 %v83, %v81
  %v102 = vpack.c.b16 %v84, %v82
  %v103 = vpack.c.b16 %v87, %v85
  %v104 = vpack.c.b16 %v88, %v86
  %121 = vmatprep.subr.bf16.mxu0 %v90
  %122 = vmatpush1.bf16.msra.mxu0 %v89
  %123 = vmatprep.subr.bf16.mxu0 %v92
  %124 = vmatpush1.bf16.msra.mxu0 %v91
  %125 = vmatprep.subr.bf16.mxu0 %v94
  %126 = vmatpush1.bf16.msra.mxu0 %v93
  %127 = vmatprep.subr.bf16.mxu0 %v96
  %128 = vmatpush1.bf16.msra.mxu0 %v95
  %129 = vmatprep.subr.bf16.mxu0 %v98
  %130 = vmatpush1.bf16.msra.mxu0 %v97
  %131 = vmatprep.subr.bf16.mxu0 %v100
  %132 = vmatpush1.bf16.msra.mxu0 %v99
  %133 = vmatprep.subr.bf16.mxu0 %v102
  %134 = vmatpush1.bf16.msra.mxu0 %v101
  %135 = vmatprep.subr.bf16.mxu0 %v104
  %136 = vmatpush1.bf16.msra.mxu0 %v103
  %137 = vmatprep.subr.bf16.mxu0 0
  %138 = vmatpush1.bf16.msra.mxu0 0
  %139 = vmatprep.subr.bf16.mxu0 0
  %140 = vmatpush1.bf16.msra.mxu0 0
  %141 = vmatprep.subr.bf16.mxu0 0
  %142 = vmatpush1.bf16.msra.mxu0 0
  %143 = vmatprep.subr.bf16.mxu0 0
  %144 = vmatpush1.bf16.msra.mxu0 0
  %145 = vmatprep.subr.bf16.mxu0 0
  %146 = vmatpush1.bf16.msra.mxu0 0
  %147 = vmatprep.subr.bf16.mxu0 0
  %148 = vmatpush1.bf16.msra.mxu0 0
  %149 = vmatprep.subr.bf16.mxu0 0
  %150 = vmatpush1.bf16.msra.mxu0 0
  %151 = vmatprep.subr.bf16.mxu0 0
  %152 = vmatpush1.bf16.msra.mxu0 0
  %153 = vmatprep.mubr.bf16.mxu0 0
  %154 = vmatmul.mubr.bf16.gmra.mrb[0].mxu0 %v24
  %v155 = vpop.f32.mrb[0].mxu0
  %v156 = vadd.f32 0.0, %v155
  %v157 = vpop.f32.mrb[0].mxu0
  %v158 = vadd.f32 0.0, %v157
  %v159 = vpop.f32.mrb[0].mxu0
  %v160 = vpop.f32.mrb[0].mxu0
  %161 = vdwg.mxu0
  %v162 = vld [vmem:[%s3] sm:$0xf]
  %v163 = vld [vmem:[%s1] sm:$0xf]
  %v164 = vld [vmem:[%s4] sm:$0xff]
  %v165 = vld [vmem:[%s4 + $0x8] sm:$0xff]
  %vm166 = vcmask 64512
  %v168 = vsel %vm166, %v163, 0
  %170 = vmatprep.subr.mxu0 %v165
  %171 = vmatpush1.msra.mxu0 %v164
  %172 = vmatprep.subr.mxu0 0.0
  %173 = vmatpush1.msra.mxu0 0.0
  %174 = vmatprep.subr.mxu0 0.0
  %175 = vmatpush1.msra.mxu0 0.0
  %176 = vmatprep.subr.mxu0 0.0
  %177 = vmatpush1.msra.mxu0 0.0
  %178 = vmatprep.subr.mxu0 0.0
  %179 = vmatpush1.msra.mxu0 0.0
  %180 = vmatprep.subr.mxu0 0.0
  %181 = vmatpush1.msra.mxu0 0.0
  %182 = vmatprep.subr.mxu0 0.0
  %183 = vmatpush1.msra.mxu0 0.0
  %184 = vmatprep.subr.mxu0 0.0
  %185 = vmatpush1.msra.mxu0 0.0
  %186 = vmatprep.subr.mxu0 0.0
  %187 = vmatpush1.msra.mxu0 0.0
  %188 = vmatprep.subr.mxu0 0.0
  %189 = vmatpush1.msra.mxu0 0.0
  %190 = vmatprep.subr.mxu0 0.0
  %191 = vmatpush1.msra.mxu0 0.0
  %192 = vmatprep.subr.mxu0 0.0
  %193 = vmatpush1.msra.mxu0 0.0
  %194 = vmatprep.subr.mxu0 0.0
  %195 = vmatpush1.msra.mxu0 0.0
  %196 = vmatprep.subr.mxu0 0.0
  %197 = vmatpush1.msra.mxu0 0.0
  %198 = vmatprep.subr.mxu0 0.0
  %199 = vmatpush1.msra.mxu0 0.0
  %200 = vmatprep.subr.mxu0 0.0
  %201 = vmatpush1.msra.mxu0 0.0
  %202 = vmatprep.subr.mxu0 0.0
  %203 = vmatpush1.msra.mxu0 0.0
  %204 = vmatprep.subr.mxu0 0.0
  %205 = vmatpush1.msra.mxu0 0.0
  %206 = vmatprep.subr.mxu0 0.0
  %207 = vmatpush1.msra.mxu0 0.0
  %208 = vmatprep.subr.mxu0 0.0
  %209 = vmatpush1.msra.mxu0 0.0
  %210 = vmatprep.subr.mxu0 0.0
  %211 = vmatpush1.msra.mxu0 0.0
  %212 = vmatprep.subr.mxu0 0.0
  %213 = vmatpush1.msra.mxu0 0.0
  %214 = vmatprep.subr.mxu0 0.0
  %215 = vmatpush1.msra.mxu0 0.0
  %216 = vmatprep.subr.mxu0 0.0
  %217 = vmatpush1.msra.mxu0 0.0
  %218 = vmatprep.subr.mxu0 0.0
  %219 = vmatpush1.msra.mxu0 0.0
  %220 = vmatprep.subr.mxu0 0.0
  %221 = vmatpush1.msra.mxu0 0.0
  %222 = vmatprep.subr.mxu0 0.0
  %223 = vmatpush1.msra.mxu0 0.0
  %224 = vmatprep.subr.mxu0 0.0
  %225 = vmatpush1.msra.mxu0 0.0
  %226 = vmatprep.subr.mxu0 0.0
  %227 = vmatpush1.msra.mxu0 0.0
  %228 = vmatprep.subr.mxu0 0.0
  %229 = vmatpush1.msra.mxu0 0.0
  %230 = vmatprep.subr.mxu0 0.0
  %231 = vmatpush1.msra.mxu0 0.0
  %232 = vmatprep.subr.mxu0 0.0
  %233 = vmatpush1.msra.mxu0 0.0
  %234 = vmatprep.mubr.f32.mxu0 0.0
  %235 = vmatmul.mubr.f32.gmra.mrb[0].mxu0 %v168
  %v236 = vpop.f32.mrb[0].mxu0
  %v237 = vadd.f32 0.0, %v236
  %v238 = vpop.f32.mrb[0].mxu0
  %v239 = vadd.f32 0.0, %v238
  %240 = vdwg.mxu0
  %vm241 = vcmask 31744
  %v243 = vsel %vm241, %v162, 0
  %vm245 = vcmask 1043456
  %v247 = vsel %vm245, %v156, 0
  %v250 = vsel %vm245, %v158, 0
  %252 = vmatprep.subr.mxu0 %v250
  %253 = vmatpush1.msra.mxu0 %v247
  %254 = vmatprep.subr.mxu0 0.0
  %255 = vmatpush1.msra.mxu0 0.0
  %256 = vmatprep.subr.mxu0 0.0
  %257 = vmatpush1.msra.mxu0 0.0
  %258 = vmatprep.subr.mxu0 0.0
  %259 = vmatpush1.msra.mxu0 0.0
  %260 = vmatprep.subr.mxu0 0.0
  %261 = vmatpush1.msra.mxu0 0.0
  %262 = vmatprep.subr.mxu0 0.0
  %263 = vmatpush1.msra.mxu0 0.0
  %264 = vmatprep.subr.mxu0 0.0
  %265 = vmatpush1.msra.mxu0 0.0
  %266 = vmatprep.subr.mxu0 0.0
  %267 = vmatpush1.msra.mxu0 0.0
  %268 = vmatprep.subr.mxu0 0.0
  %269 = vmatpush1.msra.mxu0 0.0
  %270 = vmatprep.subr.mxu0 0.0
  %271 = vmatpush1.msra.mxu0 0.0
  %272 = vmatprep.subr.mxu0 0.0
  %273 = vmatpush1.msra.mxu0 0.0
  %274 = vmatprep.subr.mxu0 0.0
  %275 = vmatpush1.msra.mxu0 0.0
  %276 = vmatprep.subr.mxu0 0.0
  %277 = vmatpush1.msra.mxu0 0.0
  %278 = vmatprep.subr.mxu0 0.0
  %279 = vmatpush1.msra.mxu0 0.0
  %280 = vmatprep.subr.mxu0 0.0
  %281 = vmatpush1.msra.mxu0 0.0
  %282 = vmatprep.subr.mxu0 0.0
  %283 = vmatpush1.msra.mxu0 0.0
  %284 = vmatprep.subr.mxu0 0.0
  %285 = vmatpush1.msra.mxu0 0.0
  %286 = vmatprep.subr.mxu0 0.0
  %287 = vmatpush1.msra.mxu0 0.0
  %288 = vmatprep.subr.mxu0 0.0
  %289 = vmatpush1.msra.mxu0 0.0
  %290 = vmatprep.subr.mxu0 0.0
  %291 = vmatpush1.msra.mxu0 0.0
  %292 = vmatprep.subr.mxu0 0.0
  %293 = vmatpush1.msra.mxu0 0.0
  %294 = vmatprep.subr.mxu0 0.0
  %295 = vmatpush1.msra.mxu0 0.0
  %296 = vmatprep.subr.mxu0 0.0
  %297 = vmatpush1.msra.mxu0 0.0
  %298 = vmatprep.subr.mxu0 0.0
  %299 = vmatpush1.msra.mxu0 0.0
  %300 = vmatprep.subr.mxu0 0.0
  %301 = vmatpush1.msra.mxu0 0.0
  %302 = vmatprep.subr.mxu0 0.0
  %303 = vmatpush1.msra.mxu0 0.0
  %304 = vmatprep.subr.mxu0 0.0
  %305 = vmatpush1.msra.mxu0 0.0
  %306 = vmatprep.subr.mxu0 0.0
  %307 = vmatpush1.msra.mxu0 0.0
  %308 = vmatprep.subr.mxu0 0.0
  %309 = vmatpush1.msra.mxu0 0.0
  %310 = vmatprep.subr.mxu0 0.0
  %311 = vmatpush1.msra.mxu0 0.0
  %312 = vmatprep.subr.mxu0 0.0
  %313 = vmatpush1.msra.mxu0 0.0
  %314 = vmatprep.subr.mxu0 0.0
  %315 = vmatpush1.msra.mxu0 0.0
  %316 = vmatprep.mubr.f32.mxu0 0.0
  %317 = vmatmul.mubr.f32.gmra.mrb[0].mxu0 %v243
  %v318 = vpop.f32.mrb[0].mxu0
  %v319 = vadd.f32 %v237, %v318
  %v320 = vpop.f32.mrb[0].mxu0
  %v321 = vadd.f32 %v239, %v320
  %322 = vdwg.mxu0
  %v323 = vld [vmem:[%s5] sm:$0xff]
  %v325 = vcombine.high %v323, %v323
  %v327 = vadd.f32 %v319, %v323
  %v328 = vadd.f32 %v321, %v325
  %v331 = vcombine.low %v327, %v328
  %333 = vst [vmem:[%s6] sm:$0xff] %v331
  // Predicated region
  $region26: #{tmp_moment_embedding_forward.4} parent=0 // pred_check
    _
  $region27: #{tmp_moment_embedding_forward.4} parent=0 // pred_check_branch
    %335 = sbr.rel (0) target = $region29
  $region28: #{tmp_moment_embedding_forward.4} parent=0 // pred_region
    _
  $region29: #{tmp_moment_embedding_forward.4} parent=0 // pred_fallthru
    _
  // Predicated region
  $region30: #{tmp_moment_embedding_forward.4} parent=0 // pred_check
    _
  $region31: #{tmp_moment_embedding_forward.4} parent=0 // pred_check_branch
    %337 = sbr.rel (0) target = $region33
  $region32: #{tmp_moment_embedding_forward.4} parent=0 // pred_region
    _
  $region33: #{tmp_moment_embedding_forward.4} parent=0 // pred_fallthru
    _

// kernel: tile.29
$region0: #{tile.29}
  %s0 = inlined_call_operand.vmem [shape: f32[16,32,32], index: 0, kind: input, shape index: {}]
  %s1 = inlined_call_operand.vmem [shape: f32[16,1024], index: 1, kind: output, shape index: {}]
  %v2 = vld [vmem:[%s0] ss:$4 sm:$0xff]
  %vm3 = vcmask 261120
  %4 = vst.msk [vmem:[%s1] ss:$8 sm:$0xf] %vm3, %v2
  %5 = vst.msk [vmem:[%s1] ss:$8 sm:$0xf0] %vm3, %v2
  %s6 = scalar_lea.vmem %s0, 32
  %v7 = vld [vmem:[%s6] ss:$4 sm:$0xff]
  %vm8 = vcmask 261120
  %s9 = scalar_lea.vmem %s1, 1
  %10 = vst.msk [vmem:[%s9] ss:$8 sm:$0xf] %vm8, %v7
  %s11 = scalar_lea.vmem %s1, 1
  %12 = vst.msk [vmem:[%s11] ss:$8 sm:$0xf0] %vm8, %v7
  %s13 = scalar_lea.vmem %s0, 64
  %v14 = vld [vmem:[%s13] ss:$4 sm:$0xff]
  %vm15 = vcmask 261120
  %s16 = scalar_lea.vmem %s1, 2
  %17 = vst.msk [vmem:[%s16] ss:$8 sm:$0xf] %vm15, %v14
  %s18 = scalar_lea.vmem %s1, 2
  %19 = vst.msk [vmem:[%s18] ss:$8 sm:$0xf0] %vm15, %v14
  %s20 = scalar_lea.vmem %s0, 96
  %v21 = vld [vmem:[%s20] ss:$4 sm:$0xff]
  %vm22 = vcmask 261120
  %s23 = scalar_lea.vmem %s1, 3
  %24 = vst.msk [vmem:[%s23] ss:$8 sm:$0xf] %vm22, %v21
  %s25 = scalar_lea.vmem %s1, 3
  %26 = vst.msk [vmem:[%s25] ss:$8 sm:$0xf0] %vm22, %v21
  %s27 = scalar_lea.vmem %s0, 128
  %v28 = vld [vmem:[%s27] ss:$4 sm:$0xff]
  %vm29 = vcmask 261120
  %s30 = scalar_lea.vmem %s1, 4
  %31 = vst.msk [vmem:[%s30] ss:$8 sm:$0xf] %vm29, %v28
  %s32 = scalar_lea.vmem %s1, 4
  %33 = vst.msk [vmem:[%s32] ss:$8 sm:$0xf0] %vm29, %v28
  %s34 = scalar_lea.vmem %s0, 160
  %v35 = vld [vmem:[%s34] ss:$4 sm:$0xff]
  %vm36 = vcmask 261120
  %s37 = scalar_lea.vmem %s1, 5
  %38 = vst.msk [vmem:[%s37] ss:$8 sm:$0xf] %vm36, %v35
  %s39 = scalar_lea.vmem %s1, 5
  %40 = vst.msk [vmem:[%s39] ss:$8 sm:$0xf0] %vm36, %v35
  %s41 = scalar_lea.vmem %s0, 192
  %v42 = vld [vmem:[%s41] ss:$4 sm:$0xff]
  %vm43 = vcmask 261120
  %s44 = scalar_lea.vmem %s1, 6
  %45 = vst.msk [vmem:[%s44] ss:$8 sm:$0xf] %vm43, %v42
  %s46 = scalar_lea.vmem %s1, 6
  %47 = vst.msk [vmem:[%s46] ss:$8 sm:$0xf0] %vm43, %v42
  %s48 = scalar_lea.vmem %s0, 224
  %v49 = vld [vmem:[%s48] ss:$4 sm:$0xff]
  %vm50 = vcmask 261120
  %s51 = scalar_lea.vmem %s1, 7
  %52 = vst.msk [vmem:[%s51] ss:$8 sm:$0xf] %vm50, %v49
  %s53 = scalar_lea.vmem %s1, 7
  %54 = vst.msk [vmem:[%s53] ss:$8 sm:$0xf0] %vm50, %v49
  %s55 = scalar_lea.vmem %s0, 256
  %v56 = vld [vmem:[%s55] ss:$4 sm:$0xff]
  %vm57 = vcmask 261120
  %s58 = scalar_lea.vmem %s1, 64
  %59 = vst.msk [vmem:[%s58] ss:$8 sm:$0xf] %vm57, %v56
  %s60 = scalar_lea.vmem %s1, 64
  %61 = vst.msk [vmem:[%s60] ss:$8 sm:$0xf0] %vm57, %v56
  %s62 = scalar_lea.vmem %s0, 288
  %v63 = vld [vmem:[%s62] ss:$4 sm:$0xff]
  %vm64 = vcmask 261120
  %s65 = scalar_lea.vmem %s1, 65
  %66 = vst.msk [vmem:[%s65] ss:$8 sm:$0xf] %vm64, %v63
  %s67 = scalar_lea.vmem %s1, 65
  %68 = vst.msk [vmem:[%s67] ss:$8 sm:$0xf0] %vm64, %v63
  %s69 = scalar_lea.vmem %s0, 320
  %v70 = vld [vmem:[%s69] ss:$4 sm:$0xff]
  %vm71 = vcmask 261120
  %s72 = scalar_lea.vmem %s1, 66
  %73 = vst.msk [vmem:[%s72] ss:$8 sm:$0xf] %vm71, %v70
  %s74 = scalar_lea.vmem %s1, 66
  %75 = vst.msk [vmem:[%s74] ss:$8 sm:$0xf0] %vm71, %v70
  %s76 = scalar_lea.vmem %s0, 352
  %v77 = vld [vmem:[%s76] ss:$4 sm:$0xff]
  %vm78 = vcmask 261120
  %s79 = scalar_lea.vmem %s1, 67
  %80 = vst.msk [vmem:[%s79] ss:$8 sm:$0xf] %vm78, %v77
  %s81 = scalar_lea.vmem %s1, 67
  %82 = vst.msk [vmem:[%s81] ss:$8 sm:$0xf0] %vm78, %v77
  %s83 = scalar_lea.vmem %s0, 384
  %v84 = vld [vmem:[%s83] ss:$4 sm:$0xff]
  %vm85 = vcmask 261120
  %s86 = scalar_lea.vmem %s1, 68
  %87 = vst.msk [vmem:[%s86] ss:$8 sm:$0xf] %vm85, %v84
  %s88 = scalar_lea.vmem %s1, 68
  %89 = vst.msk [vmem:[%s88] ss:$8 sm:$0xf0] %vm85, %v84
  %s90 = scalar_lea.vmem %s0, 416
  %v91 = vld [vmem:[%s90] ss:$4 sm:$0xff]
  %vm92 = vcmask 261120
  %s93 = scalar_lea.vmem %s1, 69
  %94 = vst.msk [vmem:[%s93] ss:$8 sm:$0xf] %vm92, %v91
  %s95 = scalar_lea.vmem %s1, 69
  %96 = vst.msk [vmem:[%s95] ss:$8 sm:$0xf0] %vm92, %v91
  %s97 = scalar_lea.vmem %s0, 448
  %v98 = vld [vmem:[%s97] ss:$4 sm:$0xff]
  %vm99 = vcmask 261120
  %s100 = scalar_lea.vmem %s1, 70
  %101 = vst.msk [vmem:[%s100] ss:$8 sm:$0xf] %vm99, %v98
  %s102 = scalar_lea.vmem %s1, 70
  %103 = vst.msk [vmem:[%s102] ss:$8 sm:$0xf0] %vm99, %v98
  %s104 = scalar_lea.vmem %s0, 480
  %v105 = vld [vmem:[%s104] ss:$4 sm:$0xff]
  %vm106 = vcmask 261120
  %s107 = scalar_lea.vmem %s1, 71
  %108 = vst.msk [vmem:[%s107] ss:$8 sm:$0xf] %vm106, %v105
  %s109 = scalar_lea.vmem %s1, 71
  %110 = vst.msk [vmem:[%s109] ss:$8 sm:$0xf0] %vm106, %v105
  %s111 = scalar_lea.vmem %s0, 3
  %v112 = vld [vmem:[%s111] sm:$0x1]
  %s113 = scalar_lea.vmem %s0, 34
  %v114 = vld [vmem:[%s113] sm:$0x2]
  %vm115 = vcmask 1041409
  %v116 = vsel %vm115, %v114, %v112
  %s117 = scalar_lea.vmem %s0, 65
  %v118 = vld [vmem:[%s117] sm:$0x4]
  %vm119 = vcmask 1042434
  %v120 = vsel %vm119, %v118, %v116
  %s121 = scalar_lea.vmem %s0, 96
  %v122 = vld [vmem:[%s121] sm:$0x8]
  %vm123 = vcmask 1043459
  %v124 = vsel %vm123, %v122, %v120
  %s125 = scalar_lea.vmem %s0, 127
  %v126 = vld [vmem:[%s125] sm:$0x10]
  %vm127 = vcmask 1044484
  %v128 = vsel %vm127, %v126, %v124
  %s129 = scalar_lea.vmem %s0, 158
  %v130 = vld [vmem:[%s129] sm:$0x20]
  %vm131 = vcmask 1045509
  %v132 = vsel %vm131, %v130, %v128
  %s133 = scalar_lea.vmem %s0, 189
  %v134 = vld [vmem:[%s133] sm:$0x40]
  %vm135 = vcmask 1046534
  %v136 = vsel %vm135, %v134, %v132
  %s137 = scalar_lea.vmem %s0, 220
  %v138 = vld [vmem:[%s137] sm:$0x80]
  %vm139 = vcmask 1047559
  %v140 = vsel %vm139, %v138, %v136
  %141 = vrot.lane.b32.xlu0 %v140, 96
  %v142 = vpop.permute.xlu0 %141
  %vm143 = vcmask 1048320
  %144 = vst.msk [vmem:[%s1] sm:$0xff] %vm143, %v142
  %s145 = scalar_lea.vmem %s0, 19
  %v146 = vld [vmem:[%s145] sm:$0x1]
  %s147 = scalar_lea.vmem %s0, 50
  %v148 = vld [vmem:[%s147] sm:$0x2]
  %vm149 = vcmask 1041409
  %v150 = vsel %vm149, %v148, %v146
  %s151 = scalar_lea.vmem %s0, 81
  %v152 = vld [vmem:[%s151] sm:$0x4]
  %vm153 = vcmask 1042434
  %v154 = vsel %vm153, %v152, %v150
  %s155 = scalar_lea.vmem %s0, 112
  %v156 = vld [vmem:[%s155] sm:$0x8]
  %vm157 = vcmask 1043459
  %v158 = vsel %vm157, %v156, %v154
  %s159 = scalar_lea.vmem %s0, 143
  %v160 = vld [vmem:[%s159] sm:$0x10]
  %vm161 = vcmask 1044484
  %v162 = vsel %vm161, %v160, %v158
  %s163 = scalar_lea.vmem %s0, 174
  %v164 = vld [vmem:[%s163] sm:$0x20]
  %vm165 = vcmask 1045509
  %v166 = vsel %vm165, %v164, %v162
  %s167 = scalar_lea.vmem %s0, 205
  %v168 = vld [vmem:[%s167] sm:$0x40]
  %vm169 = vcmask 1046534
  %v170 = vsel %vm169, %v168, %v166
  %s171 = scalar_lea.vmem %s0, 236
  %v172 = vld [vmem:[%s171] sm:$0x80]
  %vm173 = vcmask 1047559
  %v174 = vsel %vm173, %v172, %v170
  %175 = vrot.lane.b32.xlu0 %v174, 96
  %v176 = vpop.permute.xlu0 %175
  %vm177 = vcmask 1048320
  %s178 = scalar_lea.vmem %s1, 32
  %179 = vst.msk [vmem:[%s178] sm:$0xff] %vm177, %v176
  %s180 = scalar_lea.vmem %s0, 259
  %v181 = vld [vmem:[%s180] sm:$0x1]
  %s182 = scalar_lea.vmem %s0, 290
  %v183 = vld [vmem:[%s182] sm:$0x2]
  %vm184 = vcmask 1041409
  %v185 = vsel %vm184, %v183, %v181
  %s186 = scalar_lea.vmem %s0, 321
  %v187 = vld [vmem:[%s186] sm:$0x4]
  %vm188 = vcmask 1042434
  %v189 = vsel %vm188, %v187, %v185
  %s190 = scalar_lea.vmem %s0, 352
  %v191 = vld [vmem:[%s190] sm:$0x8]
  %vm192 = vcmask 1043459
  %v193 = vsel %vm192, %v191, %v189
  %s194 = scalar_lea.vmem %s0, 383
  %v195 = vld [vmem:[%s194] sm:$0x10]
  %vm196 = vcmask 1044484
  %v197 = vsel %vm196, %v195, %v193
  %s198 = scalar_lea.vmem %s0, 414
  %v199 = vld [vmem:[%s198] sm:$0x20]
  %vm200 = vcmask 1045509
  %v201 = vsel %vm200, %v199, %v197
  %s202 = scalar_lea.vmem %s0, 445
  %v203 = vld [vmem:[%s202] sm:$0x40]
  %vm204 = vcmask 1046534
  %v205 = vsel %vm204, %v203, %v201
  %s206 = scalar_lea.vmem %s0, 476
  %v207 = vld [vmem:[%s206] sm:$0x80]
  %vm208 = vcmask 1047559
  %v209 = vsel %vm208, %v207, %v205
  %210 = vrot.lane.b32.xlu0 %v209, 96
  %v211 = vpop.permute.xlu0 %210
  %vm212 = vcmask 1048320
  %s213 = scalar_lea.vmem %s1, 64
  %214 = vst.msk [vmem:[%s213] sm:$0xff] %vm212, %v211
  %s215 = scalar_lea.vmem %s0, 275
  %v216 = vld [vmem:[%s215] sm:$0x1]
  %s217 = scalar_lea.vmem %s0, 306
  %v218 = vld [vmem:[%s217] sm:$0x2]
  %vm219 = vcmask 1041409
  %v220 = vsel %vm219, %v218, %v216
  %s221 = scalar_lea.vmem %s0, 337
  %v222 = vld [vmem:[%s221] sm:$0x4]
  %vm223 = vcmask 1042434
  %v224 = vsel %vm223, %v222, %v220
  %s225 = scalar_lea.vmem %s0, 368
  %v226 = vld [vmem:[%s225] sm:$0x8]
  %vm227 = vcmask 1043459
  %v228 = vsel %vm227, %v226, %v224
  %s229 = scalar_lea.vmem %s0, 399
  %v230 = vld [vmem:[%s229] sm:$0x10]
  %vm231 = vcmask 1044484
  %v232 = vsel %vm231, %v230, %v228
  %s233 = scalar_lea.vmem %s0, 430
  %v234 = vld [vmem:[%s233] sm:$0x20]
  %vm235 = vcmask 1045509
  %v236 = vsel %vm235, %v234, %v232
  %s237 = scalar_lea.vmem %s0, 461
  %v238 = vld [vmem:[%s237] sm:$0x40]
  %vm239 = vcmask 1046534
  %v240 = vsel %vm239, %v238, %v236
  %s241 = scalar_lea.vmem %s0, 492
  %v242 = vld [vmem:[%s241] sm:$0x80]
  %vm243 = vcmask 1047559
  %v244 = vsel %vm243, %v242, %v240
  %245 = vrot.lane.b32.xlu0 %v244, 96
  %v246 = vpop.permute.xlu0 %245
  %vm247 = vcmask 1048320
  %s248 = scalar_lea.vmem %s1, 96
  %249 = vst.msk [vmem:[%s248] sm:$0xff] %vm247, %v246
  %s250 = scalar_lea.vmem %s0, 7
  %v251 = vld [vmem:[%s250] sm:$0x1]
  %s252 = scalar_lea.vmem %s0, 38
  %v253 = vld [vmem:[%s252] sm:$0x2]
  %vm254 = vcmask 1041409
  %v255 = vsel %vm254, %v253, %v251
  %s256 = scalar_lea.vmem %s0, 69
  %v257 = vld [vmem:[%s256] sm:$0x4]
  %vm258 = vcmask 1042434
  %v259 = vsel %vm258, %v257, %v255
  %s260 = scalar_lea.vmem %s0, 100
  %v261 = vld [vmem:[%s260] sm:$0x8]
  %vm262 = vcmask 1043459
  %v263 = vsel %vm262, %v261, %v259
  %s264 = scalar_lea.vmem %s0, 131
  %v265 = vld [vmem:[%s264] sm:$0x10]
  %vm266 = vcmask 1044484
  %v267 = vsel %vm266, %v265, %v263
  %s268 = scalar_lea.vmem %s0, 162
  %v269 = vld [vmem:[%s268] sm:$0x20]
  %vm270 = vcmask 1045509
  %v271 = vsel %vm270, %v269, %v267
  %s272 = scalar_lea.vmem %s0, 193
  %v273 = vld [vmem:[%s272] sm:$0x40]
  %vm274 = vcmask 1046534
  %v275 = vsel %vm274, %v273, %v271
  %s276 = scalar_lea.vmem %s0, 224
  %v277 = vld [vmem:[%s276] sm:$0x80]
  %vm278 = vcmask 1047559
  %v279 = vsel %vm278, %v277, %v275
  %280 = vrot.lane.b32.xlu0 %v279, 96
  %v281 = vpop.permute.xlu0 %280
  %vm282 = vcmask 1048320
  %s283 = scalar_lea.vmem %s1, 8
  %284 = vst.msk [vmem:[%s283] sm:$0xff] %vm282, %v281
  %s285 = scalar_lea.vmem %s0, 23
  %v286 = vld [vmem:[%s285] sm:$0x1]
  %s287 = scalar_lea.vmem %s0, 54
  %v288 = vld [vmem:[%s287] sm:$0x2]
  %vm289 = vcmask 1041409
  %v290 = vsel %vm289, %v288, %v286
  %s291 = scalar_lea.vmem %s0, 85
  %v292 = vld [vmem:[%s291] sm:$0x4]
  %vm293 = vcmask 1042434
  %v294 = vsel %vm293, %v292, %v290
  %s295 = scalar_lea.vmem %s0, 116
  %v296 = vld [vmem:[%s295] sm:$0x8]
  %vm297 = vcmask 1043459
  %v298 = vsel %vm297, %v296, %v294
  %s299 = scalar_lea.vmem %s0, 147
  %v300 = vld [vmem:[%s299] sm:$0x10]
  %vm301 = vcmask 1044484
  %v302 = vsel %vm301, %v300, %v298
  %s303 = scalar_lea.vmem %s0, 178
  %v304 = vld [vmem:[%s303] sm:$0x20]
  %vm305 = vcmask 1045509
  %v306 = vsel %vm305, %v304, %v302
  %s307 = scalar_lea.vmem %s0, 209
  %v308 = vld [vmem:[%s307] sm:$0x40]
  %vm309 = vcmask 1046534
  %v310 = vsel %vm309, %v308, %v306
  %s311 = scalar_lea.vmem %s0, 240
  %v312 = vld [vmem:[%s311] sm:$0x80]
  %vm313 = vcmask 1047559
  %v314 = vsel %vm313, %v312, %v310
  %315 = vrot.lane.b32.xlu0 %v314, 96
  %v316 = vpop.permute.xlu0 %315
  %vm317 = vcmask 1048320
  %s318 = scalar_lea.vmem %s1, 40
  %319 = vst.msk [vmem:[%s318] sm:$0xff] %vm317, %v316
  %s320 = scalar_lea.vmem %s0, 263
  %v321 = vld [vmem:[%s320] sm:$0x1]
  %s322 = scalar_lea.vmem %s0, 294
  %v323 = vld [vmem:[%s322] sm:$0x2]
  %vm324 = vcmask 1041409
  %v325 = vsel %vm324, %v323, %v321
  %s326 = scalar_lea.vmem %s0, 325
  %v327 = vld [vmem:[%s326] sm:$0x4]
  %vm328 = vcmask 1042434
  %v329 = vsel %vm328, %v327, %v325
  %s330 = scalar_lea.vmem %s0, 356
  %v331 = vld [vmem:[%s330] sm:$0x8]
  %vm332 = vcmask 1043459
  %v333 = vsel %vm332, %v331, %v329
  %s334 = scalar_lea.vmem %s0, 387
  %v335 = vld [vmem:[%s334] sm:$0x10]
  %vm336 = vcmask 1044484
  %v337 = vsel %vm336, %v335, %v333
  %s338 = scalar_lea.vmem %s0, 418
  %v339 = vld [vmem:[%s338] sm:$0x20]
  %vm340 = vcmask 1045509
  %v341 = vsel %vm340, %v339, %v337
  %s342 = scalar_lea.vmem %s0, 449
  %v343 = vld [vmem:[%s342] sm:$0x40]
  %vm344 = vcmask 1046534
  %v345 = vsel %vm344, %v343, %v341
  %s346 = scalar_lea.vmem %s0, 480
  %v347 = vld [vmem:[%s346] sm:$0x80]
  %vm348 = vcmask 1047559
  %v349 = vsel %vm348, %v347, %v345
  %350 = vrot.lane.b32.xlu0 %v349, 96
  %v351 = vpop.permute.xlu0 %350
  %vm352 = vcmask 1048320
  %s353 = scalar_lea.vmem %s1, 72
  %354 = vst.msk [vmem:[%s353] sm:$0xff] %vm352, %v351
  %s355 = scalar_lea.vmem %s0, 279
  %v356 = vld [vmem:[%s355] sm:$0x1]
  %s357 = scalar_lea.vmem %s0, 310
  %v358 = vld [vmem:[%s357] sm:$0x2]
  %vm359 = vcmask 1041409
  %v360 = vsel %vm359, %v358, %v356
  %s361 = scalar_lea.vmem %s0, 341
  %v362 = vld [vmem:[%s361] sm:$0x4]
  %vm363 = vcmask 1042434
  %v364 = vsel %vm363, %v362, %v360
  %s365 = scalar_lea.vmem %s0, 372
  %v366 = vld [vmem:[%s365] sm:$0x8]
  %vm367 = vcmask 1043459
  %v368 = vsel %vm367, %v366, %v364
  %s369 = scalar_lea.vmem %s0, 403
  %v370 = vld [vmem:[%s369] sm:$0x10]
  %vm371 = vcmask 1044484
  %v372 = vsel %vm371, %v370, %v368
  %s373 = scalar_lea.vmem %s0, 434
  %v374 = vld [vmem:[%s373] sm:$0x20]
  %vm375 = vcmask 1045509
  %v376 = vsel %vm375, %v374, %v372
  %s377 = scalar_lea.vmem %s0, 465
  %v378 = vld [vmem:[%s377] sm:$0x40]
  %vm379 = vcmask 1046534
  %v380 = vsel %vm379, %v378, %v376
  %s381 = scalar_lea.vmem %s0, 496
  %v382 = vld [vmem:[%s381] sm:$0x80]
  %vm383 = vcmask 1047559
  %v384 = vsel %vm383, %v382, %v380
  %385 = vrot.lane.b32.xlu0 %v384, 96
  %v386 = vpop.permute.xlu0 %385
  %vm387 = vcmask 1048320
  %s388 = scalar_lea.vmem %s1, 104
  %389 = vst.msk [vmem:[%s388] sm:$0xff] %vm387, %v386
  %s390 = scalar_lea.vmem %s0, 11
  %v391 = vld [vmem:[%s390] sm:$0x1]
  %s392 = scalar_lea.vmem %s0, 42
  %v393 = vld [vmem:[%s392] sm:$0x2]
  %vm394 = vcmask 1041409
  %v395 = vsel %vm394, %v393, %v391
  %s396 = scalar_lea.vmem %s0, 73
  %v397 = vld [vmem:[%s396] sm:$0x4]
  %vm398 = vcmask 1042434
  %v399 = vsel %vm398, %v397, %v395
  %s400 = scalar_lea.vmem %s0, 104
  %v401 = vld [vmem:[%s400] sm:$0x8]
  %vm402 = vcmask 1043459
  %v403 = vsel %vm402, %v401, %v399
  %s404 = scalar_lea.vmem %s0, 135
  %v405 = vld [vmem:[%s404] sm:$0x10]
  %vm406 = vcmask 1044484
  %v407 = vsel %vm406, %v405, %v403
  %s408 = scalar_lea.vmem %s0, 166
  %v409 = vld [vmem:[%s408] sm:$0x20]
  %vm410 = vcmask 1045509
  %v411 = vsel %vm410, %v409, %v407
  %s412 = scalar_lea.vmem %s0, 197
  %v413 = vld [vmem:[%s412] sm:$0x40]
  %vm414 = vcmask 1046534
  %v415 = vsel %vm414, %v413, %v411
  %s416 = scalar_lea.vmem %s0, 228
  %v417 = vld [vmem:[%s416] sm:$0x80]
  %vm418 = vcmask 1047559
  %v419 = vsel %vm418, %v417, %v415
  %420 = vrot.lane.b32.xlu0 %v419, 96
  %v421 = vpop.permute.xlu0 %420
  %vm422 = vcmask 1048320
  %s423 = scalar_lea.vmem %s1, 16
  %424 = vst.msk [vmem:[%s423] sm:$0xff] %vm422, %v421
  %s425 = scalar_lea.vmem %s0, 27
  %v426 = vld [vmem:[%s425] sm:$0x1]
  %s427 = scalar_lea.vmem %s0, 58
  %v428 = vld [vmem:[%s427] sm:$0x2]
  %vm429 = vcmask 1041409
  %v430 = vsel %vm429, %v428, %v426
  %s431 = scalar_lea.vmem %s0, 89
  %v432 = vld [vmem:[%s431] sm:$0x4]
  %vm433 = vcmask 1042434
  %v434 = vsel %vm433, %v432, %v430
  %s435 = scalar_lea.vmem %s0, 120
  %v436 = vld [vmem:[%s435] sm:$0x8]
  %vm437 = vcmask 1043459
  %v438 = vsel %vm437, %v436, %v434
  %s439 = scalar_lea.vmem %s0, 151
  %v440 = vld [vmem:[%s439] sm:$0x10]
  %vm441 = vcmask 1044484
  %v442 = vsel %vm441, %v440, %v438
  %s443 = scalar_lea.vmem %s0, 182
  %v444 = vld [vmem:[%s443] sm:$0x20]
  %vm445 = vcmask 1045509
  %v446 = vsel %vm445, %v444, %v442
  %s447 = scalar_lea.vmem %s0, 213
  %v448 = vld [vmem:[%s447] sm:$0x40]
  %vm449 = vcmask 1046534
  %v450 = vsel %vm449, %v448, %v446
  %s451 = scalar_lea.vmem %s0, 244
  %v452 = vld [vmem:[%s451] sm:$0x80]
  %vm453 = vcmask 1047559
  %v454 = vsel %vm453, %v452, %v450
  %455 = vrot.lane.b32.xlu0 %v454, 96
  %v456 = vpop.permute.xlu0 %455
  %vm457 = vcmask 1048320
  %s458 = scalar_lea.vmem %s1, 48
  %459 = vst.msk [vmem:[%s458] sm:$0xff] %vm457, %v456
  %s460 = scalar_lea.vmem %s0, 267
  %v461 = vld [vmem:[%s460] sm:$0x1]
  %s462 = scalar_lea.vmem %s0, 298
  %v463 = vld [vmem:[%s462] sm:$0x2]
  %vm464 = vcmask 1041409
  %v465 = vsel %vm464, %v463, %v461
  %s466 = scalar_lea.vmem %s0, 329
  %v467 = vld [vmem:[%s466] sm:$0x4]
  %vm468 = vcmask 1042434
  %v469 = vsel %vm468, %v467, %v465
  %s470 = scalar_lea.vmem %s0, 360
  %v471 = vld [vmem:[%s470] sm:$0x8]
  %vm472 = vcmask 1043459
  %v473 = vsel %vm472, %v471, %v469
  %s474 = scalar_lea.vmem %s0, 391
  %v475 = vld [vmem:[%s474] sm:$0x10]
  %vm476 = vcmask 1044484
  %v477 = vsel %vm476, %v475, %v473
  %s478 = scalar_lea.vmem %s0, 422
  %v479 = vld [vmem:[%s478] sm:$0x20]
  %vm480 = vcmask 1045509
  %v481 = vsel %vm480, %v479, %v477
  %s482 = scalar_lea.vmem %s0, 453
  %v483 = vld [vmem:[%s482] sm:$0x40]
  %vm484 = vcmask 1046534
  %v485 = vsel %vm484, %v483, %v481
  %s486 = scalar_lea.vmem %s0, 484
  %v487 = vld [vmem:[%s486] sm:$0x80]
  %vm488 = vcmask 1047559
  %v489 = vsel %vm488, %v487, %v485
  %490 = vrot.lane.b32.xlu0 %v489, 96
  %v491 = vpop.permute.xlu0 %490
  %vm492 = vcmask 1048320
  %s493 = scalar_lea.vmem %s1, 80
  %494 = vst.msk [vmem:[%s493] sm:$0xff] %vm492, %v491
  %s495 = scalar_lea.vmem %s0, 283
  %v496 = vld [vmem:[%s495] sm:$0x1]
  %s497 = scalar_lea.vmem %s0, 314
  %v498 = vld [vmem:[%s497] sm:$0x2]
  %vm499 = vcmask 1041409
  %v500 = vsel %vm499, %v498, %v496
  %s501 = scalar_lea.vmem %s0, 345
  %v502 = vld [vmem:[%s501] sm:$0x4]
  %vm503 = vcmask 1042434
  %v504 = vsel %vm503, %v502, %v500
  %s505 = scalar_lea.vmem %s0, 376
  %v506 = vld [vmem:[%s505] sm:$0x8]
  %vm507 = vcmask 1043459
  %v508 = vsel %vm507, %v506, %v504
  %s509 = scalar_lea.vmem %s0, 407
  %v510 = vld [vmem:[%s509] sm:$0x10]
  %vm511 = vcmask 1044484
  %v512 = vsel %vm511, %v510, %v508
  %s513 = scalar_lea.vmem %s0, 438
  %v514 = vld [vmem:[%s513] sm:$0x20]
  %vm515 = vcmask 1045509
  %v516 = vsel %vm515, %v514, %v512
  %s517 = scalar_lea.vmem %s0, 469
  %v518 = vld [vmem:[%s517] sm:$0x40]
  %vm519 = vcmask 1046534
  %v520 = vsel %vm519, %v518, %v516
  %s521 = scalar_lea.vmem %s0, 500
  %v522 = vld [vmem:[%s521] sm:$0x80]
  %vm523 = vcmask 1047559
  %v524 = vsel %vm523, %v522, %v520
  %525 = vrot.lane.b32.xlu0 %v524, 96
  %v526 = vpop.permute.xlu0 %525
  %vm527 = vcmask 1048320
  %s528 = scalar_lea.vmem %s1, 112
  %529 = vst.msk [vmem:[%s528] sm:$0xff] %vm527, %v526
  %s530 = scalar_lea.vmem %s0, 15
  %v531 = vld [vmem:[%s530] sm:$0x1]
  %s532 = scalar_lea.vmem %s0, 46
  %v533 = vld [vmem:[%s532] sm:$0x2]
  %vm534 = vcmask 1041409
  %v535 = vsel %vm534, %v533, %v531
  %s536 = scalar_lea.vmem %s0, 77
  %v537 = vld [vmem:[%s536] sm:$0x4]
  %vm538 = vcmask 1042434
  %v539 = vsel %vm538, %v537, %v535
  %s540 = scalar_lea.vmem %s0, 108
  %v541 = vld [vmem:[%s540] sm:$0x8]
  %vm542 = vcmask 1043459
  %v543 = vsel %vm542, %v541, %v539
  %s544 = scalar_lea.vmem %s0, 139
  %v545 = vld [vmem:[%s544] sm:$0x10]
  %vm546 = vcmask 1044484
  %v547 = vsel %vm546, %v545, %v543
  %s548 = scalar_lea.vmem %s0, 170
  %v549 = vld [vmem:[%s548] sm:$0x20]
  %vm550 = vcmask 1045509
  %v551 = vsel %vm550, %v549, %v547
  %s552 = scalar_lea.vmem %s0, 201
  %v553 = vld [vmem:[%s552] sm:$0x40]
  %vm554 = vcmask 1046534
  %v555 = vsel %vm554, %v553, %v551
  %s556 = scalar_lea.vmem %s0, 232
  %v557 = vld [vmem:[%s556] sm:$0x80]
  %vm558 = vcmask 1047559
  %v559 = vsel %vm558, %v557, %v555
  %560 = vrot.lane.b32.xlu0 %v559, 96
  %v561 = vpop.permute.xlu0 %560
  %vm562 = vcmask 1048320
  %s563 = scalar_lea.vmem %s1, 24
  %564 = vst.msk [vmem:[%s563] sm:$0xff] %vm562, %v561
  %s565 = scalar_lea.vmem %s0, 31
  %v566 = vld [vmem:[%s565] sm:$0x1]
  %s567 = scalar_lea.vmem %s0, 62
  %v568 = vld [vmem:[%s567] sm:$0x2]
  %vm569 = vcmask 1041409
  %v570 = vsel %vm569, %v568, %v566
  %s571 = scalar_lea.vmem %s0, 93
  %v572 = vld [vmem:[%s571] sm:$0x4]
  %vm573 = vcmask 1042434
  %v574 = vsel %vm573, %v572, %v570
  %s575 = scalar_lea.vmem %s0, 124
  %v576 = vld [vmem:[%s575] sm:$0x8]
  %vm577 = vcmask 1043459
  %v578 = vsel %vm577, %v576, %v574
  %s579 = scalar_lea.vmem %s0, 155
  %v580 = vld [vmem:[%s579] sm:$0x10]
  %vm581 = vcmask 1044484
  %v582 = vsel %vm581, %v580, %v578
  %s583 = scalar_lea.vmem %s0, 186
  %v584 = vld [vmem:[%s583] sm:$0x20]
  %vm585 = vcmask 1045509
  %v586 = vsel %vm585, %v584, %v582
  %s587 = scalar_lea.vmem %s0, 217
  %v588 = vld [vmem:[%s587] sm:$0x40]
  %vm589 = vcmask 1046534
  %v590 = vsel %vm589, %v588, %v586
  %s591 = scalar_lea.vmem %s0, 248
  %v592 = vld [vmem:[%s591] sm:$0x80]
  %vm593 = vcmask 1047559
  %v594 = vsel %vm593, %v592, %v590
  %595 = vrot.lane.b32.xlu0 %v594, 96
  %v596 = vpop.permute.xlu0 %595
  %vm597 = vcmask 1048320
  %s598 = scalar_lea.vmem %s1, 56
  %599 = vst.msk [vmem:[%s598] sm:$0xff] %vm597, %v596
  %s600 = scalar_lea.vmem %s0, 271
  %v601 = vld [vmem:[%s600] sm:$0x1]
  %s602 = scalar_lea.vmem %s0, 302
  %v603 = vld [vmem:[%s602] sm:$0x2]
  %vm604 = vcmask 1041409
  %v605 = vsel %vm604, %v603, %v601
  %s606 = scalar_lea.vmem %s0, 333
  %v607 = vld [vmem:[%s606] sm:$0x4]
  %vm608 = vcmask 1042434
  %v609 = vsel %vm608, %v607, %v605
  %s610 = scalar_lea.vmem %s0, 364
  %v611 = vld [vmem:[%s610] sm:$0x8]
  %vm612 = vcmask 1043459
  %v613 = vsel %vm612, %v611, %v609
  %s614 = scalar_lea.vmem %s0, 395
  %v615 = vld [vmem:[%s614] sm:$0x10]
  %vm616 = vcmask 1044484
  %v617 = vsel %vm616, %v615, %v613
  %s618 = scalar_lea.vmem %s0, 426
  %v619 = vld [vmem:[%s618] sm:$0x20]
  %vm620 = vcmask 1045509
  %v621 = vsel %vm620, %v619, %v617
  %s622 = scalar_lea.vmem %s0, 457
  %v623 = vld [vmem:[%s622] sm:$0x40]
  %vm624 = vcmask 1046534
  %v625 = vsel %vm624, %v623, %v621
  %s626 = scalar_lea.vmem %s0, 488
  %v627 = vld [vmem:[%s626] sm:$0x80]
  %vm628 = vcmask 1047559
  %v629 = vsel %vm628, %v627, %v625
  %630 = vrot.lane.b32.xlu0 %v629, 96
  %v631 = vpop.permute.xlu0 %630
  %vm632 = vcmask 1048320
  %s633 = scalar_lea.vmem %s1, 88
  %634 = vst.msk [vmem:[%s633] sm:$0xff] %vm632, %v631
  %s635 = scalar_lea.vmem %s0, 287
  %v636 = vld [vmem:[%s635] sm:$0x1]
  %s637 = scalar_lea.vmem %s0, 318
  %v638 = vld [vmem:[%s637] sm:$0x2]
  %vm639 = vcmask 1041409
  %v640 = vsel %vm639, %v638, %v636
  %s641 = scalar_lea.vmem %s0, 349
  %v642 = vld [vmem:[%s641] sm:$0x4]
  %vm643 = vcmask 1042434
  %v644 = vsel %vm643, %v642, %v640
  %s645 = scalar_lea.vmem %s0, 380
  %v646 = vld [vmem:[%s645] sm:$0x8]
  %vm647 = vcmask 1043459
  %v648 = vsel %vm647, %v646, %v644
  %s649 = scalar_lea.vmem %s0, 411
  %v650 = vld [vmem:[%s649] sm:$0x10]
  %vm651 = vcmask 1044484
  %v652 = vsel %vm651, %v650, %v648
  %s653 = scalar_lea.vmem %s0, 442
  %v654 = vld [vmem:[%s653] sm:$0x20]
  %vm655 = vcmask 1045509
  %v656 = vsel %vm655, %v654, %v652
  %s657 = scalar_lea.vmem %s0, 473
  %v658 = vld [vmem:[%s657] sm:$0x40]
  %vm659 = vcmask 1046534
  %v660 = vsel %vm659, %v658, %v656
  %s661 = scalar_lea.vmem %s0, 504
  %v662 = vld [vmem:[%s661] sm:$0x80]
  %vm663 = vcmask 1047559
  %v664 = vsel %vm663, %v662, %v660
  %665 = vrot.lane.b32.xlu0 %v664, 96
  %v666 = vpop.permute.xlu0 %665
  %vm667 = vcmask 1048320
  %s668 = scalar_lea.vmem %s1, 120
  %669 = vst.msk [vmem:[%s668] sm:$0xff] %vm667, %v666
  %s670 = scalar_lea.vmem %s0, 2
  %v671 = vld [vmem:[%s670] sm:$0x1]
  %s672 = scalar_lea.vmem %s0, 33
  %v673 = vld [vmem:[%s672] sm:$0x2]
  %vm674 = vcmask 1041409
  %v675 = vsel %vm674, %v673, %v671
  %s676 = scalar_lea.vmem %s0, 64
  %v677 = vld [vmem:[%s676] sm:$0x4]
  %vm678 = vcmask 1042434
  %v679 = vsel %vm678, %v677, %v675
  %s680 = scalar_lea.vmem %s0, 95
  %v681 = vld [vmem:[%s680] sm:$0x8]
  %vm682 = vcmask 1043459
  %v683 = vsel %vm682, %v681, %v679
  %s684 = scalar_lea.vmem %s0, 126
  %v685 = vld [vmem:[%s684] sm:$0x10]
  %vm686 = vcmask 1044484
  %v687 = vsel %vm686, %v685, %v683
  %s688 = scalar_lea.vmem %s0, 157
  %v689 = vld [vmem:[%s688] sm:$0x20]
  %vm690 = vcmask 1045509
  %v691 = vsel %vm690, %v689, %v687
  %s692 = scalar_lea.vmem %s0, 188
  %v693 = vld [vmem:[%s692] sm:$0x40]
  %vm694 = vcmask 1046534
  %v695 = vsel %vm694, %v693, %v691
  %s696 = scalar_lea.vmem %s0, 219
  %v697 = vld [vmem:[%s696] sm:$0x80]
  %vm698 = vcmask 1047559
  %v699 = vsel %vm698, %v697, %v695
  %700 = vrot.lane.b32.xlu0 %v699, 64
  %v701 = vpop.permute.xlu0 %700
  %vm702 = vcmask 785920
  %703 = vst.msk [vmem:[%s1] sm:$0xff] %vm702, %v701
  %s704 = scalar_lea.vmem %s0, 18
  %v705 = vld [vmem:[%s704] sm:$0x1]
  %s706 = scalar_lea.vmem %s0, 49
  %v707 = vld [vmem:[%s706] sm:$0x2]
  %vm708 = vcmask 1041409
  %v709 = vsel %vm708, %v707, %v705
  %s710 = scalar_lea.vmem %s0, 80
  %v711 = vld [vmem:[%s710] sm:$0x4]
  %vm712 = vcmask 1042434
  %v713 = vsel %vm712, %v711, %v709
  %s714 = scalar_lea.vmem %s0, 111
  %v715 = vld [vmem:[%s714] sm:$0x8]
  %vm716 = vcmask 1043459
  %v717 = vsel %vm716, %v715, %v713
  %s718 = scalar_lea.vmem %s0, 142
  %v719 = vld [vmem:[%s718] sm:$0x10]
  %vm720 = vcmask 1044484
  %v721 = vsel %vm720, %v719, %v717
  %s722 = scalar_lea.vmem %s0, 173
  %v723 = vld [vmem:[%s722] sm:$0x20]
  %vm724 = vcmask 1045509
  %v725 = vsel %vm724, %v723, %v721
  %s726 = scalar_lea.vmem %s0, 204
  %v727 = vld [vmem:[%s726] sm:$0x40]
  %vm728 = vcmask 1046534
  %v729 = vsel %vm728, %v727, %v725
  %s730 = scalar_lea.vmem %s0, 235
  %v731 = vld [vmem:[%s730] sm:$0x80]
  %vm732 = vcmask 1047559
  %v733 = vsel %vm732, %v731, %v729
  %734 = vrot.lane.b32.xlu0 %v733, 64
  %v735 = vpop.permute.xlu0 %734
  %vm736 = vcmask 785920
  %s737 = scalar_lea.vmem %s1, 32
  %738 = vst.msk [vmem:[%s737] sm:$0xff] %vm736, %v735
  %s739 = scalar_lea.vmem %s0, 258
  %v740 = vld [vmem:[%s739] sm:$0x1]
  %s741 = scalar_lea.vmem %s0, 289
  %v742 = vld [vmem:[%s741] sm:$0x2]
  %vm743 = vcmask 1041409
  %v744 = vsel %vm743, %v742, %v740
  %s745 = scalar_lea.vmem %s0, 320
  %v746 = vld [vmem:[%s745] sm:$0x4]
  %vm747 = vcmask 1042434
  %v748 = vsel %vm747, %v746, %v744
  %s749 = scalar_lea.vmem %s0, 351
  %v750 = vld [vmem:[%s749] sm:$0x8]
  %vm751 = vcmask 1043459
  %v752 = vsel %vm751, %v750, %v748
  %s753 = scalar_lea.vmem %s0, 382
  %v754 = vld [vmem:[%s753] sm:$0x10]
  %vm755 = vcmask 1044484
  %v756 = vsel %vm755, %v754, %v752
  %s757 = scalar_lea.vmem %s0, 413
  %v758 = vld [vmem:[%s757] sm:$0x20]
  %vm759 = vcmask 1045509
  %v760 = vsel %vm759, %v758, %v756
  %s761 = scalar_lea.vmem %s0, 444
  %v762 = vld [vmem:[%s761] sm:$0x40]
  %vm763 = vcmask 1046534
  %v764 = vsel %vm763, %v762, %v760
  %s765 = scalar_lea.vmem %s0, 475
  %v766 = vld [vmem:[%s765] sm:$0x80]
  %vm767 = vcmask 1047559
  %v768 = vsel %vm767, %v766, %v764
  %769 = vrot.lane.b32.xlu0 %v768, 64
  %v770 = vpop.permute.xlu0 %769
  %vm771 = vcmask 785920
  %s772 = scalar_lea.vmem %s1, 64
  %773 = vst.msk [vmem:[%s772] sm:$0xff] %vm771, %v770
  %s774 = scalar_lea.vmem %s0, 274
  %v775 = vld [vmem:[%s774] sm:$0x1]
  %s776 = scalar_lea.vmem %s0, 305
  %v777 = vld [vmem:[%s776] sm:$0x2]
  %vm778 = vcmask 1041409
  %v779 = vsel %vm778, %v777, %v775
  %s780 = scalar_lea.vmem %s0, 336
  %v781 = vld [vmem:[%s780] sm:$0x4]
  %vm782 = vcmask 1042434
  %v783 = vsel %vm782, %v781, %v779
  %s784 = scalar_lea.vmem %s0, 367
  %v785 = vld [vmem:[%s784] sm:$0x8]
  %vm786 = vcmask 1043459
  %v787 = vsel %vm786, %v785, %v783
  %s788 = scalar_lea.vmem %s0, 398
  %v789 = vld [vmem:[%s788] sm:$0x10]
  %vm790 = vcmask 1044484
  %v791 = vsel %vm790, %v789, %v787
  %s792 = scalar_lea.vmem %s0, 429
  %v793 = vld [vmem:[%s792] sm:$0x20]
  %vm794 = vcmask 1045509
  %v795 = vsel %vm794, %v793, %v791
  %s796 = scalar_lea.vmem %s0, 460
  %v797 = vld [vmem:[%s796] sm:$0x40]
  %vm798 = vcmask 1046534
  %v799 = vsel %vm798, %v797, %v795
  %s800 = scalar_lea.vmem %s0, 491
  %v801 = vld [vmem:[%s800] sm:$0x80]
  %vm802 = vcmask 1047559
  %v803 = vsel %vm802, %v801, %v799
  %804 = vrot.lane.b32.xlu0 %v803, 64
  %v805 = vpop.permute.xlu0 %804
  %vm806 = vcmask 785920
  %s807 = scalar_lea.vmem %s1, 96
  %808 = vst.msk [vmem:[%s807] sm:$0xff] %vm806, %v805
  %s809 = scalar_lea.vmem %s0, 6
  %v810 = vld [vmem:[%s809] sm:$0x1]
  %s811 = scalar_lea.vmem %s0, 37
  %v812 = vld [vmem:[%s811] sm:$0x2]
  %vm813 = vcmask 1041409
  %v814 = vsel %vm813, %v812, %v810
  %s815 = scalar_lea.vmem %s0, 68
  %v816 = vld [vmem:[%s815] sm:$0x4]
  %vm817 = vcmask 1042434
  %v818 = vsel %vm817, %v816, %v814
  %s819 = scalar_lea.vmem %s0, 99
  %v820 = vld [vmem:[%s819] sm:$0x8]
  %vm821 = vcmask 1043459
  %v822 = vsel %vm821, %v820, %v818
  %s823 = scalar_lea.vmem %s0, 130
  %v824 = vld [vmem:[%s823] sm:$0x10]
  %vm825 = vcmask 1044484
  %v826 = vsel %vm825, %v824, %v822
  %s827 = scalar_lea.vmem %s0, 161
  %v828 = vld [vmem:[%s827] sm:$0x20]
  %vm829 = vcmask 1045509
  %v830 = vsel %vm829, %v828, %v826
  %s831 = scalar_lea.vmem %s0, 192
  %v832 = vld [vmem:[%s831] sm:$0x40]
  %vm833 = vcmask 1046534
  %v834 = vsel %vm833, %v832, %v830
  %s835 = scalar_lea.vmem %s0, 223
  %v836 = vld [vmem:[%s835] sm:$0x80]
  %vm837 = vcmask 1047559
  %v838 = vsel %vm837, %v836, %v834
  %839 = vrot.lane.b32.xlu0 %v838, 64
  %v840 = vpop.permute.xlu0 %839
  %vm841 = vcmask 785920
  %s842 = scalar_lea.vmem %s1, 8
  %843 = vst.msk [vmem:[%s842] sm:$0xff] %vm841, %v840
  %s844 = scalar_lea.vmem %s0, 22
  %v845 = vld [vmem:[%s844] sm:$0x1]
  %s846 = scalar_lea.vmem %s0, 53
  %v847 = vld [vmem:[%s846] sm:$0x2]
  %vm848 = vcmask 1041409
  %v849 = vsel %vm848, %v847, %v845
  %s850 = scalar_lea.vmem %s0, 84
  %v851 = vld [vmem:[%s850] sm:$0x4]
  %vm852 = vcmask 1042434
  %v853 = vsel %vm852, %v851, %v849
  %s854 = scalar_lea.vmem %s0, 115
  %v855 = vld [vmem:[%s854] sm:$0x8]
  %vm856 = vcmask 1043459
  %v857 = vsel %vm856, %v855, %v853
  %s858 = scalar_lea.vmem %s0, 146
  %v859 = vld [vmem:[%s858] sm:$0x10]
  %vm860 = vcmask 1044484
  %v861 = vsel %vm860, %v859, %v857
  %s862 = scalar_lea.vmem %s0, 177
  %v863 = vld [vmem:[%s862] sm:$0x20]
  %vm864 = vcmask 1045509
  %v865 = vsel %vm864, %v863, %v861
  %s866 = scalar_lea.vmem %s0, 208
  %v867 = vld [vmem:[%s866] sm:$0x40]
  %vm868 = vcmask 1046534
  %v869 = vsel %vm868, %v867, %v865
  %s870 = scalar_lea.vmem %s0, 239
  %v871 = vld [vmem:[%s870] sm:$0x80]
  %vm872 = vcmask 1047559
  %v873 = vsel %vm872, %v871, %v869
  %874 = vrot.lane.b32.xlu0 %v873, 64
  %v875 = vpop.permute.xlu0 %874
  %vm876 = vcmask 785920
  %s877 = scalar_lea.vmem %s1, 40
  %878 = vst.msk [vmem:[%s877] sm:$0xff] %vm876, %v875
  %s879 = scalar_lea.vmem %s0, 262
  %v880 = vld [vmem:[%s879] sm:$0x1]
  %s881 = scalar_lea.vmem %s0, 293
  %v882 = vld [vmem:[%s881] sm:$0x2]
  %vm883 = vcmask 1041409
  %v884 = vsel %vm883, %v882, %v880
  %s885 = scalar_lea.vmem %s0, 324
  %v886 = vld [vmem:[%s885] sm:$0x4]
  %vm887 = vcmask 1042434
  %v888 = vsel %vm887, %v886, %v884
  %s889 = scalar_lea.vmem %s0, 355
  %v890 = vld [vmem:[%s889] sm:$0x8]
  %vm891 = vcmask 1043459
  %v892 = vsel %vm891, %v890, %v888
  %s893 = scalar_lea.vmem %s0, 386
  %v894 = vld [vmem:[%s893] sm:$0x10]
  %vm895 = vcmask 1044484
  %v896 = vsel %vm895, %v894, %v892
  %s897 = scalar_lea.vmem %s0, 417
  %v898 = vld [vmem:[%s897] sm:$0x20]
  %vm899 = vcmask 1045509
  %v900 = vsel %vm899, %v898, %v896
  %s901 = scalar_lea.vmem %s0, 448
  %v902 = vld [vmem:[%s901] sm:$0x40]
  %vm903 = vcmask 1046534
  %v904 = vsel %vm903, %v902, %v900
  %s905 = scalar_lea.vmem %s0, 479
  %v906 = vld [vmem:[%s905] sm:$0x80]
  %vm907 = vcmask 1047559
  %v908 = vsel %vm907, %v906, %v904
  %909 = vrot.lane.b32.xlu0 %v908, 64
  %v910 = vpop.permute.xlu0 %909
  %vm911 = vcmask 785920
  %s912 = scalar_lea.vmem %s1, 72
  %913 = vst.msk [vmem:[%s912] sm:$0xff] %vm911, %v910
  %s914 = scalar_lea.vmem %s0, 278
  %v915 = vld [vmem:[%s914] sm:$0x1]
  %s916 = scalar_lea.vmem %s0, 309
  %v917 = vld [vmem:[%s916] sm:$0x2]
  %vm918 = vcmask 1041409
  %v919 = vsel %vm918, %v917, %v915
  %s920 = scalar_lea.vmem %s0, 340
  %v921 = vld [vmem:[%s920] sm:$0x4]
  %vm922 = vcmask 1042434
  %v923 = vsel %vm922, %v921, %v919
  %s924 = scalar_lea.vmem %s0, 371
  %v925 = vld [vmem:[%s924] sm:$0x8]
  %vm926 = vcmask 1043459
  %v927 = vsel %vm926, %v925, %v923
  %s928 = scalar_lea.vmem %s0, 402
  %v929 = vld [vmem:[%s928] sm:$0x10]
  %vm930 = vcmask 1044484
  %v931 = vsel %vm930, %v929, %v927
  %s932 = scalar_lea.vmem %s0, 433
  %v933 = vld [vmem:[%s932] sm:$0x20]
  %vm934 = vcmask 1045509
  %v935 = vsel %vm934, %v933, %v931
  %s936 = scalar_lea.vmem %s0, 464
  %v937 = vld [vmem:[%s936] sm:$0x40]
  %vm938 = vcmask 1046534
  %v939 = vsel %vm938, %v937, %v935
  %s940 = scalar_lea.vmem %s0, 495
  %v941 = vld [vmem:[%s940] sm:$0x80]
  %vm942 = vcmask 1047559
  %v943 = vsel %vm942, %v941, %v939
  %944 = vrot.lane.b32.xlu0 %v943, 64
  %v945 = vpop.permute.xlu0 %944
  %vm946 = vcmask 785920
  %s947 = scalar_lea.vmem %s1, 104
  %948 = vst.msk [vmem:[%s947] sm:$0xff] %vm946, %v945
  %s949 = scalar_lea.vmem %s0, 10
  %v950 = vld [vmem:[%s949] sm:$0x1]
  %s951 = scalar_lea.vmem %s0, 41
  %v952 = vld [vmem:[%s951] sm:$0x2]
  %vm953 = vcmask 1041409
  %v954 = vsel %vm953, %v952, %v950
  %s955 = scalar_lea.vmem %s0, 72
  %v956 = vld [vmem:[%s955] sm:$0x4]
  %vm957 = vcmask 1042434
  %v958 = vsel %vm957, %v956, %v954
  %s959 = scalar_lea.vmem %s0, 103
  %v960 = vld [vmem:[%s959] sm:$0x8]
  %vm961 = vcmask 1043459
  %v962 = vsel %vm961, %v960, %v958
  %s963 = scalar_lea.vmem %s0, 134
  %v964 = vld [vmem:[%s963] sm:$0x10]
  %vm965 = vcmask 1044484
  %v966 = vsel %vm965, %v964, %v962
  %s967 = scalar_lea.vmem %s0, 165
  %v968 = vld [vmem:[%s967] sm:$0x20]
  %vm969 = vcmask 1045509
  %v970 = vsel %vm969, %v968, %v966
  %s971 = scalar_lea.vmem %s0, 196
  %v972 = vld [vmem:[%s971] sm:$0x40]
  %vm973 = vcmask 1046534
  %v974 = vsel %vm973, %v972, %v970
  %s975 = scalar_lea.vmem %s0, 227
  %v976 = vld [vmem:[%s975] sm:$0x80]
  %vm977 = vcmask 1047559
  %v978 = vsel %vm977, %v976, %v974
  %979 = vrot.lane.b32.xlu0 %v978, 64
  %v980 = vpop.permute.xlu0 %979
  %vm981 = vcmask 785920
  %s982 = scalar_lea.vmem %s1, 16
  %983 = vst.msk [vmem:[%s982] sm:$0xff] %vm981, %v980
  %s984 = scalar_lea.vmem %s0, 26
  %v985 = vld [vmem:[%s984] sm:$0x1]
  %s986 = scalar_lea.vmem %s0, 57
  %v987 = vld [vmem:[%s986] sm:$0x2]
  %vm988 = vcmask 1041409
  %v989 = vsel %vm988, %v987, %v985
  %s990 = scalar_lea.vmem %s0, 88
  %v991 = vld [vmem:[%s990] sm:$0x4]
  %vm992 = vcmask 1042434
  %v993 = vsel %vm992, %v991, %v989
  %s994 = scalar_lea.vmem %s0, 119
  %v995 = vld [vmem:[%s994] sm:$0x8]
  %vm996 = vcmask 1043459
  %v997 = vsel %vm996, %v995, %v993
  %s998 = scalar_lea.vmem %s0, 150
  %v999 = vld [vmem:[%s998] sm:$0x10]
  %vm1000 = vcmask 1044484
  %v1001 = vsel %vm1000, %v999, %v997
  %s1002 = scalar_lea.vmem %s0, 181
  %v1003 = vld [vmem:[%s1002] sm:$0x20]
  %vm1004 = vcmask 1045509
  %v1005 = vsel %vm1004, %v1003, %v1001
  %s1006 = scalar_lea.vmem %s0, 212
  %v1007 = vld [vmem:[%s1006] sm:$0x40]
  %vm1008 = vcmask 1046534
  %v1009 = vsel %vm1008, %v1007, %v1005
  %s1010 = scalar_lea.vmem %s0, 243
  %v1011 = vld [vmem:[%s1010] sm:$0x80]
  %vm1012 = vcmask 1047559
  %v1013 = vsel %vm1012, %v1011, %v1009
  %1014 = vrot.lane.b32.xlu0 %v1013, 64
  %v1015 = vpop.permute.xlu0 %1014
  %vm1016 = vcmask 785920
  %s1017 = scalar_lea.vmem %s1, 48
  %1018 = vst.msk [vmem:[%s1017] sm:$0xff] %vm1016, %v1015
  %s1019 = scalar_lea.vmem %s0, 266
  %v1020 = vld [vmem:[%s1019] sm:$0x1]
  %s1021 = scalar_lea.vmem %s0, 297
  %v1022 = vld [vmem:[%s1021] sm:$0x2]
  %vm1023 = vcmask 1041409
  %v1024 = vsel %vm1023, %v1022, %v1020
  %s1025 = scalar_lea.vmem %s0, 328
  %v1026 = vld [vmem:[%s1025] sm:$0x4]
  %vm1027 = vcmask 1042434
  %v1028 = vsel %vm1027, %v1026, %v1024
  %s1029 = scalar_lea.vmem %s0, 359
  %v1030 = vld [vmem:[%s1029] sm:$0x8]
  %vm1031 = vcmask 1043459
  %v1032 = vsel %vm1031, %v1030, %v1028
  %s1033 = scalar_lea.vmem %s0, 390
  %v1034 = vld [vmem:[%s1033] sm:$0x10]
  %vm1035 = vcmask 1044484
  %v1036 = vsel %vm1035, %v1034, %v1032
  %s1037 = scalar_lea.vmem %s0, 421
  %v1038 = vld [vmem:[%s1037] sm:$0x20]
  %vm1039 = vcmask 1045509
  %v1040 = vsel %vm1039, %v1038, %v1036
  %s1041 = scalar_lea.vmem %s0, 452
  %v1042 = vld [vmem:[%s1041] sm:$0x40]
  %vm1043 = vcmask 1046534
  %v1044 = vsel %vm1043, %v1042, %v1040
  %s1045 = scalar_lea.vmem %s0, 483
  %v1046 = vld [vmem:[%s1045] sm:$0x80]
  %vm1047 = vcmask 1047559
  %v1048 = vsel %vm1047, %v1046, %v1044
  %1049 = vrot.lane.b32.xlu0 %v1048, 64
  %v1050 = vpop.permute.xlu0 %1049
  %vm1051 = vcmask 785920
  %s1052 = scalar_lea.vmem %s1, 80
  %1053 = vst.msk [vmem:[%s1052] sm:$0xff] %vm1051, %v1050
  %s1054 = scalar_lea.vmem %s0, 282
  %v1055 = vld [vmem:[%s1054] sm:$0x1]
  %s1056 = scalar_lea.vmem %s0, 313
  %v1057 = vld [vmem:[%s1056] sm:$0x2]
  %vm1058 = vcmask 1041409
  %v1059 = vsel %vm1058, %v1057, %v1055
  %s1060 = scalar_lea.vmem %s0, 344
  %v1061 = vld [vmem:[%s1060] sm:$0x4]
  %vm1062 = vcmask 1042434
  %v1063 = vsel %vm1062, %v1061, %v1059
  %s1064 = scalar_lea.vmem %s0, 375
  %v1065 = vld [vmem:[%s1064] sm:$0x8]
  %vm1066 = vcmask 1043459
  %v1067 = vsel %vm1066, %v1065, %v1063
  %s1068 = scalar_lea.vmem %s0, 406
  %v1069 = vld [vmem:[%s1068] sm:$0x10]
  %vm1070 = vcmask 1044484
  %v1071 = vsel %vm1070, %v1069, %v1067
  %s1072 = scalar_lea.vmem %s0, 437
  %v1073 = vld [vmem:[%s1072] sm:$0x20]
  %vm1074 = vcmask 1045509
  %v1075 = vsel %vm1074, %v1073, %v1071
  %s1076 = scalar_lea.vmem %s0, 468
  %v1077 = vld [vmem:[%s1076] sm:$0x40]
  %vm1078 = vcmask 1046534
  %v1079 = vsel %vm1078, %v1077, %v1075
  %s1080 = scalar_lea.vmem %s0, 499
  %v1081 = vld [vmem:[%s1080] sm:$0x80]
  %vm1082 = vcmask 1047559
  %v1083 = vsel %vm1082, %v1081, %v1079
  %1084 = vrot.lane.b32.xlu0 %v1083, 64
  %v1085 = vpop.permute.xlu0 %1084
  %vm1086 = vcmask 785920
  %s1087 = scalar_lea.vmem %s1, 112
  %1088 = vst.msk [vmem:[%s1087] sm:$0xff] %vm1086, %v1085
  %s1089 = scalar_lea.vmem %s0, 14
  %v1090 = vld [vmem:[%s1089] sm:$0x1]
  %s1091 = scalar_lea.vmem %s0, 45
  %v1092 = vld [vmem:[%s1091] sm:$0x2]
  %vm1093 = vcmask 1041409
  %v1094 = vsel %vm1093, %v1092, %v1090
  %s1095 = scalar_lea.vmem %s0, 76
  %v1096 = vld [vmem:[%s1095] sm:$0x4]
  %vm1097 = vcmask 1042434
  %v1098 = vsel %vm1097, %v1096, %v1094
  %s1099 = scalar_lea.vmem %s0, 107
  %v1100 = vld [vmem:[%s1099] sm:$0x8]
  %vm1101 = vcmask 1043459
  %v1102 = vsel %vm1101, %v1100, %v1098
  %s1103 = scalar_lea.vmem %s0, 138
  %v1104 = vld [vmem:[%s1103] sm:$0x10]
  %vm1105 = vcmask 1044484
  %v1106 = vsel %vm1105, %v1104, %v1102
  %s1107 = scalar_lea.vmem %s0, 169
  %v1108 = vld [vmem:[%s1107] sm:$0x20]
  %vm1109 = vcmask 1045509
  %v1110 = vsel %vm1109, %v1108, %v1106
  %s1111 = scalar_lea.vmem %s0, 200
  %v1112 = vld [vmem:[%s1111] sm:$0x40]
  %vm1113 = vcmask 1046534
  %v1114 = vsel %vm1113, %v1112, %v1110
  %s1115 = scalar_lea.vmem %s0, 231
  %v1116 = vld [vmem:[%s1115] sm:$0x80]
  %vm1117 = vcmask 1047559
  %v1118 = vsel %vm1117, %v1116, %v1114
  %1119 = vrot.lane.b32.xlu0 %v1118, 64
  %v1120 = vpop.permute.xlu0 %1119
  %vm1121 = vcmask 785920
  %s1122 = scalar_lea.vmem %s1, 24
  %1123 = vst.msk [vmem:[%s1122] sm:$0xff] %vm1121, %v1120
  %s1124 = scalar_lea.vmem %s0, 30
  %v1125 = vld [vmem:[%s1124] sm:$0x1]
  %s1126 = scalar_lea.vmem %s0, 61
  %v1127 = vld [vmem:[%s1126] sm:$0x2]
  %vm1128 = vcmask 1041409
  %v1129 = vsel %vm1128, %v1127, %v1125
  %s1130 = scalar_lea.vmem %s0, 92
  %v1131 = vld [vmem:[%s1130] sm:$0x4]
  %vm1132 = vcmask 1042434
  %v1133 = vsel %vm1132, %v1131, %v1129
  %s1134 = scalar_lea.vmem %s0, 123
  %v1135 = vld [vmem:[%s1134] sm:$0x8]
  %vm1136 = vcmask 1043459
  %v1137 = vsel %vm1136, %v1135, %v1133
  %s1138 = scalar_lea.vmem %s0, 154
  %v1139 = vld [vmem:[%s1138] sm:$0x10]
  %vm1140 = vcmask 1044484
  %v1141 = vsel %vm1140, %v1139, %v1137
  %s1142 = scalar_lea.vmem %s0, 185
  %v1143 = vld [vmem:[%s1142] sm:$0x20]
  %vm1144 = vcmask 1045509
  %v1145 = vsel %vm1144, %v1143, %v1141
  %s1146 = scalar_lea.vmem %s0, 216
  %v1147 = vld [vmem:[%s1146] sm:$0x40]
  %vm1148 = vcmask 1046534
  %v1149 = vsel %vm1148, %v1147, %v1145
  %s1150 = scalar_lea.vmem %s0, 247
  %v1151 = vld [vmem:[%s1150] sm:$0x80]
  %vm1152 = vcmask 1047559
  %v1153 = vsel %vm1152, %v1151, %v1149
  %1154 = vrot.lane.b32.xlu0 %v1153, 64
  %v1155 = vpop.permute.xlu0 %1154
  %vm1156 = vcmask 785920
  %s1157 = scalar_lea.vmem %s1, 56
  %1158 = vst.msk [vmem:[%s1157] sm:$0xff] %vm1156, %v1155
  %s1159 = scalar_lea.vmem %s0, 270
  %v1160 = vld [vmem:[%s1159] sm:$0x1]
  %s1161 = scalar_lea.vmem %s0, 301
  %v1162 = vld [vmem:[%s1161] sm:$0x2]
  %vm1163 = vcmask 1041409
  %v1164 = vsel %vm1163, %v1162, %v1160
  %s1165 = scalar_lea.vmem %s0, 332
  %v1166 = vld [vmem:[%s1165] sm:$0x4]
  %vm1167 = vcmask 1042434
  %v1168 = vsel %vm1167, %v1166, %v1164
  %s1169 = scalar_lea.vmem %s0, 363
  %v1170 = vld [vmem:[%s1169] sm:$0x8]
  %vm1171 = vcmask 1043459
  %v1172 = vsel %vm1171, %v1170, %v1168
  %s1173 = scalar_lea.vmem %s0, 394
  %v1174 = vld [vmem:[%s1173] sm:$0x10]
  %vm1175 = vcmask 1044484
  %v1176 = vsel %vm1175, %v1174, %v1172
  %s1177 = scalar_lea.vmem %s0, 425
  %v1178 = vld [vmem:[%s1177] sm:$0x20]
  %vm1179 = vcmask 1045509
  %v1180 = vsel %vm1179, %v1178, %v1176
  %s1181 = scalar_lea.vmem %s0, 456
  %v1182 = vld [vmem:[%s1181] sm:$0x40]
  %vm1183 = vcmask 1046534
  %v1184 = vsel %vm1183, %v1182, %v1180
  %s1185 = scalar_lea.vmem %s0, 487
  %v1186 = vld [vmem:[%s1185] sm:$0x80]
  %vm1187 = vcmask 1047559
  %v1188 = vsel %vm1187, %v1186, %v1184
  %1189 = vrot.lane.b32.xlu0 %v1188, 64
  %v1190 = vpop.permute.xlu0 %1189
  %vm1191 = vcmask 785920
  %s1192 = scalar_lea.vmem %s1, 88
  %1193 = vst.msk [vmem:[%s1192] sm:$0xff] %vm1191, %v1190
  %s1194 = scalar_lea.vmem %s0, 286
  %v1195 = vld [vmem:[%s1194] sm:$0x1]
  %s1196 = scalar_lea.vmem %s0, 317
  %v1197 = vld [vmem:[%s1196] sm:$0x2]
  %vm1198 = vcmask 1041409
  %v1199 = vsel %vm1198, %v1197, %v1195
  %s1200 = scalar_lea.vmem %s0, 348
  %v1201 = vld [vmem:[%s1200] sm:$0x4]
  %vm1202 = vcmask 1042434
  %v1203 = vsel %vm1202, %v1201, %v1199
  %s1204 = scalar_lea.vmem %s0, 379
  %v1205 = vld [vmem:[%s1204] sm:$0x8]
  %vm1206 = vcmask 1043459
  %v1207 = vsel %vm1206, %v1205, %v1203
  %s1208 = scalar_lea.vmem %s0, 410
  %v1209 = vld [vmem:[%s1208] sm:$0x10]
  %vm1210 = vcmask 1044484
  %v1211 = vsel %vm1210, %v1209, %v1207
  %s1212 = scalar_lea.vmem %s0, 441
  %v1213 = vld [vmem:[%s1212] sm:$0x20]
  %vm1214 = vcmask 1045509
  %v1215 = vsel %vm1214, %v1213, %v1211
  %s1216 = scalar_lea.vmem %s0, 472
  %v1217 = vld [vmem:[%s1216] sm:$0x40]
  %vm1218 = vcmask 1046534
  %v1219 = vsel %vm1218, %v1217, %v1215
  %s1220 = scalar_lea.vmem %s0, 503
  %v1221 = vld [vmem:[%s1220] sm:$0x80]
  %vm1222 = vcmask 1047559
  %v1223 = vsel %vm1222, %v1221, %v1219
  %1224 = vrot.lane.b32.xlu0 %v1223, 64
  %v1225 = vpop.permute.xlu0 %1224
  %vm1226 = vcmask 785920
  %s1227 = scalar_lea.vmem %s1, 120
  %1228 = vst.msk [vmem:[%s1227] sm:$0xff] %vm1226, %v1225
  %s1229 = scalar_lea.vmem %s0, 1
  %v1230 = vld [vmem:[%s1229] sm:$0x1]
  %s1231 = scalar_lea.vmem %s0, 32
  %v1232 = vld [vmem:[%s1231] sm:$0x2]
  %vm1233 = vcmask 1041409
  %v1234 = vsel %vm1233, %v1232, %v1230
  %s1235 = scalar_lea.vmem %s0, 63
  %v1236 = vld [vmem:[%s1235] sm:$0x4]
  %vm1237 = vcmask 1042434
  %v1238 = vsel %vm1237, %v1236, %v1234
  %s1239 = scalar_lea.vmem %s0, 94
  %v1240 = vld [vmem:[%s1239] sm:$0x8]
  %vm1241 = vcmask 1043459
  %v1242 = vsel %vm1241, %v1240, %v1238
  %s1243 = scalar_lea.vmem %s0, 125
  %v1244 = vld [vmem:[%s1243] sm:$0x10]
  %vm1245 = vcmask 1044484
  %v1246 = vsel %vm1245, %v1244, %v1242
  %s1247 = scalar_lea.vmem %s0, 156
  %v1248 = vld [vmem:[%s1247] sm:$0x20]
  %vm1249 = vcmask 1045509
  %v1250 = vsel %vm1249, %v1248, %v1246
  %s1251 = scalar_lea.vmem %s0, 187
  %v1252 = vld [vmem:[%s1251] sm:$0x40]
  %vm1253 = vcmask 1046534
  %v1254 = vsel %vm1253, %v1252, %v1250
  %s1255 = scalar_lea.vmem %s0, 218
  %v1256 = vld [vmem:[%s1255] sm:$0x80]
  %vm1257 = vcmask 1047559
  %v1258 = vsel %vm1257, %v1256, %v1254
  %1259 = vrot.lane.b32.xlu0 %v1258, 32
  %v1260 = vpop.permute.xlu0 %1259
  %vm1261 = vcmask 523520
  %1262 = vst.msk [vmem:[%s1] sm:$0xff] %vm1261, %v1260
  %s1263 = scalar_lea.vmem %s0, 17
  %v1264 = vld [vmem:[%s1263] sm:$0x1]
  %s1265 = scalar_lea.vmem %s0, 48
  %v1266 = vld [vmem:[%s1265] sm:$0x2]
  %vm1267 = vcmask 1041409
  %v1268 = vsel %vm1267, %v1266, %v1264
  %s1269 = scalar_lea.vmem %s0, 79
  %v1270 = vld [vmem:[%s1269] sm:$0x4]
  %vm1271 = vcmask 1042434
  %v1272 = vsel %vm1271, %v1270, %v1268
  %s1273 = scalar_lea.vmem %s0, 110
  %v1274 = vld [vmem:[%s1273] sm:$0x8]
  %vm1275 = vcmask 1043459
  %v1276 = vsel %vm1275, %v1274, %v1272
  %s1277 = scalar_lea.vmem %s0, 141
  %v1278 = vld [vmem:[%s1277] sm:$0x10]
  %vm1279 = vcmask 1044484
  %v1280 = vsel %vm1279, %v1278, %v1276
  %s1281 = scalar_lea.vmem %s0, 172
  %v1282 = vld [vmem:[%s1281] sm:$0x20]
  %vm1283 = vcmask 1045509
  %v1284 = vsel %vm1283, %v1282, %v1280
  %s1285 = scalar_lea.vmem %s0, 203
  %v1286 = vld [vmem:[%s1285] sm:$0x40]
  %vm1287 = vcmask 1046534
  %v1288 = vsel %vm1287, %v1286, %v1284
  %s1289 = scalar_lea.vmem %s0, 234
  %v1290 = vld [vmem:[%s1289] sm:$0x80]
  %vm1291 = vcmask 1047559
  %v1292 = vsel %vm1291, %v1290, %v1288
  %1293 = vrot.lane.b32.xlu0 %v1292, 32
  %v1294 = vpop.permute.xlu0 %1293
  %vm1295 = vcmask 523520
  %s1296 = scalar_lea.vmem %s1, 32
  %1297 = vst.msk [vmem:[%s1296] sm:$0xff] %vm1295, %v1294
  %s1298 = scalar_lea.vmem %s0, 257
  %v1299 = vld [vmem:[%s1298] sm:$0x1]
  %s1300 = scalar_lea.vmem %s0, 288
  %v1301 = vld [vmem:[%s1300] sm:$0x2]
  %vm1302 = vcmask 1041409
  %v1303 = vsel %vm1302, %v1301, %v1299
  %s1304 = scalar_lea.vmem %s0, 319
  %v1305 = vld [vmem:[%s1304] sm:$0x4]
  %vm1306 = vcmask 1042434
  %v1307 = vsel %vm1306, %v1305, %v1303
  %s1308 = scalar_lea.vmem %s0, 350
  %v1309 = vld [vmem:[%s1308] sm:$0x8]
  %vm1310 = vcmask 1043459
  %v1311 = vsel %vm1310, %v1309, %v1307
  %s1312 = scalar_lea.vmem %s0, 381
  %v1313 = vld [vmem:[%s1312] sm:$0x10]
  %vm1314 = vcmask 1044484
  %v1315 = vsel %vm1314, %v1313, %v1311
  %s1316 = scalar_lea.vmem %s0, 412
  %v1317 = vld [vmem:[%s1316] sm:$0x20]
  %vm1318 = vcmask 1045509
  %v1319 = vsel %vm1318, %v1317, %v1315
  %s1320 = scalar_lea.vmem %s0, 443
  %v1321 = vld [vmem:[%s1320] sm:$0x40]
  %vm1322 = vcmask 1046534
  %v1323 = vsel %vm1322, %v1321, %v1319
  %s1324 = scalar_lea.vmem %s0, 474
  %v1325 = vld [vmem:[%s1324] sm:$0x80]
  %vm1326 = vcmask 1047559
  %v1327 = vsel %vm1326, %v1325, %v1323
  %1328 = vrot.lane.b32.xlu0 %v1327, 32
  %v1329 = vpop.permute.xlu0 %1328
  %vm1330 = vcmask 523520
  %s1331 = scalar_lea.vmem %s1, 64
  %1332 = vst.msk [vmem:[%s1331] sm:$0xff] %vm1330, %v1329
  %s1333 = scalar_lea.vmem %s0, 273
  %v1334 = vld [vmem:[%s1333] sm:$0x1]
  %s1335 = scalar_lea.vmem %s0, 304
  %v1336 = vld [vmem:[%s1335] sm:$0x2]
  %vm1337 = vcmask 1041409
  %v1338 = vsel %vm1337, %v1336, %v1334
  %s1339 = scalar_lea.vmem %s0, 335
  %v1340 = vld [vmem:[%s1339] sm:$0x4]
  %vm1341 = vcmask 1042434
  %v1342 = vsel %vm1341, %v1340, %v1338
  %s1343 = scalar_lea.vmem %s0, 366
  %v1344 = vld [vmem:[%s1343] sm:$0x8]
  %vm1345 = vcmask 1043459
  %v1346 = vsel %vm1345, %v1344, %v1342
  %s1347 = scalar_lea.vmem %s0, 397
  %v1348 = vld [vmem:[%s1347] sm:$0x10]
  %vm1349 = vcmask 1044484
  %v1350 = vsel %vm1349, %v1348, %v1346
  %s1351 = scalar_lea.vmem %s0, 428
  %v1352 = vld [vmem:[%s1351] sm:$0x20]
  %vm1353 = vcmask 1045509
  %v1354 = vsel %vm1353, %v1352, %v1350
  %s1355 = scalar_lea.vmem %s0, 459
  %v1356 = vld [vmem:[%s1355] sm:$0x40]
  %vm1357 = vcmask 1046534
  %v1358 = vsel %vm1357, %v1356, %v1354
  %s1359 = scalar_lea.vmem %s0, 490
  %v1360 = vld [vmem:[%s1359] sm:$0x80]
  %vm1361 = vcmask 1047559
  %v1362 = vsel %vm1361, %v1360, %v1358
  %1363 = vrot.lane.b32.xlu0 %v1362, 32
  %v1364 = vpop.permute.xlu0 %1363
  %vm1365 = vcmask 523520
  %s1366 = scalar_lea.vmem %s1, 96
  %1367 = vst.msk [vmem:[%s1366] sm:$0xff] %vm1365, %v1364
  %s1368 = scalar_lea.vmem %s0, 5
  %v1369 = vld [vmem:[%s1368] sm:$0x1]
  %s1370 = scalar_lea.vmem %s0, 36
  %v1371 = vld [vmem:[%s1370] sm:$0x2]
  %vm1372 = vcmask 1041409
  %v1373 = vsel %vm1372, %v1371, %v1369
  %s1374 = scalar_lea.vmem %s0, 67
  %v1375 = vld [vmem:[%s1374] sm:$0x4]
  %vm1376 = vcmask 1042434
  %v1377 = vsel %vm1376, %v1375, %v1373
  %s1378 = scalar_lea.vmem %s0, 98
  %v1379 = vld [vmem:[%s1378] sm:$0x8]
  %vm1380 = vcmask 1043459
  %v1381 = vsel %vm1380, %v1379, %v1377
  %s1382 = scalar_lea.vmem %s0, 129
  %v1383 = vld [vmem:[%s1382] sm:$0x10]
  %vm1384 = vcmask 1044484
  %v1385 = vsel %vm1384, %v1383, %v1381
  %s1386 = scalar_lea.vmem %s0, 160
  %v1387 = vld [vmem:[%s1386] sm:$0x20]
  %vm1388 = vcmask 1045509
  %v1389 = vsel %vm1388, %v1387, %v1385
  %s1390 = scalar_lea.vmem %s0, 191
  %v1391 = vld [vmem:[%s1390] sm:$0x40]
  %vm1392 = vcmask 1046534
  %v1393 = vsel %vm1392, %v1391, %v1389
  %s1394 = scalar_lea.vmem %s0, 222
  %v1395 = vld [vmem:[%s1394] sm:$0x80]
  %vm1396 = vcmask 1047559
  %v1397 = vsel %vm1396, %v1395, %v1393
  %1398 = vrot.lane.b32.xlu0 %v1397, 32
  %v1399 = vpop.permute.xlu0 %1398
  %vm1400 = vcmask 523520
  %s1401 = scalar_lea.vmem %s1, 8
  %1402 = vst.msk [vmem:[%s1401] sm:$0xff] %vm1400, %v1399
  %s1403 = scalar_lea.vmem %s0, 21
  %v1404 = vld [vmem:[%s1403] sm:$0x1]
  %s1405 = scalar_lea.vmem %s0, 52
  %v1406 = vld [vmem:[%s1405] sm:$0x2]
  %vm1407 = vcmask 1041409
  %v1408 = vsel %vm1407, %v1406, %v1404
  %s1409 = scalar_lea.vmem %s0, 83
  %v1410 = vld [vmem:[%s1409] sm:$0x4]
  %vm1411 = vcmask 1042434
  %v1412 = vsel %vm1411, %v1410, %v1408
  %s1413 = scalar_lea.vmem %s0, 114
  %v1414 = vld [vmem:[%s1413] sm:$0x8]
  %vm1415 = vcmask 1043459
  %v1416 = vsel %vm1415, %v1414, %v1412
  %s1417 = scalar_lea.vmem %s0, 145
  %v1418 = vld [vmem:[%s1417] sm:$0x10]
  %vm1419 = vcmask 1044484
  %v1420 = vsel %vm1419, %v1418, %v1416
  %s1421 = scalar_lea.vmem %s0, 176
  %v1422 = vld [vmem:[%s1421] sm:$0x20]
  %vm1423 = vcmask 1045509
  %v1424 = vsel %vm1423, %v1422, %v1420
  %s1425 = scalar_lea.vmem %s0, 207
  %v1426 = vld [vmem:[%s1425] sm:$0x40]
  %vm1427 = vcmask 1046534
  %v1428 = vsel %vm1427, %v1426, %v1424
  %s1429 = scalar_lea.vmem %s0, 238
  %v1430 = vld [vmem:[%s1429] sm:$0x80]
  %vm1431 = vcmask 1047559
  %v1432 = vsel %vm1431, %v1430, %v1428
  %1433 = vrot.lane.b32.xlu0 %v1432, 32
  %v1434 = vpop.permute.xlu0 %1433
  %vm1435 = vcmask 523520
  %s1436 = scalar_lea.vmem %s1, 40
  %1437 = vst.msk [vmem:[%s1436] sm:$0xff] %vm1435, %v1434
  %s1438 = scalar_lea.vmem %s0, 261
  %v1439 = vld [vmem:[%s1438] sm:$0x1]
  %s1440 = scalar_lea.vmem %s0, 292
  %v1441 = vld [vmem:[%s1440] sm:$0x2]
  %vm1442 = vcmask 1041409
  %v1443 = vsel %vm1442, %v1441, %v1439
  %s1444 = scalar_lea.vmem %s0, 323
  %v1445 = vld [vmem:[%s1444] sm:$0x4]
  %vm1446 = vcmask 1042434
  %v1447 = vsel %vm1446, %v1445, %v1443
  %s1448 = scalar_lea.vmem %s0, 354
  %v1449 = vld [vmem:[%s1448] sm:$0x8]
  %vm1450 = vcmask 1043459
  %v1451 = vsel %vm1450, %v1449, %v1447
  %s1452 = scalar_lea.vmem %s0, 385
  %v1453 = vld [vmem:[%s1452] sm:$0x10]
  %vm1454 = vcmask 1044484
  %v1455 = vsel %vm1454, %v1453, %v1451
  %s1456 = scalar_lea.vmem %s0, 416
  %v1457 = vld [vmem:[%s1456] sm:$0x20]
  %vm1458 = vcmask 1045509
  %v1459 = vsel %vm1458, %v1457, %v1455
  %s1460 = scalar_lea.vmem %s0, 447
  %v1461 = vld [vmem:[%s1460] sm:$0x40]
  %vm1462 = vcmask 1046534
  %v1463 = vsel %vm1462, %v1461, %v1459
  %s1464 = scalar_lea.vmem %s0, 478
  %v1465 = vld [vmem:[%s1464] sm:$0x80]
  %vm1466 = vcmask 1047559
  %v1467 = vsel %vm1466, %v1465, %v1463
  %1468 = vrot.lane.b32.xlu0 %v1467, 32
  %v1469 = vpop.permute.xlu0 %1468
  %vm1470 = vcmask 523520
  %s1471 = scalar_lea.vmem %s1, 72
  %1472 = vst.msk [vmem:[%s1471] sm:$0xff] %vm1470, %v1469
  %s1473 = scalar_lea.vmem %s0, 277
  %v1474 = vld [vmem:[%s1473] sm:$0x1]
  %s1475 = scalar_lea.vmem %s0, 308
  %v1476 = vld [vmem:[%s1475] sm:$0x2]
  %vm1477 = vcmask 1041409
  %v1478 = vsel %vm1477, %v1476, %v1474
  %s1479 = scalar_lea.vmem %s0, 339
  %v1480 = vld [vmem:[%s1479] sm:$0x4]
  %vm1481 = vcmask 1042434
  %v1482 = vsel %vm1481, %v1480, %v1478
  %s1483 = scalar_lea.vmem %s0, 370
  %v1484 = vld [vmem:[%s1483] sm:$0x8]
  %vm1485 = vcmask 1043459
  %v1486 = vsel %vm1485, %v1484, %v1482
  %s1487 = scalar_lea.vmem %s0, 401
  %v1488 = vld [vmem:[%s1487] sm:$0x10]
  %vm1489 = vcmask 1044484
  %v1490 = vsel %vm1489, %v1488, %v1486
  %s1491 = scalar_lea.vmem %s0, 432
  %v1492 = vld [vmem:[%s1491] sm:$0x20]
  %vm1493 = vcmask 1045509
  %v1494 = vsel %vm1493, %v1492, %v1490
  %s1495 = scalar_lea.vmem %s0, 463
  %v1496 = vld [vmem:[%s1495] sm:$0x40]
  %vm1497 = vcmask 1046534
  %v1498 = vsel %vm1497, %v1496, %v1494
  %s1499 = scalar_lea.vmem %s0, 494
  %v1500 = vld [vmem:[%s1499] sm:$0x80]
  %vm1501 = vcmask 1047559
  %v1502 = vsel %vm1501, %v1500, %v1498
  %1503 = vrot.lane.b32.xlu0 %v1502, 32
  %v1504 = vpop.permute.xlu0 %1503
  %vm1505 = vcmask 523520
  %s1506 = scalar_lea.vmem %s1, 104
  %1507 = vst.msk [vmem:[%s1506] sm:$0xff] %vm1505, %v1504
  %s1508 = scalar_lea.vmem %s0, 9
  %v1509 = vld [vmem:[%s1508] sm:$0x1]
  %s1510 = scalar_lea.vmem %s0, 40
  %v1511 = vld [vmem:[%s1510] sm:$0x2]
  %vm1512 = vcmask 1041409
  %v1513 = vsel %vm1512, %v1511, %v1509
  %s1514 = scalar_lea.vmem %s0, 71
  %v1515 = vld [vmem:[%s1514] sm:$0x4]
  %vm1516 = vcmask 1042434
  %v1517 = vsel %vm1516, %v1515, %v1513
  %s1518 = scalar_lea.vmem %s0, 102
  %v1519 = vld [vmem:[%s1518] sm:$0x8]
  %vm1520 = vcmask 1043459
  %v1521 = vsel %vm1520, %v1519, %v1517
  %s1522 = scalar_lea.vmem %s0, 133
  %v1523 = vld [vmem:[%s1522] sm:$0x10]
  %vm1524 = vcmask 1044484
  %v1525 = vsel %vm1524, %v1523, %v1521
  %s1526 = scalar_lea.vmem %s0, 164
  %v1527 = vld [vmem:[%s1526] sm:$0x20]
  %vm1528 = vcmask 1045509
  %v1529 = vsel %vm1528, %v1527, %v1525
  %s1530 = scalar_lea.vmem %s0, 195
  %v1531 = vld [vmem:[%s1530] sm:$0x40]
  %vm1532 = vcmask 1046534
  %v1533 = vsel %vm1532, %v1531, %v1529
  %s1534 = scalar_lea.vmem %s0, 226
  %v1535 = vld [vmem:[%s1534] sm:$0x80]
  %vm1536 = vcmask 1047559
  %v1537 = vsel %vm1536, %v1535, %v1533
  %1538 = vrot.lane.b32.xlu0 %v1537, 32
  %v1539 = vpop.permute.xlu0 %1538
  %vm1540 = vcmask 523520
  %s1541 = scalar_lea.vmem %s1, 16
  %1542 = vst.msk [vmem:[%s1541] sm:$0xff] %vm1540, %v1539
  %s1543 = scalar_lea.vmem %s0, 25
  %v1544 = vld [vmem:[%s1543] sm:$0x1]
  %s1545 = scalar_lea.vmem %s0, 56
  %v1546 = vld [vmem:[%s1545] sm:$0x2]
  %vm1547 = vcmask 1041409
  %v1548 = vsel %vm1547, %v1546, %v1544
  %s1549 = scalar_lea.vmem %s0, 87
  %v1550 = vld [vmem:[%s1549] sm:$0x4]
  %vm1551 = vcmask 1042434
  %v1552 = vsel %vm1551, %v1550, %v1548
  %s1553 = scalar_lea.vmem %s0, 118
  %v1554 = vld [vmem:[%s1553] sm:$0x8]
  %vm1555 = vcmask 1043459
  %v1556 = vsel %vm1555, %v1554, %v1552
  %s1557 = scalar_lea.vmem %s0, 149
  %v1558 = vld [vmem:[%s1557] sm:$0x10]
  %vm1559 = vcmask 1044484
  %v1560 = vsel %vm1559, %v1558, %v1556
  %s1561 = scalar_lea.vmem %s0, 180
  %v1562 = vld [vmem:[%s1561] sm:$0x20]
  %vm1563 = vcmask 1045509
  %v1564 = vsel %vm1563, %v1562, %v1560
  %s1565 = scalar_lea.vmem %s0, 211
  %v1566 = vld [vmem:[%s1565] sm:$0x40]
  %vm1567 = vcmask 1046534
  %v1568 = vsel %vm1567, %v1566, %v1564
  %s1569 = scalar_lea.vmem %s0, 242
  %v1570 = vld [vmem:[%s1569] sm:$0x80]
  %vm1571 = vcmask 1047559
  %v1572 = vsel %vm1571, %v1570, %v1568
  %1573 = vrot.lane.b32.xlu0 %v1572, 32
  %v1574 = vpop.permute.xlu0 %1573
  %vm1575 = vcmask 523520
  %s1576 = scalar_lea.vmem %s1, 48
  %1577 = vst.msk [vmem:[%s1576] sm:$0xff] %vm1575, %v1574
  %s1578 = scalar_lea.vmem %s0, 265
  %v1579 = vld [vmem:[%s1578] sm:$0x1]
  %s1580 = scalar_lea.vmem %s0, 296
  %v1581 = vld [vmem:[%s1580] sm:$0x2]
  %vm1582 = vcmask 1041409
  %v1583 = vsel %vm1582, %v1581, %v1579
  %s1584 = scalar_lea.vmem %s0, 327
  %v1585 = vld [vmem:[%s1584] sm:$0x4]
  %vm1586 = vcmask 1042434
  %v1587 = vsel %vm1586, %v1585, %v1583
  %s1588 = scalar_lea.vmem %s0, 358
  %v1589 = vld [vmem:[%s1588] sm:$0x8]
  %vm1590 = vcmask 1043459
  %v1591 = vsel %vm1590, %v1589, %v1587
  %s1592 = scalar_lea.vmem %s0, 389
  %v1593 = vld [vmem:[%s1592] sm:$0x10]
  %vm1594 = vcmask 1044484
  %v1595 = vsel %vm1594, %v1593, %v1591
  %s1596 = scalar_lea.vmem %s0, 420
  %v1597 = vld [vmem:[%s1596] sm:$0x20]
  %vm1598 = vcmask 1045509
  %v1599 = vsel %vm1598, %v1597, %v1595
  %s1600 = scalar_lea.vmem %s0, 451
  %v1601 = vld [vmem:[%s1600] sm:$0x40]
  %vm1602 = vcmask 1046534
  %v1603 = vsel %vm1602, %v1601, %v1599
  %s1604 = scalar_lea.vmem %s0, 482
  %v1605 = vld [vmem:[%s1604] sm:$0x80]
  %vm1606 = vcmask 1047559
  %v1607 = vsel %vm1606, %v1605, %v1603
  %1608 = vrot.lane.b32.xlu0 %v1607, 32
  %v1609 = vpop.permute.xlu0 %1608
  %vm1610 = vcmask 523520
  %s1611 = scalar_lea.vmem %s1, 80
  %1612 = vst.msk [vmem:[%s1611] sm:$0xff] %vm1610, %v1609
  %s1613 = scalar_lea.vmem %s0, 281
  %v1614 = vld [vmem:[%s1613] sm:$0x1]
  %s1615 = scalar_lea.vmem %s0, 312
  %v1616 = vld [vmem:[%s1615] sm:$0x2]
  %vm1617 = vcmask 1041409
  %v1618 = vsel %vm1617, %v1616, %v1614
  %s1619 = scalar_lea.vmem %s0, 343
  %v1620 = vld [vmem:[%s1619] sm:$0x4]
  %vm1621 = vcmask 1042434
  %v1622 = vsel %vm1621, %v1620, %v1618
  %s1623 = scalar_lea.vmem %s0, 374
  %v1624 = vld [vmem:[%s1623] sm:$0x8]
  %vm1625 = vcmask 1043459
  %v1626 = vsel %vm1625, %v1624, %v1622
  %s1627 = scalar_lea.vmem %s0, 405
  %v1628 = vld [vmem:[%s1627] sm:$0x10]
  %vm1629 = vcmask 1044484
  %v1630 = vsel %vm1629, %v1628, %v1626
  %s1631 = scalar_lea.vmem %s0, 436
  %v1632 = vld [vmem:[%s1631] sm:$0x20]
  %vm1633 = vcmask 1045509
  %v1634 = vsel %vm1633, %v1632, %v1630
  %s1635 = scalar_lea.vmem %s0, 467
  %v1636 = vld [vmem:[%s1635] sm:$0x40]
  %vm1637 = vcmask 1046534
  %v1638 = vsel %vm1637, %v1636, %v1634
  %s1639 = scalar_lea.vmem %s0, 498
  %v1640 = vld [vmem:[%s1639] sm:$0x80]
  %vm1641 = vcmask 1047559
  %v1642 = vsel %vm1641, %v1640, %v1638
  %1643 = vrot.lane.b32.xlu0 %v1642, 32
  %v1644 = vpop.permute.xlu0 %1643
  %vm1645 = vcmask 523520
  %s1646 = scalar_lea.vmem %s1, 112
  %1647 = vst.msk [vmem:[%s1646] sm:$0xff] %vm1645, %v1644
  %s1648 = scalar_lea.vmem %s0, 13
  %v1649 = vld [vmem:[%s1648] sm:$0x1]
  %s1650 = scalar_lea.vmem %s0, 44
  %v1651 = vld [vmem:[%s1650] sm:$0x2]
  %vm1652 = vcmask 1041409
  %v1653 = vsel %vm1652, %v1651, %v1649
  %s1654 = scalar_lea.vmem %s0, 75
  %v1655 = vld [vmem:[%s1654] sm:$0x4]
  %vm1656 = vcmask 1042434
  %v1657 = vsel %vm1656, %v1655, %v1653
  %s1658 = scalar_lea.vmem %s0, 106
  %v1659 = vld [vmem:[%s1658] sm:$0x8]
  %vm1660 = vcmask 1043459
  %v1661 = vsel %vm1660, %v1659, %v1657
  %s1662 = scalar_lea.vmem %s0, 137
  %v1663 = vld [vmem:[%s1662] sm:$0x10]
  %vm1664 = vcmask 1044484
  %v1665 = vsel %vm1664, %v1663, %v1661
  %s1666 = scalar_lea.vmem %s0, 168
  %v1667 = vld [vmem:[%s1666] sm:$0x20]
  %vm1668 = vcmask 1045509
  %v1669 = vsel %vm1668, %v1667, %v1665
  %s1670 = scalar_lea.vmem %s0, 199
  %v1671 = vld [vmem:[%s1670] sm:$0x40]
  %vm1672 = vcmask 1046534
  %v1673 = vsel %vm1672, %v1671, %v1669
  %s1674 = scalar_lea.vmem %s0, 230
  %v1675 = vld [vmem:[%s1674] sm:$0x80]
  %vm1676 = vcmask 1047559
  %v1677 = vsel %vm1676, %v1675, %v1673
  %1678 = vrot.lane.b32.xlu0 %v1677, 32
  %v1679 = vpop.permute.xlu0 %1678
  %vm1680 = vcmask 523520
  %s1681 = scalar_lea.vmem %s1, 24
  %1682 = vst.msk [vmem:[%s1681] sm:$0xff] %vm1680, %v1679
  %s1683 = scalar_lea.vmem %s0, 29
  %v1684 = vld [vmem:[%s1683] sm:$0x1]
  %s1685 = scalar_lea.vmem %s0, 60
  %v1686 = vld [vmem:[%s1685] sm:$0x2]
  %vm1687 = vcmask 1041409
  %v1688 = vsel %vm1687, %v1686, %v1684
  %s1689 = scalar_lea.vmem %s0, 91
  %v1690 = vld [vmem:[%s1689] sm:$0x4]
  %vm1691 = vcmask 1042434
  %v1692 = vsel %vm1691, %v1690, %v1688
  %s1693 = scalar_lea.vmem %s0, 122
  %v1694 = vld [vmem:[%s1693] sm:$0x8]
  %vm1695 = vcmask 1043459
  %v1696 = vsel %vm1695, %v1694, %v1692
  %s1697 = scalar_lea.vmem %s0, 153
  %v1698 = vld [vmem:[%s1697] sm:$0x10]
  %vm1699 = vcmask 1044484
  %v1700 = vsel %vm1699, %v1698, %v1696
  %s1701 = scalar_lea.vmem %s0, 184
  %v1702 = vld [vmem:[%s1701] sm:$0x20]
  %vm1703 = vcmask 1045509
  %v1704 = vsel %vm1703, %v1702, %v1700
  %s1705 = scalar_lea.vmem %s0, 215
  %v1706 = vld [vmem:[%s1705] sm:$0x40]
  %vm1707 = vcmask 1046534
  %v1708 = vsel %vm1707, %v1706, %v1704
  %s1709 = scalar_lea.vmem %s0, 246
  %v1710 = vld [vmem:[%s1709] sm:$0x80]
  %vm1711 = vcmask 1047559
  %v1712 = vsel %vm1711, %v1710, %v1708
  %1713 = vrot.lane.b32.xlu0 %v1712, 32
  %v1714 = vpop.permute.xlu0 %1713
  %vm1715 = vcmask 523520
  %s1716 = scalar_lea.vmem %s1, 56
  %1717 = vst.msk [vmem:[%s1716] sm:$0xff] %vm1715, %v1714
  %s1718 = scalar_lea.vmem %s0, 269
  %v1719 = vld [vmem:[%s1718] sm:$0x1]
  %s1720 = scalar_lea.vmem %s0, 300
  %v1721 = vld [vmem:[%s1720] sm:$0x2]
  %vm1722 = vcmask 1041409
  %v1723 = vsel %vm1722, %v1721, %v1719
  %s1724 = scalar_lea.vmem %s0, 331
  %v1725 = vld [vmem:[%s1724] sm:$0x4]
  %vm1726 = vcmask 1042434
  %v1727 = vsel %vm1726, %v1725, %v1723
  %s1728 = scalar_lea.vmem %s0, 362
  %v1729 = vld [vmem:[%s1728] sm:$0x8]
  %vm1730 = vcmask 1043459
  %v1731 = vsel %vm1730, %v1729, %v1727
  %s1732 = scalar_lea.vmem %s0, 393
  %v1733 = vld [vmem:[%s1732] sm:$0x10]
  %vm1734 = vcmask 1044484
  %v1735 = vsel %vm1734, %v1733, %v1731
  %s1736 = scalar_lea.vmem %s0, 424
  %v1737 = vld [vmem:[%s1736] sm:$0x20]
  %vm1738 = vcmask 1045509
  %v1739 = vsel %vm1738, %v1737, %v1735
  %s1740 = scalar_lea.vmem %s0, 455
  %v1741 = vld [vmem:[%s1740] sm:$0x40]
  %vm1742 = vcmask 1046534
  %v1743 = vsel %vm1742, %v1741, %v1739
  %s1744 = scalar_lea.vmem %s0, 486
  %v1745 = vld [vmem:[%s1744] sm:$0x80]
  %vm1746 = vcmask 1047559
  %v1747 = vsel %vm1746, %v1745, %v1743
  %1748 = vrot.lane.b32.xlu0 %v1747, 32
  %v1749 = vpop.permute.xlu0 %1748
  %vm1750 = vcmask 523520
  %s1751 = scalar_lea.vmem %s1, 88
  %1752 = vst.msk [vmem:[%s1751] sm:$0xff] %vm1750, %v1749
  %s1753 = scalar_lea.vmem %s0, 285
  %v1754 = vld [vmem:[%s1753] sm:$0x1]
  %s1755 = scalar_lea.vmem %s0, 316
  %v1756 = vld [vmem:[%s1755] sm:$0x2]
  %vm1757 = vcmask 1041409
  %v1758 = vsel %vm1757, %v1756, %v1754
  %s1759 = scalar_lea.vmem %s0, 347
  %v1760 = vld [vmem:[%s1759] sm:$0x4]
  %vm1761 = vcmask 1042434
  %v1762 = vsel %vm1761, %v1760, %v1758
  %s1763 = scalar_lea.vmem %s0, 378
  %v1764 = vld [vmem:[%s1763] sm:$0x8]
  %vm1765 = vcmask 1043459
  %v1766 = vsel %vm1765, %v1764, %v1762
  %s1767 = scalar_lea.vmem %s0, 409
  %v1768 = vld [vmem:[%s1767] sm:$0x10]
  %vm1769 = vcmask 1044484
  %v1770 = vsel %vm1769, %v1768, %v1766
  %s1771 = scalar_lea.vmem %s0, 440
  %v1772 = vld [vmem:[%s1771] sm:$0x20]
  %vm1773 = vcmask 1045509
  %v1774 = vsel %vm1773, %v1772, %v1770
  %s1775 = scalar_lea.vmem %s0, 471
  %v1776 = vld [vmem:[%s1775] sm:$0x40]
  %vm1777 = vcmask 1046534
  %v1778 = vsel %vm1777, %v1776, %v1774
  %s1779 = scalar_lea.vmem %s0, 502
  %v1780 = vld [vmem:[%s1779] sm:$0x80]
  %vm1781 = vcmask 1047559
  %v1782 = vsel %vm1781, %v1780, %v1778
  %1783 = vrot.lane.b32.xlu0 %v1782, 32
  %v1784 = vpop.permute.xlu0 %1783
  %vm1785 = vcmask 523520
  %s1786 = scalar_lea.vmem %s1, 120
  %1787 = vst.msk [vmem:[%s1786] sm:$0xff] %vm1785, %v1784

// kernel: tmp_moment_embedding_forward.5
$region0: #{tmp_moment_embedding_forward.5}
  #allocation0 [shape = 'u32[]', space=smem, size = 0x4, offset = 0x4, fixed_abs, tag = 'smem constant byte address 0x4 - core index']
  #allocation1 [shape = 'u32[144,128]{1,0:T(1,128)}', space=vmem, size = 0x12000, scoped, tag = 'internal scratch']
  %s0 = inlined_call_operand.vmem [shape: bf16[1,16,128], index: 0, kind: input, shape index: {}]
  %s1 = inlined_call_operand.vmem [shape: f32[1,16,32], index: 1, kind: input, shape index: {}]
  %s2 = inlined_call_operand.vmem [shape: bf16[128,1024], index: 2, kind: input, shape index: {}]
  %s3 = inlined_call_operand.vmem [shape: f32[16,16], index: 3, kind: input, shape index: {}]
  %s4 = inlined_call_operand.vmem [shape: f32[32,1024], index: 4, kind: input, shape index: {}]
  %s5 = inlined_call_operand.vmem [shape: f32[16,1024], index: 5, kind: input, shape index: {}]
  %s6 = inlined_call_operand.vmem [shape: f32[1,16,1024], index: 6, kind: output, shape index: {}]
  %s7 = sld [smem:[#allocation0]]
  $region34: #{tmp_moment_embedding_forward.5} parent=0
    _
  %s9 = ssub.s32 1, %s7
  %s10 = scalar_select 0, %s9, %s7
  // Predicated region
  $region2: #{tmp_moment_embedding_forward.5} parent=0 // pred_check
    _
  $region3: #{tmp_moment_embedding_forward.5} parent=0 // pred_check_branch
    %12 = sbr.rel (0) target = $region5
  $region4: #{tmp_moment_embedding_forward.5} parent=0 // pred_region
    _
  $region5: #{tmp_moment_embedding_forward.5} parent=0 // pred_fallthru
    _
  // Predicated region
  $region6: #{tmp_moment_embedding_forward.5} parent=0 // pred_check
    _
  $region7: #{tmp_moment_embedding_forward.5} parent=0 // pred_check_branch
    %14 = sbr.rel (0) target = $region9
  $region8: #{tmp_moment_embedding_forward.5} parent=0 // pred_region
    _
  $region9: #{tmp_moment_embedding_forward.5} parent=0 // pred_fallthru
    _
  // Predicated region
  $region10: #{tmp_moment_embedding_forward.5} parent=0 // pred_check
    _
  $region11: #{tmp_moment_embedding_forward.5} parent=0 // pred_check_branch
    %16 = sbr.rel (0) target = $region13
  $region12: #{tmp_moment_embedding_forward.5} parent=0 // pred_region
    _
  $region13: #{tmp_moment_embedding_forward.5} parent=0 // pred_fallthru
    _
  // Predicated region
  $region14: #{tmp_moment_embedding_forward.5} parent=0 // pred_check
    _
  $region15: #{tmp_moment_embedding_forward.5} parent=0 // pred_check_branch
    %18 = sbr.rel (0) target = $region17
  $region16: #{tmp_moment_embedding_forward.5} parent=0 // pred_region
    _
  $region17: #{tmp_moment_embedding_forward.5} parent=0 // pred_fallthru
    _
  // Predicated region
  $region18: #{tmp_moment_embedding_forward.5} parent=0 // pred_check
    _
  $region19: #{tmp_moment_embedding_forward.5} parent=0 // pred_check_branch
    %20 = sbr.rel (0) target = $region21
  $region20: #{tmp_moment_embedding_forward.5} parent=0 // pred_region
    _
  $region21: #{tmp_moment_embedding_forward.5} parent=0 // pred_fallthru
    _
  // Predicated region
  $region22: #{tmp_moment_embedding_forward.5} parent=0 // pred_check
    _
  $region23: #{tmp_moment_embedding_forward.5} parent=0 // pred_check_branch
    %22 = sbr.rel (0) target = $region25
  $region24: #{tmp_moment_embedding_forward.5} parent=0 // pred_region
    _
  $region25: #{tmp_moment_embedding_forward.5} parent=0 // pred_fallthru
    _
  %v24 = vld [vmem:[%s0] sm:$0xf]
  %v25 = vld [vmem:[%s0 + $0x4] sm:$0xf]
  %v26 = vld [vmem:[%s2] sm:$0xff]
  %v27 = vld [vmem:[%s2 + $0x8] sm:$0xff]
  %v28 = vld [vmem:[%s2 + $0x10] sm:$0xff]
  %v29 = vld [vmem:[%s2 + $0x18] sm:$0xff]
  %v30 = vld [vmem:[%s2 + $0x20] sm:$0xff]
  %v31 = vld [vmem:[%s2 + $0x28] sm:$0xff]
  %v32 = vld [vmem:[%s2 + $0x30] sm:$0xff]
  %v33 = vld [vmem:[%s2 + $0x38] sm:$0xff]
  %v34 = vld [vmem:[%s2 + $0x40] sm:$0xff]
  %v35 = vld [vmem:[%s2 + $0x48] sm:$0xff]
  %v36 = vld [vmem:[%s2 + $0x50] sm:$0xff]
  %v37 = vld [vmem:[%s2 + $0x58] sm:$0xff]
  %v38 = vld [vmem:[%s2 + $0x60] sm:$0xff]
  %v39 = vld [vmem:[%s2 + $0x68] sm:$0xff]
  %v40 = vld [vmem:[%s2 + $0x70] sm:$0xff]
  %v41 = vld [vmem:[%s2 + $0x78] sm:$0xff]
  %v42 = vld [vmem:[%s2 + $0x80] sm:$0xff]
  %v43 = vld [vmem:[%s2 + $0x88] sm:$0xff]
  %v44 = vld [vmem:[%s2 + $0x90] sm:$0xff]
  %v45 = vld [vmem:[%s2 + $0x98] sm:$0xff]
  %v46 = vld [vmem:[%s2 + $0xa0] sm:$0xff]
  %v47 = vld [vmem:[%s2 + $0xa8] sm:$0xff]
  %v48 = vld [vmem:[%s2 + $0xb0] sm:$0xff]
  %v49 = vld [vmem:[%s2 + $0xb8] sm:$0xff]
  %v50 = vld [vmem:[%s2 + $0xc0] sm:$0xff]
  %v51 = vld [vmem:[%s2 + $0xc8] sm:$0xff]
  %v52 = vld [vmem:[%s2 + $0xd0] sm:$0xff]
  %v53 = vld [vmem:[%s2 + $0xd8] sm:$0xff]
  %v54 = vld [vmem:[%s2 + $0xe0] sm:$0xff]
  %v55 = vld [vmem:[%s2 + $0xe8] sm:$0xff]
  %v56 = vld [vmem:[%s2 + $0xf0] sm:$0xff]
  %v57 = vld [vmem:[%s2 + $0xf8] sm:$0xff]
  %v58 = vld [vmem:[%s2 + $0x100] sm:$0xff]
  %v59 = vld [vmem:[%s2 + $0x108] sm:$0xff]
  %v60 = vld [vmem:[%s2 + $0x110] sm:$0xff]
  %v61 = vld [vmem:[%s2 + $0x118] sm:$0xff]
  %v62 = vld [vmem:[%s2 + $0x120] sm:$0xff]
  %v63 = vld [vmem:[%s2 + $0x128] sm:$0xff]
  %v64 = vld [vmem:[%s2 + $0x130] sm:$0xff]
  %v65 = vld [vmem:[%s2 + $0x138] sm:$0xff]
  %v66 = vld [vmem:[%s2 + $0x140] sm:$0xff]
  %v67 = vld [vmem:[%s2 + $0x148] sm:$0xff]
  %v68 = vld [vmem:[%s2 + $0x150] sm:$0xff]
  %v69 = vld [vmem:[%s2 + $0x158] sm:$0xff]
  %v70 = vld [vmem:[%s2 + $0x160] sm:$0xff]
  %v71 = vld [vmem:[%s2 + $0x168] sm:$0xff]
  %v72 = vld [vmem:[%s2 + $0x170] sm:$0xff]
  %v73 = vld [vmem:[%s2 + $0x178] sm:$0xff]
  %v74 = vld [vmem:[%s2 + $0x180] sm:$0xff]
  %v75 = vld [vmem:[%s2 + $0x188] sm:$0xff]
  %v76 = vld [vmem:[%s2 + $0x190] sm:$0xff]
  %v77 = vld [vmem:[%s2 + $0x198] sm:$0xff]
  %v78 = vld [vmem:[%s2 + $0x1a0] sm:$0xff]
  %v79 = vld [vmem:[%s2 + $0x1a8] sm:$0xff]
  %v80 = vld [vmem:[%s2 + $0x1b0] sm:$0xff]
  %v81 = vld [vmem:[%s2 + $0x1b8] sm:$0xff]
  %v82 = vld [vmem:[%s2 + $0x1c0] sm:$0xff]
  %v83 = vld [vmem:[%s2 + $0x1c8] sm:$0xff]
  %v84 = vld [vmem:[%s2 + $0x1d0] sm:$0xff]
  %v85 = vld [vmem:[%s2 + $0x1d8] sm:$0xff]
  %v86 = vld [vmem:[%s2 + $0x1e0] sm:$0xff]
  %v87 = vld [vmem:[%s2 + $0x1e8] sm:$0xff]
  %v88 = vld [vmem:[%s2 + $0x1f0] sm:$0xff]
  %v89 = vld [vmem:[%s2 + $0x1f8] sm:$0xff]
  %v92 = vunpack.c.l.b16 %v24
  %v93 = vunpack.c.l.b16 %v25
  %v94 = vpack.c.b16 %v93, %v92
  %v160 = vunpack.c.l.b16 %v26
  %v161 = vunpack.c.h.b16 %v26
  %v162 = vunpack.c.l.b16 %v27
  %v163 = vunpack.c.h.b16 %v27
  %v164 = vunpack.c.l.b16 %v28
  %v165 = vunpack.c.h.b16 %v28
  %v166 = vunpack.c.l.b16 %v29
  %v167 = vunpack.c.h.b16 %v29
  %v168 = vunpack.c.l.b16 %v30
  %v169 = vunpack.c.h.b16 %v30
  %v170 = vunpack.c.l.b16 %v31
  %v171 = vunpack.c.h.b16 %v31
  %v172 = vunpack.c.l.b16 %v32
  %v173 = vunpack.c.h.b16 %v32
  %v174 = vunpack.c.l.b16 %v33
  %v175 = vunpack.c.h.b16 %v33
  %v176 = vunpack.c.l.b16 %v34
  %v177 = vunpack.c.h.b16 %v34
  %v178 = vunpack.c.l.b16 %v35
  %v179 = vunpack.c.h.b16 %v35
  %v180 = vunpack.c.l.b16 %v36
  %v181 = vunpack.c.h.b16 %v36
  %v182 = vunpack.c.l.b16 %v37
  %v183 = vunpack.c.h.b16 %v37
  %v184 = vunpack.c.l.b16 %v38
  %v185 = vunpack.c.h.b16 %v38
  %v186 = vunpack.c.l.b16 %v39
  %v187 = vunpack.c.h.b16 %v39
  %v188 = vunpack.c.l.b16 %v40
  %v189 = vunpack.c.h.b16 %v40
  %v190 = vunpack.c.l.b16 %v41
  %v191 = vunpack.c.h.b16 %v41
  %v192 = vunpack.c.l.b16 %v42
  %v193 = vunpack.c.h.b16 %v42
  %v194 = vunpack.c.l.b16 %v43
  %v195 = vunpack.c.h.b16 %v43
  %v196 = vunpack.c.l.b16 %v44
  %v197 = vunpack.c.h.b16 %v44
  %v198 = vunpack.c.l.b16 %v45
  %v199 = vunpack.c.h.b16 %v45
  %v200 = vunpack.c.l.b16 %v46
  %v201 = vunpack.c.h.b16 %v46
  %v202 = vunpack.c.l.b16 %v47
  %v203 = vunpack.c.h.b16 %v47
  %v204 = vunpack.c.l.b16 %v48
  %v205 = vunpack.c.h.b16 %v48
  %v206 = vunpack.c.l.b16 %v49
  %v207 = vunpack.c.h.b16 %v49
  %v208 = vunpack.c.l.b16 %v50
  %v209 = vunpack.c.h.b16 %v50
  %v210 = vunpack.c.l.b16 %v51
  %v211 = vunpack.c.h.b16 %v51
  %v212 = vunpack.c.l.b16 %v52
  %v213 = vunpack.c.h.b16 %v52
  %v214 = vunpack.c.l.b16 %v53
  %v215 = vunpack.c.h.b16 %v53
  %v216 = vunpack.c.l.b16 %v54
  %v217 = vunpack.c.h.b16 %v54
  %v218 = vunpack.c.l.b16 %v55
  %v219 = vunpack.c.h.b16 %v55
  %v220 = vunpack.c.l.b16 %v56
  %v221 = vunpack.c.h.b16 %v56
  %v222 = vunpack.c.l.b16 %v57
  %v223 = vunpack.c.h.b16 %v57
  %v224 = vunpack.c.l.b16 %v58
  %v225 = vunpack.c.h.b16 %v58
  %v226 = vunpack.c.l.b16 %v59
  %v227 = vunpack.c.h.b16 %v59
  %v228 = vunpack.c.l.b16 %v60
  %v229 = vunpack.c.h.b16 %v60
  %v230 = vunpack.c.l.b16 %v61
  %v231 = vunpack.c.h.b16 %v61
  %v232 = vunpack.c.l.b16 %v62
  %v233 = vunpack.c.h.b16 %v62
  %v234 = vunpack.c.l.b16 %v63
  %v235 = vunpack.c.h.b16 %v63
  %v236 = vunpack.c.l.b16 %v64
  %v237 = vunpack.c.h.b16 %v64
  %v238 = vunpack.c.l.b16 %v65
  %v239 = vunpack.c.h.b16 %v65
  %v240 = vunpack.c.l.b16 %v66
  %v241 = vunpack.c.h.b16 %v66
  %v242 = vunpack.c.l.b16 %v67
  %v243 = vunpack.c.h.b16 %v67
  %v244 = vunpack.c.l.b16 %v68
  %v245 = vunpack.c.h.b16 %v68
  %v246 = vunpack.c.l.b16 %v69
  %v247 = vunpack.c.h.b16 %v69
  %v248 = vunpack.c.l.b16 %v70
  %v249 = vunpack.c.h.b16 %v70
  %v250 = vunpack.c.l.b16 %v71
  %v251 = vunpack.c.h.b16 %v71
  %v252 = vunpack.c.l.b16 %v72
  %v253 = vunpack.c.h.b16 %v72
  %v254 = vunpack.c.l.b16 %v73
  %v255 = vunpack.c.h.b16 %v73
  %v256 = vunpack.c.l.b16 %v74
  %v257 = vunpack.c.h.b16 %v74
  %v258 = vunpack.c.l.b16 %v75
  %v259 = vunpack.c.h.b16 %v75
  %v260 = vunpack.c.l.b16 %v76
  %v261 = vunpack.c.h.b16 %v76
  %v262 = vunpack.c.l.b16 %v77
  %v263 = vunpack.c.h.b16 %v77
  %v264 = vunpack.c.l.b16 %v78
  %v265 = vunpack.c.h.b16 %v78
  %v266 = vunpack.c.l.b16 %v79
  %v267 = vunpack.c.h.b16 %v79
  %v268 = vunpack.c.l.b16 %v80
  %v269 = vunpack.c.h.b16 %v80
  %v270 = vunpack.c.l.b16 %v81
  %v271 = vunpack.c.h.b16 %v81
  %v272 = vunpack.c.l.b16 %v82
  %v273 = vunpack.c.h.b16 %v82
  %v274 = vunpack.c.l.b16 %v83
  %v275 = vunpack.c.h.b16 %v83
  %v276 = vunpack.c.l.b16 %v84
  %v277 = vunpack.c.h.b16 %v84
  %v278 = vunpack.c.l.b16 %v85
  %v279 = vunpack.c.h.b16 %v85
  %v280 = vunpack.c.l.b16 %v86
  %v281 = vunpack.c.h.b16 %v86
  %v282 = vunpack.c.l.b16 %v87
  %v283 = vunpack.c.h.b16 %v87
  %v284 = vunpack.c.l.b16 %v88
  %v285 = vunpack.c.h.b16 %v88
  %v286 = vunpack.c.l.b16 %v89
  %v287 = vunpack.c.h.b16 %v89
  %v288 = vpack.c.b16 %v168, %v160
  %v289 = vpack.c.b16 %v169, %v161
  %v290 = vpack.c.b16 %v170, %v162
  %v291 = vpack.c.b16 %v171, %v163
  %v292 = vpack.c.b16 %v172, %v164
  %v293 = vpack.c.b16 %v173, %v165
  %v294 = vpack.c.b16 %v174, %v166
  %v295 = vpack.c.b16 %v175, %v167
  %v296 = vpack.c.b16 %v184, %v176
  %v297 = vpack.c.b16 %v185, %v177
  %v298 = vpack.c.b16 %v186, %v178
  %v299 = vpack.c.b16 %v187, %v179
  %v300 = vpack.c.b16 %v188, %v180
  %v301 = vpack.c.b16 %v189, %v181
  %v302 = vpack.c.b16 %v190, %v182
  %v303 = vpack.c.b16 %v191, %v183
  %v304 = vpack.c.b16 %v200, %v192
  %v305 = vpack.c.b16 %v201, %v193
  %v306 = vpack.c.b16 %v202, %v194
  %v307 = vpack.c.b16 %v203, %v195
  %v308 = vpack.c.b16 %v204, %v196
  %v309 = vpack.c.b16 %v205, %v197
  %v310 = vpack.c.b16 %v206, %v198
  %v311 = vpack.c.b16 %v207, %v199
  %v312 = vpack.c.b16 %v216, %v208
  %v313 = vpack.c.b16 %v217, %v209
  %v314 = vpack.c.b16 %v218, %v210
  %v315 = vpack.c.b16 %v219, %v211
  %v316 = vpack.c.b16 %v220, %v212
  %v317 = vpack.c.b16 %v221, %v213
  %v318 = vpack.c.b16 %v222, %v214
  %v319 = vpack.c.b16 %v223, %v215
  %v320 = vpack.c.b16 %v232, %v224
  %v321 = vpack.c.b16 %v233, %v225
  %v322 = vpack.c.b16 %v234, %v226
  %v323 = vpack.c.b16 %v235, %v227
  %v324 = vpack.c.b16 %v236, %v228
  %v325 = vpack.c.b16 %v237, %v229
  %v326 = vpack.c.b16 %v238, %v230
  %v327 = vpack.c.b16 %v239, %v231
  %v328 = vpack.c.b16 %v248, %v240
  %v329 = vpack.c.b16 %v249, %v241
  %v330 = vpack.c.b16 %v250, %v242
  %v331 = vpack.c.b16 %v251, %v243
  %v332 = vpack.c.b16 %v252, %v244
  %v333 = vpack.c.b16 %v253, %v245
  %v334 = vpack.c.b16 %v254, %v246
  %v335 = vpack.c.b16 %v255, %v247
  %v336 = vpack.c.b16 %v264, %v256
  %v337 = vpack.c.b16 %v265, %v257
  %v338 = vpack.c.b16 %v266, %v258
  %v339 = vpack.c.b16 %v267, %v259
  %v340 = vpack.c.b16 %v268, %v260
  %v341 = vpack.c.b16 %v269, %v261
  %v342 = vpack.c.b16 %v270, %v262
  %v343 = vpack.c.b16 %v271, %v263
  %v344 = vpack.c.b16 %v280, %v272
  %v345 = vpack.c.b16 %v281, %v273
  %v346 = vpack.c.b16 %v282, %v274
  %v347 = vpack.c.b16 %v283, %v275
  %v348 = vpack.c.b16 %v284, %v276
  %v349 = vpack.c.b16 %v285, %v277
  %v350 = vpack.c.b16 %v286, %v278
  %v351 = vpack.c.b16 %v287, %v279
  %416 = vmatprep.subr.bf16.mxu0 %v289
  %417 = vmatpush1.bf16.msra.mxu0 %v288
  %418 = vmatprep.subr.bf16.mxu0 %v297
  %419 = vmatpush1.bf16.msra.mxu0 %v296
  %420 = vmatprep.subr.bf16.mxu0 %v305
  %421 = vmatpush1.bf16.msra.mxu0 %v304
  %422 = vmatprep.subr.bf16.mxu0 %v313
  %423 = vmatpush1.bf16.msra.mxu0 %v312
  %424 = vmatprep.subr.bf16.mxu0 %v321
  %425 = vmatpush1.bf16.msra.mxu0 %v320
  %426 = vmatprep.subr.bf16.mxu0 %v329
  %427 = vmatpush1.bf16.msra.mxu0 %v328
  %428 = vmatprep.subr.bf16.mxu0 %v337
  %429 = vmatpush1.bf16.msra.mxu0 %v336
  %430 = vmatprep.subr.bf16.mxu0 %v345
  %431 = vmatpush1.bf16.msra.mxu0 %v344
  %432 = vmatprep.subr.bf16.mxu0 0
  %433 = vmatpush1.bf16.msra.mxu0 0
  %434 = vmatprep.subr.bf16.mxu0 0
  %435 = vmatpush1.bf16.msra.mxu0 0
  %436 = vmatprep.subr.bf16.mxu0 0
  %437 = vmatpush1.bf16.msra.mxu0 0
  %438 = vmatprep.subr.bf16.mxu0 0
  %439 = vmatpush1.bf16.msra.mxu0 0
  %440 = vmatprep.subr.bf16.mxu0 0
  %441 = vmatpush1.bf16.msra.mxu0 0
  %442 = vmatprep.subr.bf16.mxu0 0
  %443 = vmatpush1.bf16.msra.mxu0 0
  %444 = vmatprep.subr.bf16.mxu0 0
  %445 = vmatpush1.bf16.msra.mxu0 0
  %446 = vmatprep.subr.bf16.mxu0 0
  %447 = vmatpush1.bf16.msra.mxu0 0
  %448 = vmatprep.mubr.bf16.mxu0 0
  %449 = vmatmul.mubr.bf16.gmra.mrb[0].mxu0 %v94
  %v450 = vpop.f32.mrb[0].mxu0
  %v451 = vadd.f32 0.0, %v450
  %v452 = vpop.f32.mrb[0].mxu0
  %v453 = vadd.f32 0.0, %v452
  %v454 = vpop.f32.mrb[0].mxu0
  %v455 = vadd.f32 0.0, %v454
  %v456 = vpop.f32.mrb[0].mxu0
  %v457 = vadd.f32 0.0, %v456
  %458 = vdwg.mxu0
  %459 = vmatprep.subr.bf16.mxu0 %v291
  %460 = vmatpush1.bf16.msra.mxu0 %v290
  %461 = vmatprep.subr.bf16.mxu0 %v299
  %462 = vmatpush1.bf16.msra.mxu0 %v298
  %463 = vmatprep.subr.bf16.mxu0 %v307
  %464 = vmatpush1.bf16.msra.mxu0 %v306
  %465 = vmatprep.subr.bf16.mxu0 %v315
  %466 = vmatpush1.bf16.msra.mxu0 %v314
  %467 = vmatprep.subr.bf16.mxu0 %v323
  %468 = vmatpush1.bf16.msra.mxu0 %v322
  %469 = vmatprep.subr.bf16.mxu0 %v331
  %470 = vmatpush1.bf16.msra.mxu0 %v330
  %471 = vmatprep.subr.bf16.mxu0 %v339
  %472 = vmatpush1.bf16.msra.mxu0 %v338
  %473 = vmatprep.subr.bf16.mxu0 %v347
  %474 = vmatpush1.bf16.msra.mxu0 %v346
  %475 = vmatprep.subr.bf16.mxu0 0
  %476 = vmatpush1.bf16.msra.mxu0 0
  %477 = vmatprep.subr.bf16.mxu0 0
  %478 = vmatpush1.bf16.msra.mxu0 0
  %479 = vmatprep.subr.bf16.mxu0 0
  %480 = vmatpush1.bf16.msra.mxu0 0
  %481 = vmatprep.subr.bf16.mxu0 0
  %482 = vmatpush1.bf16.msra.mxu0 0
  %483 = vmatprep.subr.bf16.mxu0 0
  %484 = vmatpush1.bf16.msra.mxu0 0
  %485 = vmatprep.subr.bf16.mxu0 0
  %486 = vmatpush1.bf16.msra.mxu0 0
  %487 = vmatprep.subr.bf16.mxu0 0
  %488 = vmatpush1.bf16.msra.mxu0 0
  %489 = vmatprep.subr.bf16.mxu0 0
  %490 = vmatpush1.bf16.msra.mxu0 0
  %491 = vmatprep.mubr.bf16.mxu0 0
  %492 = vmatmul.mubr.bf16.gmra.mrb[0].mxu0 %v94
  %v493 = vpop.f32.mrb[0].mxu0
  %v494 = vadd.f32 0.0, %v493
  %v495 = vpop.f32.mrb[0].mxu0
  %v496 = vadd.f32 0.0, %v495
  %v497 = vpop.f32.mrb[0].mxu0
  %v498 = vadd.f32 0.0, %v497
  %v499 = vpop.f32.mrb[0].mxu0
  %v500 = vadd.f32 0.0, %v499
  %501 = vdwg.mxu0
  %502 = vmatprep.subr.bf16.mxu0 %v293
  %503 = vmatpush1.bf16.msra.mxu0 %v292
  %504 = vmatprep.subr.bf16.mxu0 %v301
  %505 = vmatpush1.bf16.msra.mxu0 %v300
  %506 = vmatprep.subr.bf16.mxu0 %v309
  %507 = vmatpush1.bf16.msra.mxu0 %v308
  %508 = vmatprep.subr.bf16.mxu0 %v317
  %509 = vmatpush1.bf16.msra.mxu0 %v316
  %510 = vmatprep.subr.bf16.mxu0 %v325
  %511 = vmatpush1.bf16.msra.mxu0 %v324
  %512 = vmatprep.subr.bf16.mxu0 %v333
  %513 = vmatpush1.bf16.msra.mxu0 %v332
  %514 = vmatprep.subr.bf16.mxu0 %v341
  %515 = vmatpush1.bf16.msra.mxu0 %v340
  %516 = vmatprep.subr.bf16.mxu0 %v349
  %517 = vmatpush1.bf16.msra.mxu0 %v348
  %518 = vmatprep.subr.bf16.mxu0 0
  %519 = vmatpush1.bf16.msra.mxu0 0
  %520 = vmatprep.subr.bf16.mxu0 0
  %521 = vmatpush1.bf16.msra.mxu0 0
  %522 = vmatprep.subr.bf16.mxu0 0
  %523 = vmatpush1.bf16.msra.mxu0 0
  %524 = vmatprep.subr.bf16.mxu0 0
  %525 = vmatpush1.bf16.msra.mxu0 0
  %526 = vmatprep.subr.bf16.mxu0 0
  %527 = vmatpush1.bf16.msra.mxu0 0
  %528 = vmatprep.subr.bf16.mxu0 0
  %529 = vmatpush1.bf16.msra.mxu0 0
  %530 = vmatprep.subr.bf16.mxu0 0
  %531 = vmatpush1.bf16.msra.mxu0 0
  %532 = vmatprep.subr.bf16.mxu0 0
  %533 = vmatpush1.bf16.msra.mxu0 0
  %534 = vmatprep.mubr.bf16.mxu0 0
  %535 = vmatmul.mubr.bf16.gmra.mrb[0].mxu0 %v94
  %v536 = vpop.f32.mrb[0].mxu0
  %v537 = vadd.f32 0.0, %v536
  %v538 = vpop.f32.mrb[0].mxu0
  %v539 = vadd.f32 0.0, %v538
  %v540 = vpop.f32.mrb[0].mxu0
  %v541 = vadd.f32 0.0, %v540
  %v542 = vpop.f32.mrb[0].mxu0
  %v543 = vadd.f32 0.0, %v542
  %544 = vdwg.mxu0
  %545 = vmatprep.subr.bf16.mxu0 %v295
  %546 = vmatpush1.bf16.msra.mxu0 %v294
  %547 = vmatprep.subr.bf16.mxu0 %v303
  %548 = vmatpush1.bf16.msra.mxu0 %v302
  %549 = vmatprep.subr.bf16.mxu0 %v311
  %550 = vmatpush1.bf16.msra.mxu0 %v310
  %551 = vmatprep.subr.bf16.mxu0 %v319
  %552 = vmatpush1.bf16.msra.mxu0 %v318
  %553 = vmatprep.subr.bf16.mxu0 %v327
  %554 = vmatpush1.bf16.msra.mxu0 %v326
  %555 = vmatprep.subr.bf16.mxu0 %v335
  %556 = vmatpush1.bf16.msra.mxu0 %v334
  %557 = vmatprep.subr.bf16.mxu0 %v343
  %558 = vmatpush1.bf16.msra.mxu0 %v342
  %559 = vmatprep.subr.bf16.mxu0 %v351
  %560 = vmatpush1.bf16.msra.mxu0 %v350
  %561 = vmatprep.subr.bf16.mxu0 0
  %562 = vmatpush1.bf16.msra.mxu0 0
  %563 = vmatprep.subr.bf16.mxu0 0
  %564 = vmatpush1.bf16.msra.mxu0 0
  %565 = vmatprep.subr.bf16.mxu0 0
  %566 = vmatpush1.bf16.msra.mxu0 0
  %567 = vmatprep.subr.bf16.mxu0 0
  %568 = vmatpush1.bf16.msra.mxu0 0
  %569 = vmatprep.subr.bf16.mxu0 0
  %570 = vmatpush1.bf16.msra.mxu0 0
  %571 = vmatprep.subr.bf16.mxu0 0
  %572 = vmatpush1.bf16.msra.mxu0 0
  %573 = vmatprep.subr.bf16.mxu0 0
  %574 = vmatpush1.bf16.msra.mxu0 0
  %575 = vmatprep.subr.bf16.mxu0 0
  %576 = vmatpush1.bf16.msra.mxu0 0
  %577 = vmatprep.mubr.bf16.mxu0 0
  %578 = vmatmul.mubr.bf16.gmra.mrb[0].mxu0 %v94
  %v579 = vpop.f32.mrb[0].mxu0
  %v580 = vadd.f32 0.0, %v579
  %v581 = vpop.f32.mrb[0].mxu0
  %v582 = vadd.f32 0.0, %v581
  %v583 = vpop.f32.mrb[0].mxu0
  %v584 = vadd.f32 0.0, %v583
  %v585 = vpop.f32.mrb[0].mxu0
  %v586 = vadd.f32 0.0, %v585
  %587 = vdwg.mxu0
  %v588 = vld [vmem:[%s3] sm:$0xff]
  %v589 = vld [vmem:[%s3 + $0x8] sm:$0xff]
  %v590 = vld [vmem:[%s1] sm:$0xff]
  %v591 = vld [vmem:[%s1 + $0x8] sm:$0xff]
  %v592 = vld [vmem:[%s4] sm:$0xff]
  %v593 = vld [vmem:[%s4 + $0x8] sm:$0xff]
  %v594 = vld [vmem:[%s4 + $0x10] sm:$0xff]
  %v595 = vld [vmem:[%s4 + $0x18] sm:$0xff]
  %v596 = vld [vmem:[%s4 + $0x20] sm:$0xff]
  %v597 = vld [vmem:[%s4 + $0x28] sm:$0xff]
  %v598 = vld [vmem:[%s4 + $0x30] sm:$0xff]
  %v599 = vld [vmem:[%s4 + $0x38] sm:$0xff]
  %v600 = vld [vmem:[%s4 + $0x40] sm:$0xff]
  %v601 = vld [vmem:[%s4 + $0x48] sm:$0xff]
  %v602 = vld [vmem:[%s4 + $0x50] sm:$0xff]
  %v603 = vld [vmem:[%s4 + $0x58] sm:$0xff]
  %v604 = vld [vmem:[%s4 + $0x60] sm:$0xff]
  %v605 = vld [vmem:[%s4 + $0x68] sm:$0xff]
  %v606 = vld [vmem:[%s4 + $0x70] sm:$0xff]
  %v607 = vld [vmem:[%s4 + $0x78] sm:$0xff]
  %v608 = vld [vmem:[%s4 + $0x80] sm:$0xff]
  %v609 = vld [vmem:[%s4 + $0x88] sm:$0xff]
  %v610 = vld [vmem:[%s4 + $0x90] sm:$0xff]
  %v611 = vld [vmem:[%s4 + $0x98] sm:$0xff]
  %v612 = vld [vmem:[%s4 + $0xa0] sm:$0xff]
  %v613 = vld [vmem:[%s4 + $0xa8] sm:$0xff]
  %v614 = vld [vmem:[%s4 + $0xb0] sm:$0xff]
  %v615 = vld [vmem:[%s4 + $0xb8] sm:$0xff]
  %v616 = vld [vmem:[%s4 + $0xc0] sm:$0xff]
  %v617 = vld [vmem:[%s4 + $0xc8] sm:$0xff]
  %v618 = vld [vmem:[%s4 + $0xd0] sm:$0xff]
  %v619 = vld [vmem:[%s4 + $0xd8] sm:$0xff]
  %v620 = vld [vmem:[%s4 + $0xe0] sm:$0xff]
  %v621 = vld [vmem:[%s4 + $0xe8] sm:$0xff]
  %v622 = vld [vmem:[%s4 + $0xf0] sm:$0xff]
  %v623 = vld [vmem:[%s4 + $0xf8] sm:$0xff]
  %vm624 = vcmask 261120
  %v626 = vsel %vm624, %v590, 0
  %v629 = vsel %vm624, %v591, 0
  %631 = vmatprep.subr.mxu0 %v593
  %632 = vmatpush1.msra.mxu0 %v592
  %633 = vmatprep.subr.mxu0 %v601
  %634 = vmatpush1.msra.mxu0 %v600
  %635 = vmatprep.subr.mxu0 %v609
  %636 = vmatpush1.msra.mxu0 %v608
  %637 = vmatprep.subr.mxu0 %v617
  %638 = vmatpush1.msra.mxu0 %v616
  %639 = vmatprep.subr.mxu0 0.0
  %640 = vmatpush1.msra.mxu0 0.0
  %641 = vmatprep.subr.mxu0 0.0
  %642 = vmatpush1.msra.mxu0 0.0
  %643 = vmatprep.subr.mxu0 0.0
  %644 = vmatpush1.msra.mxu0 0.0
  %645 = vmatprep.subr.mxu0 0.0
  %646 = vmatpush1.msra.mxu0 0.0
  %647 = vmatprep.subr.mxu0 0.0
  %648 = vmatpush1.msra.mxu0 0.0
  %649 = vmatprep.subr.mxu0 0.0
  %650 = vmatpush1.msra.mxu0 0.0
  %651 = vmatprep.subr.mxu0 0.0
  %652 = vmatpush1.msra.mxu0 0.0
  %653 = vmatprep.subr.mxu0 0.0
  %654 = vmatpush1.msra.mxu0 0.0
  %655 = vmatprep.subr.mxu0 0.0
  %656 = vmatpush1.msra.mxu0 0.0
  %657 = vmatprep.subr.mxu0 0.0
  %658 = vmatpush1.msra.mxu0 0.0
  %659 = vmatprep.subr.mxu0 0.0
  %660 = vmatpush1.msra.mxu0 0.0
  %661 = vmatprep.subr.mxu0 0.0
  %662 = vmatpush1.msra.mxu0 0.0
  %663 = vmatprep.subr.mxu0 0.0
  %664 = vmatpush1.msra.mxu0 0.0
  %665 = vmatprep.subr.mxu0 0.0
  %666 = vmatpush1.msra.mxu0 0.0
  %667 = vmatprep.subr.mxu0 0.0
  %668 = vmatpush1.msra.mxu0 0.0
  %669 = vmatprep.subr.mxu0 0.0
  %670 = vmatpush1.msra.mxu0 0.0
  %671 = vmatprep.subr.mxu0 0.0
  %672 = vmatpush1.msra.mxu0 0.0
  %673 = vmatprep.subr.mxu0 0.0
  %674 = vmatpush1.msra.mxu0 0.0
  %675 = vmatprep.subr.mxu0 0.0
  %676 = vmatpush1.msra.mxu0 0.0
  %677 = vmatprep.subr.mxu0 0.0
  %678 = vmatpush1.msra.mxu0 0.0
  %679 = vmatprep.subr.mxu0 0.0
  %680 = vmatpush1.msra.mxu0 0.0
  %681 = vmatprep.subr.mxu0 0.0
  %682 = vmatpush1.msra.mxu0 0.0
  %683 = vmatprep.subr.mxu0 0.0
  %684 = vmatpush1.msra.mxu0 0.0
  %685 = vmatprep.subr.mxu0 0.0
  %686 = vmatpush1.msra.mxu0 0.0
  %687 = vmatprep.subr.mxu0 0.0
  %688 = vmatpush1.msra.mxu0 0.0
  %689 = vmatprep.subr.mxu0 0.0
  %690 = vmatpush1.msra.mxu0 0.0
  %691 = vmatprep.subr.mxu0 0.0
  %692 = vmatpush1.msra.mxu0 0.0
  %693 = vmatprep.subr.mxu0 0.0
  %694 = vmatpush1.msra.mxu0 0.0
  %695 = vmatprep.mubr.f32.mxu0 0.0
  %696 = vmatmul.mubr.f32.gmra.mrb[0].mxu0 %v626
  %v697 = vpop.f32.mrb[0].mxu0
  %v698 = vadd.f32 0.0, %v697
  %v699 = vpop.f32.mrb[0].mxu0
  %v700 = vadd.f32 0.0, %v699
  %701 = vmatprep.mubr.f32.mxu0 0.0
  %702 = vmatmul.mubr.f32.gmra.mrb[0].mxu0 %v629
  %v703 = vpop.f32.mrb[0].mxu0
  %v704 = vadd.f32 0.0, %v703
  %v705 = vpop.f32.mrb[0].mxu0
  %v706 = vadd.f32 0.0, %v705
  %707 = vdwg.mxu0
  %708 = vmatprep.subr.mxu0 %v595
  %709 = vmatpush1.msra.mxu0 %v594
  %710 = vmatprep.subr.mxu0 %v603
  %711 = vmatpush1.msra.mxu0 %v602
  %712 = vmatprep.subr.mxu0 %v611
  %713 = vmatpush1.msra.mxu0 %v610
  %714 = vmatprep.subr.mxu0 %v619
  %715 = vmatpush1.msra.mxu0 %v618
  %716 = vmatprep.subr.mxu0 0.0
  %717 = vmatpush1.msra.mxu0 0.0
  %718 = vmatprep.subr.mxu0 0.0
  %719 = vmatpush1.msra.mxu0 0.0
  %720 = vmatprep.subr.mxu0 0.0
  %721 = vmatpush1.msra.mxu0 0.0
  %722 = vmatprep.subr.mxu0 0.0
  %723 = vmatpush1.msra.mxu0 0.0
  %724 = vmatprep.subr.mxu0 0.0
  %725 = vmatpush1.msra.mxu0 0.0
  %726 = vmatprep.subr.mxu0 0.0
  %727 = vmatpush1.msra.mxu0 0.0
  %728 = vmatprep.subr.mxu0 0.0
  %729 = vmatpush1.msra.mxu0 0.0
  %730 = vmatprep.subr.mxu0 0.0
  %731 = vmatpush1.msra.mxu0 0.0
  %732 = vmatprep.subr.mxu0 0.0
  %733 = vmatpush1.msra.mxu0 0.0
  %734 = vmatprep.subr.mxu0 0.0
  %735 = vmatpush1.msra.mxu0 0.0
  %736 = vmatprep.subr.mxu0 0.0
  %737 = vmatpush1.msra.mxu0 0.0
  %738 = vmatprep.subr.mxu0 0.0
  %739 = vmatpush1.msra.mxu0 0.0
  %740 = vmatprep.subr.mxu0 0.0
  %741 = vmatpush1.msra.mxu0 0.0
  %742 = vmatprep.subr.mxu0 0.0
  %743 = vmatpush1.msra.mxu0 0.0
  %744 = vmatprep.subr.mxu0 0.0
  %745 = vmatpush1.msra.mxu0 0.0
  %746 = vmatprep.subr.mxu0 0.0
  %747 = vmatpush1.msra.mxu0 0.0
  %748 = vmatprep.subr.mxu0 0.0
  %749 = vmatpush1.msra.mxu0 0.0
  %750 = vmatprep.subr.mxu0 0.0
  %751 = vmatpush1.msra.mxu0 0.0
  %752 = vmatprep.subr.mxu0 0.0
  %753 = vmatpush1.msra.mxu0 0.0
  %754 = vmatprep.subr.mxu0 0.0
  %755 = vmatpush1.msra.mxu0 0.0
  %756 = vmatprep.subr.mxu0 0.0
  %757 = vmatpush1.msra.mxu0 0.0
  %758 = vmatprep.subr.mxu0 0.0
  %759 = vmatpush1.msra.mxu0 0.0
  %760 = vmatprep.subr.mxu0 0.0
  %761 = vmatpush1.msra.mxu0 0.0
  %762 = vmatprep.subr.mxu0 0.0
  %763 = vmatpush1.msra.mxu0 0.0
  %764 = vmatprep.subr.mxu0 0.0
  %765 = vmatpush1.msra.mxu0 0.0
  %766 = vmatprep.subr.mxu0 0.0
  %767 = vmatpush1.msra.mxu0 0.0
  %768 = vmatprep.subr.mxu0 0.0
  %769 = vmatpush1.msra.mxu0 0.0
  %770 = vmatprep.subr.mxu0 0.0
  %771 = vmatpush1.msra.mxu0 0.0
  %772 = vmatprep.mubr.f32.mxu0 0.0
  %773 = vmatmul.mubr.f32.gmra.mrb[0].mxu0 %v626
  %v774 = vpop.f32.mrb[0].mxu0
  %v775 = vadd.f32 0.0, %v774
  %v776 = vpop.f32.mrb[0].mxu0
  %v777 = vadd.f32 0.0, %v776
  %778 = vmatprep.mubr.f32.mxu0 0.0
  %779 = vmatmul.mubr.f32.gmra.mrb[0].mxu0 %v629
  %v780 = vpop.f32.mrb[0].mxu0
  %v781 = vadd.f32 0.0, %v780
  %v782 = vpop.f32.mrb[0].mxu0
  %v783 = vadd.f32 0.0, %v782
  %784 = vdwg.mxu0
  %785 = vmatprep.subr.mxu0 %v597
  %786 = vmatpush1.msra.mxu0 %v596
  %787 = vmatprep.subr.mxu0 %v605
  %788 = vmatpush1.msra.mxu0 %v604
  %789 = vmatprep.subr.mxu0 %v613
  %790 = vmatpush1.msra.mxu0 %v612
  %791 = vmatprep.subr.mxu0 %v621
  %792 = vmatpush1.msra.mxu0 %v620
  %793 = vmatprep.subr.mxu0 0.0
  %794 = vmatpush1.msra.mxu0 0.0
  %795 = vmatprep.subr.mxu0 0.0
  %796 = vmatpush1.msra.mxu0 0.0
  %797 = vmatprep.subr.mxu0 0.0
  %798 = vmatpush1.msra.mxu0 0.0
  %799 = vmatprep.subr.mxu0 0.0
  %800 = vmatpush1.msra.mxu0 0.0
  %801 = vmatprep.subr.mxu0 0.0
  %802 = vmatpush1.msra.mxu0 0.0
  %803 = vmatprep.subr.mxu0 0.0
  %804 = vmatpush1.msra.mxu0 0.0
  %805 = vmatprep.subr.mxu0 0.0
  %806 = vmatpush1.msra.mxu0 0.0
  %807 = vmatprep.subr.mxu0 0.0
  %808 = vmatpush1.msra.mxu0 0.0
  %809 = vmatprep.subr.mxu0 0.0
  %810 = vmatpush1.msra.mxu0 0.0
  %811 = vmatprep.subr.mxu0 0.0
  %812 = vmatpush1.msra.mxu0 0.0
  %813 = vmatprep.subr.mxu0 0.0
  %814 = vmatpush1.msra.mxu0 0.0
  %815 = vmatprep.subr.mxu0 0.0
  %816 = vmatpush1.msra.mxu0 0.0
  %817 = vmatprep.subr.mxu0 0.0
  %818 = vmatpush1.msra.mxu0 0.0
  %819 = vmatprep.subr.mxu0 0.0
  %820 = vmatpush1.msra.mxu0 0.0
  %821 = vmatprep.subr.mxu0 0.0
  %822 = vmatpush1.msra.mxu0 0.0
  %823 = vmatprep.subr.mxu0 0.0
  %824 = vmatpush1.msra.mxu0 0.0
  %825 = vmatprep.subr.mxu0 0.0
  %826 = vmatpush1.msra.mxu0 0.0
  %827 = vmatprep.subr.mxu0 0.0
  %828 = vmatpush1.msra.mxu0 0.0
  %829 = vmatprep.subr.mxu0 0.0
  %830 = vmatpush1.msra.mxu0 0.0
  %831 = vmatprep.subr.mxu0 0.0
  %832 = vmatpush1.msra.mxu0 0.0
  %833 = vmatprep.subr.mxu0 0.0
  %834 = vmatpush1.msra.mxu0 0.0
  %835 = vmatprep.subr.mxu0 0.0
  %836 = vmatpush1.msra.mxu0 0.0
  %837 = vmatprep.subr.mxu0 0.0
  %838 = vmatpush1.msra.mxu0 0.0
  %839 = vmatprep.subr.mxu0 0.0
  %840 = vmatpush1.msra.mxu0 0.0
  %841 = vmatprep.subr.mxu0 0.0
  %842 = vmatpush1.msra.mxu0 0.0
  %843 = vmatprep.subr.mxu0 0.0
  %844 = vmatpush1.msra.mxu0 0.0
  %845 = vmatprep.subr.mxu0 0.0
  %846 = vmatpush1.msra.mxu0 0.0
  %847 = vmatprep.subr.mxu0 0.0
  %848 = vmatpush1.msra.mxu0 0.0
  %849 = vmatprep.mubr.f32.mxu0 0.0
  %850 = vmatmul.mubr.f32.gmra.mrb[0].mxu0 %v626
  %v851 = vpop.f32.mrb[0].mxu0
  %v852 = vadd.f32 0.0, %v851
  %v853 = vpop.f32.mrb[0].mxu0
  %v854 = vadd.f32 0.0, %v853
  %855 = vmatprep.mubr.f32.mxu0 0.0
  %856 = vmatmul.mubr.f32.gmra.mrb[0].mxu0 %v629
  %v857 = vpop.f32.mrb[0].mxu0
  %v858 = vadd.f32 0.0, %v857
  %v859 = vpop.f32.mrb[0].mxu0
  %v860 = vadd.f32 0.0, %v859
  %861 = vdwg.mxu0
  %862 = vmatprep.subr.mxu0 %v599
  %863 = vmatpush1.msra.mxu0 %v598
  %864 = vmatprep.subr.mxu0 %v607
  %865 = vmatpush1.msra.mxu0 %v606
  %866 = vmatprep.subr.mxu0 %v615
  %867 = vmatpush1.msra.mxu0 %v614
  %868 = vmatprep.subr.mxu0 %v623
  %869 = vmatpush1.msra.mxu0 %v622
  %870 = vmatprep.subr.mxu0 0.0
  %871 = vmatpush1.msra.mxu0 0.0
  %872 = vmatprep.subr.mxu0 0.0
  %873 = vmatpush1.msra.mxu0 0.0
  %874 = vmatprep.subr.mxu0 0.0
  %875 = vmatpush1.msra.mxu0 0.0
  %876 = vmatprep.subr.mxu0 0.0
  %877 = vmatpush1.msra.mxu0 0.0
  %878 = vmatprep.subr.mxu0 0.0
  %879 = vmatpush1.msra.mxu0 0.0
  %880 = vmatprep.subr.mxu0 0.0
  %881 = vmatpush1.msra.mxu0 0.0
  %882 = vmatprep.subr.mxu0 0.0
  %883 = vmatpush1.msra.mxu0 0.0
  %884 = vmatprep.subr.mxu0 0.0
  %885 = vmatpush1.msra.mxu0 0.0
  %886 = vmatprep.subr.mxu0 0.0
  %887 = vmatpush1.msra.mxu0 0.0
  %888 = vmatprep.subr.mxu0 0.0
  %889 = vmatpush1.msra.mxu0 0.0
  %890 = vmatprep.subr.mxu0 0.0
  %891 = vmatpush1.msra.mxu0 0.0
  %892 = vmatprep.subr.mxu0 0.0
  %893 = vmatpush1.msra.mxu0 0.0
  %894 = vmatprep.subr.mxu0 0.0
  %895 = vmatpush1.msra.mxu0 0.0
  %896 = vmatprep.subr.mxu0 0.0
  %897 = vmatpush1.msra.mxu0 0.0
  %898 = vmatprep.subr.mxu0 0.0
  %899 = vmatpush1.msra.mxu0 0.0
  %900 = vmatprep.subr.mxu0 0.0
  %901 = vmatpush1.msra.mxu0 0.0
  %902 = vmatprep.subr.mxu0 0.0
  %903 = vmatpush1.msra.mxu0 0.0
  %904 = vmatprep.subr.mxu0 0.0
  %905 = vmatpush1.msra.mxu0 0.0
  %906 = vmatprep.subr.mxu0 0.0
  %907 = vmatpush1.msra.mxu0 0.0
  %908 = vmatprep.subr.mxu0 0.0
  %909 = vmatpush1.msra.mxu0 0.0
  %910 = vmatprep.subr.mxu0 0.0
  %911 = vmatpush1.msra.mxu0 0.0
  %912 = vmatprep.subr.mxu0 0.0
  %913 = vmatpush1.msra.mxu0 0.0
  %914 = vmatprep.subr.mxu0 0.0
  %915 = vmatpush1.msra.mxu0 0.0
  %916 = vmatprep.subr.mxu0 0.0
  %917 = vmatpush1.msra.mxu0 0.0
  %918 = vmatprep.subr.mxu0 0.0
  %919 = vmatpush1.msra.mxu0 0.0
  %920 = vmatprep.subr.mxu0 0.0
  %921 = vmatpush1.msra.mxu0 0.0
  %922 = vmatprep.subr.mxu0 0.0
  %923 = vmatpush1.msra.mxu0 0.0
  %924 = vmatprep.subr.mxu0 0.0
  %925 = vmatpush1.msra.mxu0 0.0
  %926 = vmatprep.mubr.f32.mxu0 0.0
  %927 = vmatmul.mubr.f32.gmra.mrb[0].mxu0 %v626
  %v928 = vpop.f32.mrb[0].mxu0
  %v929 = vadd.f32 0.0, %v928
  %v930 = vpop.f32.mrb[0].mxu0
  %v931 = vadd.f32 0.0, %v930
  %932 = vmatprep.mubr.f32.mxu0 0.0
  %933 = vmatmul.mubr.f32.gmra.mrb[0].mxu0 %v629
  %v934 = vpop.f32.mrb[0].mxu0
  %v935 = vadd.f32 0.0, %v934
  %v936 = vpop.f32.mrb[0].mxu0
  %v937 = vadd.f32 0.0, %v936
  %938 = vdwg.mxu0
  %vm939 = vcmask 130048
  %v941 = vsel %vm939, %v588, 0
  %v944 = vsel %vm939, %v589, 0
  %946 = vmatprep.subr.mxu0 %v453
  %947 = vmatpush1.msra.mxu0 %v451
  %948 = vmatprep.subr.mxu0 %v457
  %949 = vmatpush1.msra.mxu0 %v455
  %950 = vmatprep.subr.mxu0 0.0
  %951 = vmatpush1.msra.mxu0 0.0
  %952 = vmatprep.subr.mxu0 0.0
  %953 = vmatpush1.msra.mxu0 0.0
  %954 = vmatprep.subr.mxu0 0.0
  %955 = vmatpush1.msra.mxu0 0.0
  %956 = vmatprep.subr.mxu0 0.0
  %957 = vmatpush1.msra.mxu0 0.0
  %958 = vmatprep.subr.mxu0 0.0
  %959 = vmatpush1.msra.mxu0 0.0
  %960 = vmatprep.subr.mxu0 0.0
  %961 = vmatpush1.msra.mxu0 0.0
  %962 = vmatprep.subr.mxu0 0.0
  %963 = vmatpush1.msra.mxu0 0.0
  %964 = vmatprep.subr.mxu0 0.0
  %965 = vmatpush1.msra.mxu0 0.0
  %966 = vmatprep.subr.mxu0 0.0
  %967 = vmatpush1.msra.mxu0 0.0
  %968 = vmatprep.subr.mxu0 0.0
  %969 = vmatpush1.msra.mxu0 0.0
  %970 = vmatprep.subr.mxu0 0.0
  %971 = vmatpush1.msra.mxu0 0.0
  %972 = vmatprep.subr.mxu0 0.0
  %973 = vmatpush1.msra.mxu0 0.0
  %974 = vmatprep.subr.mxu0 0.0
  %975 = vmatpush1.msra.mxu0 0.0
  %976 = vmatprep.subr.mxu0 0.0
  %977 = vmatpush1.msra.mxu0 0.0
  %978 = vmatprep.subr.mxu0 0.0
  %979 = vmatpush1.msra.mxu0 0.0
  %980 = vmatprep.subr.mxu0 0.0
  %981 = vmatpush1.msra.mxu0 0.0
  %982 = vmatprep.subr.mxu0 0.0
  %983 = vmatpush1.msra.mxu0 0.0
  %984 = vmatprep.subr.mxu0 0.0
  %985 = vmatpush1.msra.mxu0 0.0
  %986 = vmatprep.subr.mxu0 0.0
  %987 = vmatpush1.msra.mxu0 0.0
  %988 = vmatprep.subr.mxu0 0.0
  %989 = vmatpush1.msra.mxu0 0.0
  %990 = vmatprep.subr.mxu0 0.0
  %991 = vmatpush1.msra.mxu0 0.0
  %992 = vmatprep.subr.mxu0 0.0
  %993 = vmatpush1.msra.mxu0 0.0
  %994 = vmatprep.subr.mxu0 0.0
  %995 = vmatpush1.msra.mxu0 0.0
  %996 = vmatprep.subr.mxu0 0.0
  %997 = vmatpush1.msra.mxu0 0.0
  %998 = vmatprep.subr.mxu0 0.0
  %999 = vmatpush1.msra.mxu0 0.0
  %1000 = vmatprep.subr.mxu0 0.0
  %1001 = vmatpush1.msra.mxu0 0.0
  %1002 = vmatprep.subr.mxu0 0.0
  %1003 = vmatpush1.msra.mxu0 0.0
  %1004 = vmatprep.subr.mxu0 0.0
  %1005 = vmatpush1.msra.mxu0 0.0
  %1006 = vmatprep.subr.mxu0 0.0
  %1007 = vmatpush1.msra.mxu0 0.0
  %1008 = vmatprep.subr.mxu0 0.0
  %1009 = vmatpush1.msra.mxu0 0.0
  %1010 = vmatprep.mubr.f32.mxu0 0.0
  %1011 = vmatmul.mubr.f32.gmra.mrb[0].mxu0 %v941
  %v1012 = vpop.f32.mrb[0].mxu0
  %v1013 = vadd.f32 %v698, %v1012
  %v1014 = vpop.f32.mrb[0].mxu0
  %v1015 = vadd.f32 %v700, %v1014
  %1016 = vmatprep.mubr.f32.mxu0 0.0
  %1017 = vmatmul.mubr.f32.gmra.mrb[0].mxu0 %v944
  %v1018 = vpop.f32.mrb[0].mxu0
  %v1019 = vadd.f32 %v704, %v1018
  %v1020 = vpop.f32.mrb[0].mxu0
  %v1021 = vadd.f32 %v706, %v1020
  %1022 = vdwg.mxu0
  %1023 = vmatprep.subr.mxu0 %v496
  %1024 = vmatpush1.msra.mxu0 %v494
  %1025 = vmatprep.subr.mxu0 %v500
  %1026 = vmatpush1.msra.mxu0 %v498
  %1027 = vmatprep.subr.mxu0 0.0
  %1028 = vmatpush1.msra.mxu0 0.0
  %1029 = vmatprep.subr.mxu0 0.0
  %1030 = vmatpush1.msra.mxu0 0.0
  %1031 = vmatprep.subr.mxu0 0.0
  %1032 = vmatpush1.msra.mxu0 0.0
  %1033 = vmatprep.subr.mxu0 0.0
  %1034 = vmatpush1.msra.mxu0 0.0
  %1035 = vmatprep.subr.mxu0 0.0
  %1036 = vmatpush1.msra.mxu0 0.0
  %1037 = vmatprep.subr.mxu0 0.0
  %1038 = vmatpush1.msra.mxu0 0.0
  %1039 = vmatprep.subr.mxu0 0.0
  %1040 = vmatpush1.msra.mxu0 0.0
  %1041 = vmatprep.subr.mxu0 0.0
  %1042 = vmatpush1.msra.mxu0 0.0
  %1043 = vmatprep.subr.mxu0 0.0
  %1044 = vmatpush1.msra.mxu0 0.0
  %1045 = vmatprep.subr.mxu0 0.0
  %1046 = vmatpush1.msra.mxu0 0.0
  %1047 = vmatprep.subr.mxu0 0.0
  %1048 = vmatpush1.msra.mxu0 0.0
  %1049 = vmatprep.subr.mxu0 0.0
  %1050 = vmatpush1.msra.mxu0 0.0
  %1051 = vmatprep.subr.mxu0 0.0
  %1052 = vmatpush1.msra.mxu0 0.0
  %1053 = vmatprep.subr.mxu0 0.0
  %1054 = vmatpush1.msra.mxu0 0.0
  %1055 = vmatprep.subr.mxu0 0.0
  %1056 = vmatpush1.msra.mxu0 0.0
  %1057 = vmatprep.subr.mxu0 0.0
  %1058 = vmatpush1.msra.mxu0 0.0
  %1059 = vmatprep.subr.mxu0 0.0
  %1060 = vmatpush1.msra.mxu0 0.0
  %1061 = vmatprep.subr.mxu0 0.0
  %1062 = vmatpush1.msra.mxu0 0.0
  %1063 = vmatprep.subr.mxu0 0.0
  %1064 = vmatpush1.msra.mxu0 0.0
  %1065 = vmatprep.subr.mxu0 0.0
  %1066 = vmatpush1.msra.mxu0 0.0
  %1067 = vmatprep.subr.mxu0 0.0
  %1068 = vmatpush1.msra.mxu0 0.0
  %1069 = vmatprep.subr.mxu0 0.0
  %1070 = vmatpush1.msra.mxu0 0.0
  %1071 = vmatprep.subr.mxu0 0.0
  %1072 = vmatpush1.msra.mxu0 0.0
  %1073 = vmatprep.subr.mxu0 0.0
  %1074 = vmatpush1.msra.mxu0 0.0
  %1075 = vmatprep.subr.mxu0 0.0
  %1076 = vmatpush1.msra.mxu0 0.0
  %1077 = vmatprep.subr.mxu0 0.0
  %1078 = vmatpush1.msra.mxu0 0.0
  %1079 = vmatprep.subr.mxu0 0.0
  %1080 = vmatpush1.msra.mxu0 0.0
  %1081 = vmatprep.subr.mxu0 0.0
  %1082 = vmatpush1.msra.mxu0 0.0
  %1083 = vmatprep.subr.mxu0 0.0
  %1084 = vmatpush1.msra.mxu0 0.0
  %1085 = vmatprep.subr.mxu0 0.0
  %1086 = vmatpush1.msra.mxu0 0.0
  %1087 = vmatprep.mubr.f32.mxu0 0.0
  %1088 = vmatmul.mubr.f32.gmra.mrb[0].mxu0 %v941
  %v1089 = vpop.f32.mrb[0].mxu0
  %v1090 = vadd.f32 %v775, %v1089
  %v1091 = vpop.f32.mrb[0].mxu0
  %v1092 = vadd.f32 %v777, %v1091
  %1093 = vmatprep.mubr.f32.mxu0 0.0
  %1094 = vmatmul.mubr.f32.gmra.mrb[0].mxu0 %v944
  %v1095 = vpop.f32.mrb[0].mxu0
  %v1096 = vadd.f32 %v781, %v1095
  %v1097 = vpop.f32.mrb[0].mxu0
  %v1098 = vadd.f32 %v783, %v1097
  %1099 = vdwg.mxu0
  %1100 = vmatprep.subr.mxu0 %v539
  %1101 = vmatpush1.msra.mxu0 %v537
  %1102 = vmatprep.subr.mxu0 %v543
  %1103 = vmatpush1.msra.mxu0 %v541
  %1104 = vmatprep.subr.mxu0 0.0
  %1105 = vmatpush1.msra.mxu0 0.0
  %1106 = vmatprep.subr.mxu0 0.0
  %1107 = vmatpush1.msra.mxu0 0.0
  %1108 = vmatprep.subr.mxu0 0.0
  %1109 = vmatpush1.msra.mxu0 0.0
  %1110 = vmatprep.subr.mxu0 0.0
  %1111 = vmatpush1.msra.mxu0 0.0
  %1112 = vmatprep.subr.mxu0 0.0
  %1113 = vmatpush1.msra.mxu0 0.0
  %1114 = vmatprep.subr.mxu0 0.0
  %1115 = vmatpush1.msra.mxu0 0.0
  %1116 = vmatprep.subr.mxu0 0.0
  %1117 = vmatpush1.msra.mxu0 0.0
  %1118 = vmatprep.subr.mxu0 0.0
  %1119 = vmatpush1.msra.mxu0 0.0
  %1120 = vmatprep.subr.mxu0 0.0
  %1121 = vmatpush1.msra.mxu0 0.0
  %1122 = vmatprep.subr.mxu0 0.0
  %1123 = vmatpush1.msra.mxu0 0.0
  %1124 = vmatprep.subr.mxu0 0.0
  %1125 = vmatpush1.msra.mxu0 0.0
  %1126 = vmatprep.subr.mxu0 0.0
  %1127 = vmatpush1.msra.mxu0 0.0
  %1128 = vmatprep.subr.mxu0 0.0
  %1129 = vmatpush1.msra.mxu0 0.0
  %1130 = vmatprep.subr.mxu0 0.0
  %1131 = vmatpush1.msra.mxu0 0.0
  %1132 = vmatprep.subr.mxu0 0.0
  %1133 = vmatpush1.msra.mxu0 0.0
  %1134 = vmatprep.subr.mxu0 0.0
  %1135 = vmatpush1.msra.mxu0 0.0
  %1136 = vmatprep.subr.mxu0 0.0
  %1137 = vmatpush1.msra.mxu0 0.0
  %1138 = vmatprep.subr.mxu0 0.0
  %1139 = vmatpush1.msra.mxu0 0.0
  %1140 = vmatprep.subr.mxu0 0.0
  %1141 = vmatpush1.msra.mxu0 0.0
  %1142 = vmatprep.subr.mxu0 0.0
  %1143 = vmatpush1.msra.mxu0 0.0
  %1144 = vmatprep.subr.mxu0 0.0
  %1145 = vmatpush1.msra.mxu0 0.0
  %1146 = vmatprep.subr.mxu0 0.0
  %1147 = vmatpush1.msra.mxu0 0.0
  %1148 = vmatprep.subr.mxu0 0.0
  %1149 = vmatpush1.msra.mxu0 0.0
  %1150 = vmatprep.subr.mxu0 0.0
  %1151 = vmatpush1.msra.mxu0 0.0
  %1152 = vmatprep.subr.mxu0 0.0
  %1153 = vmatpush1.msra.mxu0 0.0
  %1154 = vmatprep.subr.mxu0 0.0
  %1155 = vmatpush1.msra.mxu0 0.0
  %1156 = vmatprep.subr.mxu0 0.0
  %1157 = vmatpush1.msra.mxu0 0.0
  %1158 = vmatprep.subr.mxu0 0.0
  %1159 = vmatpush1.msra.mxu0 0.0
  %1160 = vmatprep.subr.mxu0 0.0
  %1161 = vmatpush1.msra.mxu0 0.0
  %1162 = vmatprep.subr.mxu0 0.0
  %1163 = vmatpush1.msra.mxu0 0.0
  %1164 = vmatprep.mubr.f32.mxu0 0.0
  %1165 = vmatmul.mubr.f32.gmra.mrb[0].mxu0 %v941
  %v1166 = vpop.f32.mrb[0].mxu0
  %v1167 = vadd.f32 %v852, %v1166
  %v1168 = vpop.f32.mrb[0].mxu0
  %v1169 = vadd.f32 %v854, %v1168
  %1170 = vmatprep.mubr.f32.mxu0 0.0
  %1171 = vmatmul.mubr.f32.gmra.mrb[0].mxu0 %v944
  %v1172 = vpop.f32.mrb[0].mxu0
  %v1173 = vadd.f32 %v858, %v1172
  %v1174 = vpop.f32.mrb[0].mxu0
  %v1175 = vadd.f32 %v860, %v1174
  %1176 = vdwg.mxu0
  %1177 = vmatprep.subr.mxu0 %v582
  %1178 = vmatpush1.msra.mxu0 %v580
  %1179 = vmatprep.subr.mxu0 %v586
  %1180 = vmatpush1.msra.mxu0 %v584
  %1181 = vmatprep.subr.mxu0 0.0
  %1182 = vmatpush1.msra.mxu0 0.0
  %1183 = vmatprep.subr.mxu0 0.0
  %1184 = vmatpush1.msra.mxu0 0.0
  %1185 = vmatprep.subr.mxu0 0.0
  %1186 = vmatpush1.msra.mxu0 0.0
  %1187 = vmatprep.subr.mxu0 0.0
  %1188 = vmatpush1.msra.mxu0 0.0
  %1189 = vmatprep.subr.mxu0 0.0
  %1190 = vmatpush1.msra.mxu0 0.0
  %1191 = vmatprep.subr.mxu0 0.0
  %1192 = vmatpush1.msra.mxu0 0.0
  %1193 = vmatprep.subr.mxu0 0.0
  %1194 = vmatpush1.msra.mxu0 0.0
  %1195 = vmatprep.subr.mxu0 0.0
  %1196 = vmatpush1.msra.mxu0 0.0
  %1197 = vmatprep.subr.mxu0 0.0
  %1198 = vmatpush1.msra.mxu0 0.0
  %1199 = vmatprep.subr.mxu0 0.0
  %1200 = vmatpush1.msra.mxu0 0.0
  %1201 = vmatprep.subr.mxu0 0.0
  %1202 = vmatpush1.msra.mxu0 0.0
  %1203 = vmatprep.subr.mxu0 0.0
  %1204 = vmatpush1.msra.mxu0 0.0
  %1205 = vmatprep.subr.mxu0 0.0
  %1206 = vmatpush1.msra.mxu0 0.0
  %1207 = vmatprep.subr.mxu0 0.0
  %1208 = vmatpush1.msra.mxu0 0.0
  %1209 = vmatprep.subr.mxu0 0.0
  %1210 = vmatpush1.msra.mxu0 0.0
  %1211 = vmatprep.subr.mxu0 0.0
  %1212 = vmatpush1.msra.mxu0 0.0
  %1213 = vmatprep.subr.mxu0 0.0
  %1214 = vmatpush1.msra.mxu0 0.0
  %1215 = vmatprep.subr.mxu0 0.0
  %1216 = vmatpush1.msra.mxu0 0.0
  %1217 = vmatprep.subr.mxu0 0.0
  %1218 = vmatpush1.msra.mxu0 0.0
  %1219 = vmatprep.subr.mxu0 0.0
  %1220 = vmatpush1.msra.mxu0 0.0
  %1221 = vmatprep.subr.mxu0 0.0
  %1222 = vmatpush1.msra.mxu0 0.0
  %1223 = vmatprep.subr.mxu0 0.0
  %1224 = vmatpush1.msra.mxu0 0.0
  %1225 = vmatprep.subr.mxu0 0.0
  %1226 = vmatpush1.msra.mxu0 0.0
  %1227 = vmatprep.subr.mxu0 0.0
  %1228 = vmatpush1.msra.mxu0 0.0
  %1229 = vmatprep.subr.mxu0 0.0
  %1230 = vmatpush1.msra.mxu0 0.0
  %1231 = vmatprep.subr.mxu0 0.0
  %1232 = vmatpush1.msra.mxu0 0.0
  %1233 = vmatprep.subr.mxu0 0.0
  %1234 = vmatpush1.msra.mxu0 0.0
  %1235 = vmatprep.subr.mxu0 0.0
  %1236 = vmatpush1.msra.mxu0 0.0
  %1237 = vmatprep.subr.mxu0 0.0
  %1238 = vmatpush1.msra.mxu0 0.0
  %1239 = vmatprep.subr.mxu0 0.0
  %1240 = vmatpush1.msra.mxu0 0.0
  %1241 = vmatprep.mubr.f32.mxu0 0.0
  %1242 = vmatmul.mubr.f32.gmra.mrb[0].mxu0 %v941
  %v1243 = vpop.f32.mrb[0].mxu0
  %v1244 = vadd.f32 %v929, %v1243
  %v1245 = vpop.f32.mrb[0].mxu0
  %v1246 = vadd.f32 %v931, %v1245
  %1247 = vmatprep.mubr.f32.mxu0 0.0
  %1248 = vmatmul.mubr.f32.gmra.mrb[0].mxu0 %v944
  %v1249 = vpop.f32.mrb[0].mxu0
  %v1250 = vadd.f32 %v935, %v1249
  %v1251 = vpop.f32.mrb[0].mxu0
  %v1252 = vadd.f32 %v937, %v1251
  %1253 = vdwg.mxu0
  %v1254 = vld [vmem:[%s5] sm:$0xff]
  %v1255 = vld [vmem:[%s5 + $0x8] sm:$0xff]
  %v1256 = vld [vmem:[%s5 + $0x10] sm:$0xff]
  %v1257 = vld [vmem:[%s5 + $0x18] sm:$0xff]
  %v1258 = vld [vmem:[%s5 + $0x20] sm:$0xff]
  %v1259 = vld [vmem:[%s5 + $0x28] sm:$0xff]
  %v1260 = vld [vmem:[%s5 + $0x30] sm:$0xff]
  %v1261 = vld [vmem:[%s5 + $0x38] sm:$0xff]
  %v1262 = vld [vmem:[%s5 + $0x40] sm:$0xff]
  %v1263 = vld [vmem:[%s5 + $0x48] sm:$0xff]
  %v1264 = vld [vmem:[%s5 + $0x50] sm:$0xff]
  %v1265 = vld [vmem:[%s5 + $0x58] sm:$0xff]
  %v1266 = vld [vmem:[%s5 + $0x60] sm:$0xff]
  %v1267 = vld [vmem:[%s5 + $0x68] sm:$0xff]
  %v1268 = vld [vmem:[%s5 + $0x70] sm:$0xff]
  %v1269 = vld [vmem:[%s5 + $0x78] sm:$0xff]
  %v1270 = vadd.f32 %v1013, %v1254
  %v1271 = vadd.f32 %v1015, %v1255
  %v1272 = vadd.f32 %v1090, %v1256
  %v1273 = vadd.f32 %v1092, %v1257
  %v1274 = vadd.f32 %v1167, %v1258
  %v1275 = vadd.f32 %v1169, %v1259
  %v1276 = vadd.f32 %v1244, %v1260
  %v1277 = vadd.f32 %v1246, %v1261
  %v1278 = vadd.f32 %v1019, %v1262
  %v1279 = vadd.f32 %v1021, %v1263
  %v1280 = vadd.f32 %v1096, %v1264
  %v1281 = vadd.f32 %v1098, %v1265
  %v1282 = vadd.f32 %v1173, %v1266
  %v1283 = vadd.f32 %v1175, %v1267
  %v1284 = vadd.f32 %v1250, %v1268
  %v1285 = vadd.f32 %v1252, %v1269
  %1286 = vst [vmem:[%s6] sm:$0xff] %v1270
  %1287 = vst [vmem:[%s6 + $0x8] sm:$0xff] %v1271
  %1288 = vst [vmem:[%s6 + $0x10] sm:$0xff] %v1272
  %1289 = vst [vmem:[%s6 + $0x18] sm:$0xff] %v1273
  %1290 = vst [vmem:[%s6 + $0x20] sm:$0xff] %v1274
  %1291 = vst [vmem:[%s6 + $0x28] sm:$0xff] %v1275
  %1292 = vst [vmem:[%s6 + $0x30] sm:$0xff] %v1276
  %1293 = vst [vmem:[%s6 + $0x38] sm:$0xff] %v1277
  %1294 = vst [vmem:[%s6 + $0x40] sm:$0xff] %v1278
  %1295 = vst [vmem:[%s6 + $0x48] sm:$0xff] %v1279
  %1296 = vst [vmem:[%s6 + $0x50] sm:$0xff] %v1280
  %1297 = vst [vmem:[%s6 + $0x58] sm:$0xff] %v1281
  %1298 = vst [vmem:[%s6 + $0x60] sm:$0xff] %v1282
  %1299 = vst [vmem:[%s6 + $0x68] sm:$0xff] %v1283
  %1300 = vst [vmem:[%s6 + $0x70] sm:$0xff] %v1284
  %1301 = vst [vmem:[%s6 + $0x78] sm:$0xff] %v1285
  // Predicated region
  $region26: #{tmp_moment_embedding_forward.5} parent=0 // pred_check
    _
  $region27: #{tmp_moment_embedding_forward.5} parent=0 // pred_check_branch
    %1303 = sbr.rel (0) target = $region29
  $region28: #{tmp_moment_embedding_forward.5} parent=0 // pred_region
    _
  $region29: #{tmp_moment_embedding_forward.5} parent=0 // pred_fallthru
    _
  // Predicated region
  $region30: #{tmp_moment_embedding_forward.5} parent=0 // pred_check
    _
  $region31: #{tmp_moment_embedding_forward.5} parent=0 // pred_check_branch
    %1305 = sbr.rel (0) target = $region33
  $region32: #{tmp_moment_embedding_forward.5} parent=0 // pred_region
    _
  $region33: #{tmp_moment_embedding_forward.5} parent=0 // pred_fallthru
    _

</llo_original>
